<compile_context>
chip_gen: v7x
topology: tpu7x:2x2x1
jax: 0.10.0
libtpu: 0.0.40
codegen_flags: <defaults>
</compile_context>

<pallas_src>
import functools
import math

import jax
import jax.numpy as jnp
from jax.experimental import pallas as pl
from jax.experimental.pallas import tpu as pltpu


@functools.lru_cache(maxsize=None)
def _vmem_budget():
    """Per-generation VMEM budget: ~3/4 of physical, capped at 96 MiB (v5e/v6e), ~48 MiB on v7x."""
    cap = 64 * 1024 * 1024  # conservative fallback (v7x-sized)
    try:
        info = pltpu.get_tpu_info()
        cap = int(getattr(info, "vmem_capacity_bytes", cap))
    except Exception:
        pass
    return max(32 * 1024 * 1024, min(cap * 3 // 4, 96 * 1024 * 1024))


def _pick_tile(dim, preferred, align):
    """Largest multiple of `align` <= preferred that divides dim; else the full dim."""
    t = min(preferred, dim)
    t = (t // align) * align
    while t >= align:
        if dim % t == 0:
            return t
        t -= align
    return dim


# ----------------------------- Pallas kernels -----------------------------

def _fused_matmul_kernel(*refs, has_ln, epilogue, has_residual, eps, use_xcache):
    """[optional layernorm] -> x @ W + b -> [optional gelu/tanh] -> [optional + residual].

    When `use_xcache`, the layernorm + bf16 cast of the (tm, K) activation tile is computed only
    once per M-tile (at the first N tile) into a VMEM scratch and re-used for all N tiles.
    """
    it = iter(refs)
    x_ref = next(it)
    if has_ln:
        g_ref = next(it)
        be_ref = next(it)
    w_ref = next(it)
    b_ref = next(it)
    if has_residual:
        r_ref = next(it)
    o_ref = next(it)

    if use_xcache:
        xc_ref = next(it)  # (tm, K) bf16 scratch, carried across the N ("arbitrary") axis

        @pl.when(pl.program_id(1) == 0)
        def _():
            x = x_ref[...].astype(jnp.float32)
            if has_ln:
                mu = jnp.mean(x, axis=-1, keepdims=True)
                var = jnp.mean(jnp.square(x - mu), axis=-1, keepdims=True)
                x = (x - mu) * jax.lax.rsqrt(var + eps) * g_ref[...] + be_ref[...]
            xc_ref[...] = x.astype(jnp.bfloat16)

        xb = xc_ref[...]
    else:
        xb = x_ref[...]  # already bf16, no prologue

    # bf16 into the MXU, f32 accumulation.
    acc = jnp.dot(xb, w_ref[...], preferred_element_type=jnp.float32)
    acc = acc + b_ref[...]

    if epilogue == "gelu":
        c = math.sqrt(2.0 / math.pi)
        acc = 0.5 * acc * (1.0 + jnp.tanh(c * (acc + 0.044715 * acc * acc * acc)))
    elif epilogue == "tanh":
        acc = jnp.tanh(acc)

    if has_residual:
        acc = acc + r_ref[...].astype(jnp.float32)

    o_ref[...] = acc.astype(o_ref.dtype)


def _attention_kernel(q_ref, k_ref, v_ref, o_ref, *, hpg, dh, s_real):
    """Self-attention for one (image, 128-lane head group): q/k/v refs are (1, S, GL) bf16.

    The 1/sqrt(dh) scale is pre-folded into the Q projection weights. Padded key positions
    (sequence padded to a multiple of 16) are masked before the softmax.
    """
    q_all = q_ref[0]  # (S, GL) bf16
    k_all = k_ref[0]
    v_all = v_ref[0]
    S = q_all.shape[0]
    kmask = jax.lax.broadcasted_iota(jnp.int32, (1, S), 1) < s_real

    outs = []
    for h in range(hpg):
        q = q_all[:, h * dh:(h + 1) * dh]
        k = k_all[:, h * dh:(h + 1) * dh]
        v = v_all[:, h * dh:(h + 1) * dh]

        # q @ k^T via dot_general (contract on the feature axis; scale already folded into W_q).
        s = jax.lax.dot_general(q, k, (((1,), (1,)), ((), ())),
                                preferred_element_type=jnp.float32)
        s = jnp.where(kmask, s, -1e30)

        m = jnp.max(s, axis=-1, keepdims=True)
        p = jnp.exp(s - m)
        denom = jnp.sum(p, axis=-1, keepdims=True)
        p = p * pl.reciprocal(denom, approx=True)  # divide on the (otherwise idle) EUP

        outs.append(jnp.dot(p.astype(jnp.bfloat16), v, preferred_element_type=jnp.float32))

    # Single lane-dense (S, GL) store for the whole head group.
    o_ref[0] = jnp.concatenate(outs, axis=-1).astype(o_ref.dtype)


# ----------------------------- Pallas wrappers -----------------------------

def fused_matmul(x, w, b, *, ln=None, epilogue=None, residual=None,
                 out_dtype=jnp.float32, eps=1e-12):
    M, K = x.shape
    _, N = w.shape
    tm = _pick_tile(M, 512, 16)    # 16-row alignment: bf16 packs 16 rows per vreg
    tn = _pick_tile(N, 512, 128)

    # Hoist LN / f32->bf16 cast into a per-M-tile scratch only when there is work to hoist.
    use_xcache = (ln is not None) or (x.dtype != jnp.bfloat16)

    in_specs = [pl.BlockSpec((tm, K), lambda i, j: (i, 0))]
    args = [x]
    if ln is not None:
        g, be = ln
        in_specs += [pl.BlockSpec((1, K), lambda i, j: (0, 0)),
                     pl.BlockSpec((1, K), lambda i, j: (0, 0))]
        args += [g.reshape(1, K).astype(jnp.float32), be.reshape(1, K).astype(jnp.float32)]
    in_specs += [pl.BlockSpec((K, tn), lambda i, j: (0, j)),
                 pl.BlockSpec((1, tn), lambda i, j: (0, j))]
    args += [w, b.reshape(1, N).astype(jnp.float32)]
    if residual is not None:
        in_specs += [pl.BlockSpec((tm, tn), lambda i, j: (i, j))]
        args += [residual]

    scratch_shapes = []
    if use_xcache:
        scratch_shapes.append(pltpu.VMEM((tm, K), jnp.bfloat16))

    kern = functools.partial(
        _fused_matmul_kernel,
        has_ln=ln is not None, epilogue=epilogue,
        has_residual=residual is not None, eps=eps, use_xcache=use_xcache)

    # N axis is "arbitrary" when the bf16 x-cache is carried across it; M stays "parallel".
    semantics = ("parallel", "arbitrary") if use_xcache else ("parallel", "parallel")

    return pl.pallas_call(
        kern,
        grid=(M // tm, N // tn),
        in_specs=in_specs,
        out_specs=pl.BlockSpec((tm, tn), lambda i, j: (i, j)),
        out_shape=jax.ShapeDtypeStruct((M, N), out_dtype),
        scratch_shapes=tuple(scratch_shapes),
        compiler_params=pltpu.CompilerParams(
            dimension_semantics=semantics,
            vmem_limit_bytes=_vmem_budget()),
    )(*args)


def pallas_attention(qkv, *, heads, s_real):
    """qkv: (B, S, 3H) bf16 slab, laid out [Q | K | V], each head-major within its H columns."""
    B, S, H3 = qkv.shape
    H = H3 // 3
    dh = H // heads

    # Pick a 128-lane head-group width (pairs/quads of heads for dh=64/32).
    if dh % 128 == 0:
        gl = dh
    elif 128 % dh == 0 and H % 128 == 0:
        gl = 128
    else:
        gl = H  # fallback: whole-H group (requires H % 128 == 0, true for standard ViT configs)
    ng = H // gl
    hpg = gl // dh

    kern = functools.partial(_attention_kernel, hpg=hpg, dh=dh, s_real=s_real)
    return pl.pallas_call(
        kern,
        grid=(B, ng),
        in_specs=[pl.BlockSpec((1, S, gl), lambda b, g: (b, 0, g)),            # Q group
                  pl.BlockSpec((1, S, gl), lambda b, g: (b, 0, ng + g)),       # K group
                  pl.BlockSpec((1, S, gl), lambda b, g: (b, 0, 2 * ng + g))],  # V group
        out_specs=pl.BlockSpec((1, S, gl), lambda b, g: (b, 0, g)),
        out_shape=jax.ShapeDtypeStruct((B, S, H), jnp.bfloat16),
        compiler_params=pltpu.CompilerParams(
            dimension_semantics=("parallel", "parallel"),
            vmem_limit_bytes=_vmem_budget()),
    )(qkv, qkv, qkv)


# ----------------------------- parameters -----------------------------

def init_params(key, *, channels, patch, hidden, heads, mlp_dim, num_layers, num_patches):
    del heads
    std = 0.02
    seq = num_patches + 1
    keys = iter(jax.random.split(key, 8 + 8 * num_layers))

    def nrm(shape):
        return std * jax.random.normal(next(keys), shape, jnp.float32)

    params = {
        "w_pe": nrm((channels * patch * patch, hidden)),
        "b_pe": jnp.zeros((hidden,), jnp.float32),
        "cls": nrm((1, 1, hidden)),
        "pos": nrm((1, seq, hidden)),
        "ln_f_g": jnp.ones((hidden,), jnp.float32),
        "ln_f_b": jnp.zeros((hidden,), jnp.float32),
        "w_pool": nrm((hidden, hidden)),
        "b_pool": jnp.zeros((hidden,), jnp.float32),
        "layers": [],
    }
    for _ in range(num_layers):
        layer = {
            "ln1_g": jnp.ones((hidden,), jnp.float32),
            "ln1_b": jnp.zeros((hidden,), jnp.float32),
            "w_qkv": nrm((hidden, 3 * hidden)),
            "b_qkv": jnp.zeros((3 * hidden,), jnp.float32),
            "wo": nrm((hidden, hidden)), "bo": jnp.zeros((hidden,), jnp.float32),
            "ln2_g": jnp.ones((hidden,), jnp.float32),
            "ln2_b": jnp.zeros((hidden,), jnp.float32),
            "w1": nrm((hidden, mlp_dim)), "b1": jnp.zeros((mlp_dim,), jnp.float32),
            "w2": nrm((mlp_dim, hidden)), "b2": jnp.zeros((hidden,), jnp.float32),
        }
        params["layers"].append(layer)
    return params


def prepare_params(params, *, heads):
    """One-time weight prep: bf16 weight cast, fold image normalization into the patch-embed,
    and fold the 1/sqrt(dh) attention scale into the Q projection columns."""
    H = params["w_pe"].shape[1]
    dh = H // heads
    scale = 1.0 / math.sqrt(dh)
    qscale = jnp.concatenate([jnp.full((H,), scale, jnp.float32),
                              jnp.ones((2 * H,), jnp.float32)])

    p = dict(params)
    # (x - 0.5)/0.5 = 2x - 1 folded into the patch-embed weights.
    p["w_pe"] = (2.0 * params["w_pe"]).astype(jnp.bfloat16)
    p["b_pe"] = params["b_pe"] - jnp.sum(params["w_pe"], axis=0)
    p["w_pool"] = params["w_pool"].astype(jnp.bfloat16)

    layers = []
    for lyr in params["layers"]:
        l = dict(lyr)
        l["w_qkv"] = (lyr["w_qkv"] * qscale[None, :]).astype(jnp.bfloat16)
        l["b_qkv"] = lyr["b_qkv"] * qscale
        l["wo"] = lyr["wo"].astype(jnp.bfloat16)
        l["w1"] = lyr["w1"].astype(jnp.bfloat16)
        l["w2"] = lyr["w2"].astype(jnp.bfloat16)
        layers.append(l)
    p["layers"] = layers
    return p


# ----------------------------- ViT model (glue) -----------------------------

def encoder_layer(x, p, heads, s_real):
    B, S, H = x.shape
    xf = x.reshape(B * S, H)  # f32 residual stream

    # --- multi-head self-attention (pre-norm); LN1 fused into the combined QKV matmul ---
    qkv = fused_matmul(xf, p["w_qkv"], p["b_qkv"], ln=(p["ln1_g"], p["ln1_b"]),
                       out_dtype=jnp.bfloat16)
    attn = pallas_attention(qkv.reshape(B, S, 3 * H), heads=heads, s_real=s_real)
    # output projection + residual add fused in the epilogue (residual/output stay f32)
    xf = fused_matmul(attn.reshape(B * S, H), p["wo"], p["bo"], residual=xf)

    # --- MLP (pre-norm); LN2 + FC1 + GELU fused (bf16 hidden), FC2 + residual fused ---
    h1 = fused_matmul(xf, p["w1"], p["b1"], ln=(p["ln2_g"], p["ln2_b"]),
                      epilogue="gelu", out_dtype=jnp.bfloat16)
    xf = fused_matmul(h1, p["w2"], p["b2"], residual=xf)

    return xf.reshape(B, S, H)


def vit_forward(params, images, *, patch, heads, seq_pad_to=16):
    B, C, Hh, Ww = images.shape
    nh, nw = Hh // patch, Ww // patch
    num_patches = nh * nw
    H = params["w_pe"].shape[1]

    # Patchify (pure layout glue; matches Conv2d(kernel=stride=patch) with (C, P, P) flatten order).
    patches = images.reshape(B, C, nh, patch, nw, patch)
    patches = patches.transpose(0, 2, 4, 1, 3, 5).reshape(B * num_patches, C * patch * patch)

    # Normalization is already folded into the (pre-cast bf16) patch-embed weights.
    x = fused_matmul(patches, params["w_pe"], params["b_pe"]).reshape(B, num_patches, H)

    # Prepend CLS token, add position embeddings (glue).
    cls = jnp.broadcast_to(params["cls"], (B, 1, H))
    x = jnp.concatenate([cls, x], axis=1) + params["pos"]

    # Pad the sequence to a bf16-friendly multiple of 16; pad key positions are masked in
    # attention and all other ops are row-wise, so pad rows never leak into real tokens.
    s_real = num_patches + 1
    S = ((s_real + seq_pad_to - 1) // seq_pad_to) * seq_pad_to
    if S != s_real:
        x = jnp.pad(x, ((0, 0), (0, S - s_real), (0, 0)))

    # Transformer encoder.
    for layer in params["layers"]:
        x = encoder_layer(x, layer, heads, s_real)

    # Final layernorm (CLS row only) + pooler dense + tanh, fused into one kernel.
    cls_out = x[:, 0, :]
    pooled = fused_matmul(cls_out, params["w_pool"], params["b_pool"],
                          ln=(params["ln_f_g"], params["ln_f_b"]), epilogue="tanh")
    return pooled


# ----------------------------- main -----------------------------

if __name__ == "__main__":
    # Small synthetic config with TPU-friendly (8,128)-aligned dims.
    B, C, IMG, PATCH = 2, 3, 32, 8          # -> 16 patches + CLS = 17 tokens (padded to 32)
    HIDDEN, HEADS, MLP, LAYERS = 128, 4, 256, 2

    key = jax.random.PRNGKey(0)
    k_img, k_par = jax.random.split(key)

    images = jax.random.uniform(k_img, (B, C, IMG, IMG), jnp.float32)  # NCHW pixels in [0, 1]
    params = init_params(
        k_par, channels=C, patch=PATCH, hidden=HIDDEN, heads=HEADS,
        mlp_dim=MLP, num_layers=LAYERS, num_patches=(IMG // PATCH) ** 2,
    )
    # One-time weight prep (bf16 cast, normalization + attention-scale folding) outside the
    # per-step forward, so no per-forward weight casts hit HBM.
    params = prepare_params(params, heads=HEADS)
    params = jax.block_until_ready(params)

    fwd = jax.jit(functools.partial(vit_forward, patch=PATCH, heads=HEADS))
    feat = fwd(params, images)
    feat = jax.block_until_ready(feat)

    assert feat.shape == (B, HIDDEN), feat.shape
    assert feat.dtype == jnp.float32
    assert bool(jnp.all(jnp.isfinite(feat)))
    print("KERNEL_OK")
</pallas_src>

<mosaic_0001>
module attributes {stable_mosaic.version = 11 : i64} {
  func.func @_fused_matmul_kernel(%arg0: i32, %arg1: i32, %arg2: memref<32x192xf32, #tpu.memory_space<vmem>>, %arg3: memref<192x128xbf16, #tpu.memory_space<vmem>>, %arg4: memref<1x128xf32, #tpu.memory_space<vmem>>, %arg5: memref<32x128xf32, #tpu.memory_space<vmem>>, %arg6: memref<32x192xbf16, #tpu.memory_space<vmem>>) attributes {dimension_semantics = [#tpu.dimension_semantics<parallel>, #tpu.dimension_semantics<arbitrary>], iteration_bounds = array<i64: 1, 1>, scalar_prefetch = 0 : i64, scratch_operands = 1 : i64, tpu.core_type = #tpu.core_type<tc>, window_params = [{transform_indices = @transform_0, window_bounds = array<i64: 32, 192>}, {transform_indices = @transform_1, window_bounds = array<i64: 192, 128>}, {transform_indices = @transform_2, window_bounds = array<i64: 1, 128>}, {transform_indices = @transform_3, window_bounds = array<i64: 32, 128>}]} {
    %c0_i32 = arith.constant 0 : i32
    %0 = arith.cmpi eq, %arg1, %c0_i32 : i32
    %1 = arith.extui %0 : i1 to i32
    %c0_i32_0 = arith.constant 0 : i32
    %2 = arith.cmpi ne, %1, %c0_i32_0 : i32
    scf.if %2 {
      %c0_8 = arith.constant 0 : index
      %c0_9 = arith.constant 0 : index
      %10 = vector.load %arg2[%c0_8, %c0_9] : memref<32x192xf32, #tpu.memory_space<vmem>>, vector<32x192xf32>
      %11 = arith.truncf %10 : vector<32x192xf32> to vector<32x192xbf16>
      %c0_10 = arith.constant 0 : index
      %c0_11 = arith.constant 0 : index
      %12 = vector.load %arg6[%c0_10, %c0_11] : memref<32x192xbf16, #tpu.memory_space<vmem>>, vector<32x192xbf16>
      tpu.vector_store %arg6[%c0_10, %c0_11], %11 {strides = array<i32>} : memref<32x192xbf16, #tpu.memory_space<vmem>>, vector<32x192xbf16>,
    } else {
    }
    %c0 = arith.constant 0 : index
    %c0_1 = arith.constant 0 : index
    %3 = vector.load %arg6[%c0, %c0_1] : memref<32x192xbf16, #tpu.memory_space<vmem>>, vector<32x192xbf16>
    %c0_2 = arith.constant 0 : index
    %c0_3 = arith.constant 0 : index
    %4 = vector.load %arg3[%c0_2, %c0_3] : memref<192x128xbf16, #tpu.memory_space<vmem>>, vector<192x128xbf16>
    %cst = arith.constant dense<0.000000e+00> : vector<32x128xf32>
    %5 = tpu.matmul %3, %4, %cst {dimension_numbers = #tpu.dot_dimension_numbers<[1], [0], [0], [1], [0, 0, 1, 1], [], []>} : vector<32x192xbf16>, vector<192x128xbf16>, vector<32x128xf32> -> vector<32x128xf32>
    %c0_4 = arith.constant 0 : index
    %c0_5 = arith.constant 0 : index
    %6 = vector.load %arg4[%c0_4, %c0_5] : memref<1x128xf32, #tpu.memory_space<vmem>>, vector<1x128xf32>
    %7 = vector.broadcast %6 : vector<1x128xf32> to vector<32x128xf32>
    %8 = arith.addf %5, %7 : vector<32x128xf32>
    %c0_6 = arith.constant 0 : index
    %c0_7 = arith.constant 0 : index
    %9 = vector.load %arg5[%c0_6, %c0_7] : memref<32x128xf32, #tpu.memory_space<vmem>>, vector<32x128xf32>
    tpu.vector_store %arg5[%c0_6, %c0_7], %8 {strides = array<i32>} : memref<32x128xf32, #tpu.memory_space<vmem>>, vector<32x128xf32>,
    return
  }
  func.func @transform_0(%arg0: i32, %arg1: i32) -> (i32, i32) {
    %c0_i32 = arith.constant 0 : i32
    %c0_i32_0 = arith.constant 0 : i32
    return %arg0, %c0_i32 : i32, i32
  }
  func.func @transform_1(%arg0: i32, %arg1: i32) -> (i32, i32) {
    %c0_i32 = arith.constant 0 : i32
    %c0_i32_0 = arith.constant 0 : i32
    return %c0_i32, %arg1 : i32, i32
  }
  func.func @transform_2(%arg0: i32, %arg1: i32) -> (i32, i32) {
    %c0_i32 = arith.constant 0 : i32
    %c0_i32_0 = arith.constant 0 : i32
    return %c0_i32, %arg1 : i32, i32
  }
  func.func @transform_3(%arg0: i32, %arg1: i32) -> (i32, i32) {
    %c0_i32 = arith.constant 0 : i32
    return %arg0, %arg1 : i32, i32
  }
}

module attributes {stable_mosaic.version = 11 : i64} {
  func.func @_fused_matmul_kernel(%arg0: i32, %arg1: i32, %arg2: memref<64x128xbf16, #tpu.memory_space<vmem>>, %arg3: memref<128x128xbf16, #tpu.memory_space<vmem>>, %arg4: memref<1x128xf32, #tpu.memory_space<vmem>>, %arg5: memref<64x128xf32, #tpu.memory_space<vmem>>, %arg6: memref<64x128xf32, #tpu.memory_space<vmem>>) attributes {dimension_semantics = [#tpu.dimension_semantics<parallel>, #tpu.dimension_semantics<parallel>], iteration_bounds = array<i64: 1, 1>, scalar_prefetch = 0 : i64, scratch_operands = 0 : i64, tpu.core_type = #tpu.core_type<tc>, window_params = [{transform_indices = @transform_0, window_bounds = array<i64: 64, 128>}, {transform_indices = @transform_1, window_bounds = array<i64: 128, 128>}, {transform_indices = @transform_2, window_bounds = array<i64: 1, 128>}, {transform_indices = @transform_3, window_bounds = array<i64: 64, 128>}, {transform_indices = @transform_4, window_bounds = array<i64: 64, 128>}]} {
    %c0 = arith.constant 0 : index
    %c0_0 = arith.constant 0 : index
    %0 = vector.load %arg2[%c0, %c0_0] : memref<64x128xbf16, #tpu.memory_space<vmem>>, vector<64x128xbf16>
    %c0_1 = arith.constant 0 : index
    %c0_2 = arith.constant 0 : index
    %1 = vector.load %arg3[%c0_1, %c0_2] : memref<128x128xbf16, #tpu.memory_space<vmem>>, vector<128x128xbf16>
    %cst = arith.constant dense<0.000000e+00> : vector<64x128xf32>
    %2 = tpu.matmul %0, %1, %cst {dimension_numbers = #tpu.dot_dimension_numbers<[1], [0], [0], [1], [0, 0, 1, 1], [], []>} : vector<64x128xbf16>, vector<128x128xbf16>, vector<64x128xf32> -> vector<64x128xf32>
    %c0_3 = arith.constant 0 : index
    %c0_4 = arith.constant 0 : index
    %3 = vector.load %arg4[%c0_3, %c0_4] : memref<1x128xf32, #tpu.memory_space<vmem>>, vector<1x128xf32>
    %4 = vector.broadcast %3 : vector<1x128xf32> to vector<64x128xf32>
    %5 = arith.addf %2, %4 : vector<64x128xf32>
    %c0_5 = arith.constant 0 : index
    %c0_6 = arith.constant 0 : index
    %6 = vector.load %arg5[%c0_5, %c0_6] : memref<64x128xf32, #tpu.memory_space<vmem>>, vector<64x128xf32>
    %7 = arith.addf %5, %6 : vector<64x128xf32>
    %c0_7 = arith.constant 0 : index
    %c0_8 = arith.constant 0 : index
    %8 = vector.load %arg6[%c0_7, %c0_8] : memref<64x128xf32, #tpu.memory_space<vmem>>, vector<64x128xf32>
    tpu.vector_store %arg6[%c0_7, %c0_8], %7 {strides = array<i32>} : memref<64x128xf32, #tpu.memory_space<vmem>>, vector<64x128xf32>,
    return
  }
  func.func @transform_0(%arg0: i32, %arg1: i32) -> (i32, i32) {
    %c0_i32 = arith.constant 0 : i32
    %c0_i32_0 = arith.constant 0 : i32
    return %arg0, %c0_i32 : i32, i32
  }
  func.func @transform_1(%arg0: i32, %arg1: i32) -> (i32, i32) {
    %c0_i32 = arith.constant 0 : i32
    %c0_i32_0 = arith.constant 0 : i32
    return %c0_i32, %arg1 : i32, i32
  }
  func.func @transform_2(%arg0: i32, %arg1: i32) -> (i32, i32) {
    %c0_i32 = arith.constant 0 : i32
    %c0_i32_0 = arith.constant 0 : i32
    return %c0_i32, %arg1 : i32, i32
  }
  func.func @transform_3(%arg0: i32, %arg1: i32) -> (i32, i32) {
    %c0_i32 = arith.constant 0 : i32
    return %arg0, %arg1 : i32, i32
  }
  func.func @transform_4(%arg0: i32, %arg1: i32) -> (i32, i32) {
    %c0_i32 = arith.constant 0 : i32
    return %arg0, %arg1 : i32, i32
  }
}

module attributes {stable_mosaic.version = 11 : i64} {
  func.func @_fused_matmul_kernel(%arg0: i32, %arg1: i32, %arg2: memref<64x128xf32, #tpu.memory_space<vmem>>, %arg3: memref<1x128xf32, #tpu.memory_space<vmem>>, %arg4: memref<1x128xf32, #tpu.memory_space<vmem>>, %arg5: memref<128x384xbf16, #tpu.memory_space<vmem>>, %arg6: memref<1x384xf32, #tpu.memory_space<vmem>>, %arg7: memref<64x384xbf16, #tpu.memory_space<vmem>>, %arg8: memref<64x128xbf16, #tpu.memory_space<vmem>>) attributes {dimension_semantics = [#tpu.dimension_semantics<parallel>, #tpu.dimension_semantics<arbitrary>], iteration_bounds = array<i64: 1, 1>, scalar_prefetch = 0 : i64, scratch_operands = 1 : i64, tpu.core_type = #tpu.core_type<tc>, window_params = [{transform_indices = @transform_0, window_bounds = array<i64: 64, 128>}, {pipeline_mode = #tpu.pipeline_mode<synchronous>, transform_indices = @transform_1, window_bounds = array<i64: 1, 128>}, {pipeline_mode = #tpu.pipeline_mode<synchronous>, transform_indices = @transform_2, window_bounds = array<i64: 1, 128>}, {transform_indices = @transform_3, window_bounds = array<i64: 128, 384>}, {transform_indices = @transform_4, window_bounds = array<i64: 1, 384>}, {transform_indices = @transform_5, window_bounds = array<i64: 64, 384>}]} {
    %c0_i32 = arith.constant 0 : i32
    %0 = arith.cmpi eq, %arg1, %c0_i32 : i32
    %1 = arith.extui %0 : i1 to i32
    %c0_i32_0 = arith.constant 0 : i32
    %2 = arith.cmpi ne, %1, %c0_i32_0 : i32
    scf.if %2 {
      %c0_8 = arith.constant 0 : index
      %c0_9 = arith.constant 0 : index
      %11 = vector.load %arg2[%c0_8, %c0_9] : memref<64x128xf32, #tpu.memory_space<vmem>>, vector<64x128xf32>
      %cst_10 = arith.constant dense<0.000000e+00> : vector<64xf32>
      %12 = vector.multi_reduction <add>, %11, %cst_10 [1] : vector<64x128xf32> to vector<64xf32>
      %13 = vector.shape_cast %12 : vector<64xf32> to vector<64x1xf32>
      %cst_11 = arith.constant 1.280000e+02 : f32
      %14 = vector.broadcast %cst_11 : f32 to vector<64x1xf32>
      %15 = arith.divf %13, %14 : vector<64x1xf32>
      %16 = vector.broadcast %15 : vector<64x1xf32> to vector<64x128xf32>
      %17 = arith.subf %11, %16 : vector<64x128xf32>
      %18 = arith.mulf %17, %17 : vector<64x128xf32>
      %cst_12 = arith.constant dense<0.000000e+00> : vector<64xf32>
      %19 = vector.multi_reduction <add>, %18, %cst_12 [1] : vector<64x128xf32> to vector<64xf32>
      %20 = vector.shape_cast %19 : vector<64xf32> to vector<64x1xf32>
      %cst_13 = arith.constant 1.280000e+02 : f32
      %21 = vector.broadcast %cst_13 : f32 to vector<64x1xf32>
      %22 = arith.divf %20, %21 : vector<64x1xf32>
      %23 = vector.broadcast %15 : vector<64x1xf32> to vector<64x128xf32>
      %24 = arith.subf %11, %23 : vector<64x128xf32>
      %cst_14 = arith.constant 9.99999996E-13 : f32
      %25 = vector.broadcast %cst_14 : f32 to vector<64x1xf32>
      %26 = arith.addf %22, %25 : vector<64x1xf32>
      %27 = math.rsqrt %26 : vector<64x1xf32>
      %28 = vector.broadcast %27 : vector<64x1xf32> to vector<64x128xf32>
      %29 = arith.mulf %24, %28 : vector<64x128xf32>
      %c0_15 = arith.constant 0 : index
      %c0_16 = arith.constant 0 : index
      %30 = vector.load %arg3[%c0_15, %c0_16] : memref<1x128xf32, #tpu.memory_space<vmem>>, vector<1x128xf32>
      %31 = vector.broadcast %30 : vector<1x128xf32> to vector<64x128xf32>
      %32 = arith.mulf %29, %31 : vector<64x128xf32>
      %c0_17 = arith.constant 0 : index
      %c0_18 = arith.constant 0 : index
      %33 = vector.load %arg4[%c0_17, %c0_18] : memref<1x128xf32, #tpu.memory_space<vmem>>, vector<1x128xf32>
      %34 = vector.broadcast %33 : vector<1x128xf32> to vector<64x128xf32>
      %35 = arith.addf %32, %34 : vector<64x128xf32>
      %36 = arith.truncf %35 : vector<64x128xf32> to vector<64x128xbf16>
      %c0_19 = arith.constant 0 : index
      %c0_20 = arith.constant 0 : index
      %37 = vector.load %arg8[%c0_19, %c0_20] : memref<64x128xbf16, #tpu.memory_space<vmem>>, vector<64x128xbf16>
      tpu.vector_store %arg8[%c0_19, %c0_20], %36 {strides = array<i32>} : memref<64x128xbf16, #tpu.memory_space<vmem>>, vector<64x128xbf16>,
    } else {
    }
    %c0 = arith.constant 0 : index
    %c0_1 = arith.constant 0 : index
    %3 = vector.load %arg8[%c0, %c0_1] : memref<64x128xbf16, #tpu.memory_space<vmem>>, vector<64x128xbf16>
    %c0_2 = arith.constant 0 : index
    %c0_3 = arith.constant 0 : index
    %4 = vector.load %arg5[%c0_2, %c0_3] : memref<128x384xbf16, #tpu.memory_space<vmem>>, vector<128x384xbf16>
    %cst = arith.constant dense<0.000000e+00> : vector<64x384xf32>
    %5 = tpu.matmul %3, %4, %cst {dimension_numbers = #tpu.dot_dimension_numbers<[1], [0], [0], [1], [0, 0, 1, 1], [], []>} : vector<64x128xbf16>, vector<128x384xbf16>, vector<64x384xf32> -> vector<64x384xf32>
    %c0_4 = arith.constant 0 : index
    %c0_5 = arith.constant 0 : index
    %6 = vector.load %arg6[%c0_4, %c0_5] : memref<1x384xf32, #tpu.memory_space<vmem>>, vector<1x384xf32>
    %7 = vector.broadcast %6 : vector<1x384xf32> to vector<64x384xf32>
    %8 = arith.addf %5, %7 : vector<64x384xf32>
    %9 = arith.truncf %8 : vector<64x384xf32> to vector<64x384xbf16>
    %c0_6 = arith.constant 0 : index
    %c0_7 = arith.constant 0 : index
    %10 = vector.load %arg7[%c0_6, %c0_7] : memref<64x384xbf16, #tpu.memory_space<vmem>>, vector<64x384xbf16>
    tpu.vector_store %arg7[%c0_6, %c0_7], %9 {strides = array<i32>} : memref<64x384xbf16, #tpu.memory_space<vmem>>, vector<64x384xbf16>,
    return
  }
  func.func @transform_0(%arg0: i32, %arg1: i32) -> (i32, i32) {
    %c0_i32 = arith.constant 0 : i32
    %c0_i32_0 = arith.constant 0 : i32
    return %arg0, %c0_i32 : i32, i32
  }
  func.func @transform_1(%arg0: i32, %arg1: i32) -> (i32, i32) {
    %c0_i32 = arith.constant 0 : i32
    %c0_i32_0 = arith.constant 0 : i32
    %c0_i32_1 = arith.constant 0 : i32
    return %c0_i32, %c0_i32_0 : i32, i32
  }
  func.func @transform_2(%arg0: i32, %arg1: i32) -> (i32, i32) {
    %c0_i32 = arith.constant 0 : i32
    %c0_i32_0 = arith.constant 0 : i32
    %c0_i32_1 = arith.constant 0 : i32
    return %c0_i32, %c0_i32_0 : i32, i32
  }
  func.func @transform_3(%arg0: i32, %arg1: i32) -> (i32, i32) {
    %c0_i32 = arith.constant 0 : i32
    %c0_i32_0 = arith.constant 0 : i32
    return %c0_i32, %arg1 : i32, i32
  }
  func.func @transform_4(%arg0: i32, %arg1: i32) -> (i32, i32) {
    %c0_i32 = arith.constant 0 : i32
    %c0_i32_0 = arith.constant 0 : i32
    return %c0_i32, %arg1 : i32, i32
  }
  func.func @transform_5(%arg0: i32, %arg1: i32) -> (i32, i32) {
    %c0_i32 = arith.constant 0 : i32
    return %arg0, %arg1 : i32, i32
  }
}

module attributes {stable_mosaic.version = 11 : i64} {
  func.func @_attention_kernel(%arg0: i32, %arg1: i32, %arg2: memref<1x32x128xbf16, #tpu.memory_space<vmem>>, %arg3: memref<1x32x128xbf16, #tpu.memory_space<vmem>>, %arg4: memref<1x32x128xbf16, #tpu.memory_space<vmem>>, %arg5: memref<1x32x128xbf16, #tpu.memory_space<vmem>>) attributes {dimension_semantics = [#tpu.dimension_semantics<parallel>, #tpu.dimension_semantics<parallel>], iteration_bounds = array<i64: 2, 1>, scalar_prefetch = 0 : i64, scratch_operands = 0 : i64, tpu.core_type = #tpu.core_type<tc>, window_params = [{transform_indices = @transform_0, window_bounds = array<i64: 1, 32, 128>}, {transform_indices = @transform_1, window_bounds = array<i64: 1, 32, 128>}, {transform_indices = @transform_2, window_bounds = array<i64: 1, 32, 128>}, {transform_indices = @transform_3, window_bounds = array<i64: 1, 32, 128>}]} {
    %c0 = arith.constant 0 : index
    %c0_0 = arith.constant 0 : index
    %c0_1 = arith.constant 0 : index
    %0 = vector.load %arg2[%c0, %c0_0, %c0_1] : memref<1x32x128xbf16, #tpu.memory_space<vmem>>, vector<1x32x128xbf16>
    %1 = vector.shape_cast %0 : vector<1x32x128xbf16> to vector<32x128xbf16>
    %c0_2 = arith.constant 0 : index
    %c0_3 = arith.constant 0 : index
    %c0_4 = arith.constant 0 : index
    %2 = vector.load %arg3[%c0_2, %c0_3, %c0_4] : memref<1x32x128xbf16, #tpu.memory_space<vmem>>, vector<1x32x128xbf16>
    %3 = vector.shape_cast %2 : vector<1x32x128xbf16> to vector<32x128xbf16>
    %c0_5 = arith.constant 0 : index
    %c0_6 = arith.constant 0 : index
    %c0_7 = arith.constant 0 : index
    %4 = vector.load %arg4[%c0_5, %c0_6, %c0_7] : memref<1x32x128xbf16, #tpu.memory_space<vmem>>, vector<1x32x128xbf16>
    %5 = vector.shape_cast %4 : vector<1x32x128xbf16> to vector<32x128xbf16>
    %6 = tpu.iota {dimensions = array<i32: 1>} : vector<1x32xi32>
    %c17_i32 = arith.constant 17 : i32
    %7 = vector.broadcast %c17_i32 : i32 to vector<1x32xi32>
    %8 = arith.cmpi slt, %6, %7 : vector<1x32xi32>
    %9 = vector.extract_strided_slice %1 {offsets = [0, 0], sizes = [32, 32], strides = [1, 1]} : vector<32x128xbf16> to vector<32x32xbf16>
    %10 = vector.extract_strided_slice %3 {offsets = [0, 0], sizes = [32, 32], strides = [1, 1]} : vector<32x128xbf16> to vector<32x32xbf16>
    %11 = vector.extract_strided_slice %5 {offsets = [0, 0], sizes = [32, 32], strides = [1, 1]} : vector<32x128xbf16> to vector<32x32xbf16>
    %cst = arith.constant dense<0.000000e+00> : vector<32x32xf32>
    %12 = tpu.matmul %9, %10, %cst {dimension_numbers = #tpu.dot_dimension_numbers<[1], [1], [0], [0], [0, 0, 1, 0], [], []>} : vector<32x32xbf16>, vector<32x32xbf16>, vector<32x32xf32> -> vector<32x32xf32>
    %cst_8 = arith.constant -1.000000e+30 : f32
    %13 = vector.shape_cast %8 : vector<1x32xi1> to vector<1x32xi1>
    %14 = vector.broadcast %13 : vector<1x32xi1> to vector<32x32xi1>
    %15 = vector.broadcast %cst_8 : f32 to vector<32x32xf32>
    %16 = arith.select %14, %12, %15 : vector<32x32xi1>, vector<32x32xf32>
    %cst_9 = arith.constant dense<0xFF800000> : vector<32xf32>
    %17 = vector.multi_reduction <maximumf>, %16, %cst_9 [1] : vector<32x32xf32> to vector<32xf32>
    %18 = vector.shape_cast %17 : vector<32xf32> to vector<32x1xf32>
    %19 = vector.broadcast %18 : vector<32x1xf32> to vector<32x32xf32>
    %20 = arith.subf %16, %19 : vector<32x32xf32>
    %21 = math.exp %20 : vector<32x32xf32>
    %cst_10 = arith.constant dense<0.000000e+00> : vector<32xf32>
    %22 = vector.multi_reduction <add>, %21, %cst_10 [1] : vector<32x32xf32> to vector<32xf32>
    %23 = vector.shape_cast %22 : vector<32xf32> to vector<32x1xf32>
    %24 = tpu.reciprocal %23 {approx = true} : vector<32x1xf32> -> vector<32x1xf32>
    %25 = vector.broadcast %24 : vector<32x1xf32> to vector<32x32xf32>
    %26 = arith.mulf %21, %25 : vector<32x32xf32>
    %27 = arith.truncf %26 : vector<32x32xf32> to vector<32x32xbf16>
    %cst_11 = arith.constant dense<0.000000e+00> : vector<32x32xf32>
    %28 = tpu.matmul %27, %11, %cst_11 {dimension_numbers = #tpu.dot_dimension_numbers<[1], [0], [0], [1], [0, 0, 1, 1], [], []>} : vector<32x32xbf16>, vector<32x32xbf16>, vector<32x32xf32> -> vector<32x32xf32>
    %29 = vector.extract_strided_slice %1 {offsets = [0, 32], sizes = [32, 32], strides = [1, 1]} : vector<32x128xbf16> to vector<32x32xbf16>
    %30 = vector.extract_strided_slice %3 {offsets = [0, 32], sizes = [32, 32], strides = [1, 1]} : vector<32x128xbf16> to vector<32x32xbf16>
    %31 = vector.extract_strided_slice %5 {offsets = [0, 32], sizes = [32, 32], strides = [1, 1]} : vector<32x128xbf16> to vector<32x32xbf16>
    %cst_12 = arith.constant dense<0.000000e+00> : vector<32x32xf32>
    %32 = tpu.matmul %29, %30, %cst_12 {dimension_numbers = #tpu.dot_dimension_numbers<[1], [1], [0], [0], [0, 0, 1, 0], [], []>} : vector<32x32xbf16>, vector<32x32xbf16>, vector<32x32xf32> -> vector<32x32xf32>
    %cst_13 = arith.constant -1.000000e+30 : f32
    %33 = vector.shape_cast %8 : vector<1x32xi1> to vector<1x32xi1>
    %34 = vector.broadcast %33 : vector<1x32xi1> to vector<32x32xi1>
    %35 = vector.broadcast %cst_13 : f32 to vector<32x32xf32>
    %36 = arith.select %34, %32, %35 : vector<32x32xi1>, vector<32x32xf32>
    %cst_14 = arith.constant dense<0xFF800000> : vector<32xf32>
    %37 = vector.multi_reduction <maximumf>, %36, %cst_14 [1] : vector<32x32xf32> to vector<32xf32>
    %38 = vector.shape_cast %37 : vector<32xf32> to vector<32x1xf32>
    %39 = vector.broadcast %38 : vector<32x1xf32> to vector<32x32xf32>
    %40 = arith.subf %36, %39 : vector<32x32xf32>
    %41 = math.exp %40 : vector<32x32xf32>
    %cst_15 = arith.constant dense<0.000000e+00> : vector<32xf32>
    %42 = vector.multi_reduction <add>, %41, %cst_15 [1] : vector<32x32xf32> to vector<32xf32>
    %43 = vector.shape_cast %42 : vector<32xf32> to vector<32x1xf32>
    %44 = tpu.reciprocal %43 {approx = true} : vector<32x1xf32> -> vector<32x1xf32>
    %45 = vector.broadcast %44 : vector<32x1xf32> to vector<32x32xf32>
    %46 = arith.mulf %41, %45 : vector<32x32xf32>
    %47 = arith.truncf %46 : vector<32x32xf32> to vector<32x32xbf16>
    %cst_16 = arith.constant dense<0.000000e+00> : vector<32x32xf32>
    %48 = tpu.matmul %47, %31, %cst_16 {dimension_numbers = #tpu.dot_dimension_numbers<[1], [0], [0], [1], [0, 0, 1, 1], [], []>} : vector<32x32xbf16>, vector<32x32xbf16>, vector<32x32xf32> -> vector<32x32xf32>
    %49 = vector.extract_strided_slice %1 {offsets = [0, 64], sizes = [32, 32], strides = [1, 1]} : vector<32x128xbf16> to vector<32x32xbf16>
    %50 = vector.extract_strided_slice %3 {offsets = [0, 64], sizes = [32, 32], strides = [1, 1]} : vector<32x128xbf16> to vector<32x32xbf16>
    %51 = vector.extract_strided_slice %5 {offsets = [0, 64], sizes = [32, 32], strides = [1, 1]} : vector<32x128xbf16> to vector<32x32xbf16>
    %cst_17 = arith.constant dense<0.000000e+00> : vector<32x32xf32>
    %52 = tpu.matmul %49, %50, %cst_17 {dimension_numbers = #tpu.dot_dimension_numbers<[1], [1], [0], [0], [0, 0, 1, 0], [], []>} : vector<32x32xbf16>, vector<32x32xbf16>, vector<32x32xf32> -> vector<32x32xf32>
    %cst_18 = arith.constant -1.000000e+30 : f32
    %53 = vector.shape_cast %8 : vector<1x32xi1> to vector<1x32xi1>
    %54 = vector.broadcast %53 : vector<1x32xi1> to vector<32x32xi1>
    %55 = vector.broadcast %cst_18 : f32 to vector<32x32xf32>
    %56 = arith.select %54, %52, %55 : vector<32x32xi1>, vector<32x32xf32>
    %cst_19 = arith.constant dense<0xFF800000> : vector<32xf32>
    %57 = vector.multi_reduction <maximumf>, %56, %cst_19 [1] : vector<32x32xf32> to vector<32xf32>
    %58 = vector.shape_cast %57 : vector<32xf32> to vector<32x1xf32>
    %59 = vector.broadcast %58 : vector<32x1xf32> to vector<32x32xf32>
    %60 = arith.subf %56, %59 : vector<32x32xf32>
    %61 = math.exp %60 : vector<32x32xf32>
    %cst_20 = arith.constant dense<0.000000e+00> : vector<32xf32>
    %62 = vector.multi_reduction <add>, %61, %cst_20 [1] : vector<32x32xf32> to vector<32xf32>
    %63 = vector.shape_cast %62 : vector<32xf32> to vector<32x1xf32>
    %64 = tpu.reciprocal %63 {approx = true} : vector<32x1xf32> -> vector<32x1xf32>
    %65 = vector.broadcast %64 : vector<32x1xf32> to vector<32x32xf32>
    %66 = arith.mulf %61, %65 : vector<32x32xf32>
    %67 = arith.truncf %66 : vector<32x32xf32> to vector<32x32xbf16>
    %cst_21 = arith.constant dense<0.000000e+00> : vector<32x32xf32>
    %68 = tpu.matmul %67, %51, %cst_21 {dimension_numbers = #tpu.dot_dimension_numbers<[1], [0], [0], [1], [0, 0, 1, 1], [], []>} : vector<32x32xbf16>, vector<32x32xbf16>, vector<32x32xf32> -> vector<32x32xf32>
    %69 = vector.extract_strided_slice %1 {offsets = [0, 96], sizes = [32, 32], strides = [1, 1]} : vector<32x128xbf16> to vector<32x32xbf16>
    %70 = vector.extract_strided_slice %3 {offsets = [0, 96], sizes = [32, 32], strides = [1, 1]} : vector<32x128xbf16> to vector<32x32xbf16>
    %71 = vector.extract_strided_slice %5 {offsets = [0, 96], sizes = [32, 32], strides = [1, 1]} : vector<32x128xbf16> to vector<32x32xbf16>
    %cst_22 = arith.constant dense<0.000000e+00> : vector<32x32xf32>
    %72 = tpu.matmul %69, %70, %cst_22 {dimension_numbers = #tpu.dot_dimension_numbers<[1], [1], [0], [0], [0, 0, 1, 0], [], []>} : vector<32x32xbf16>, vector<32x32xbf16>, vector<32x32xf32> -> vector<32x32xf32>
    %cst_23 = arith.constant -1.000000e+30 : f32
    %73 = vector.shape_cast %8 : vector<1x32xi1> to vector<1x32xi1>
    %74 = vector.broadcast %73 : vector<1x32xi1> to vector<32x32xi1>
    %75 = vector.broadcast %cst_23 : f32 to vector<32x32xf32>
    %76 = arith.select %74, %72, %75 : vector<32x32xi1>, vector<32x32xf32>
    %cst_24 = arith.constant dense<0xFF800000> : vector<32xf32>
    %77 = vector.multi_reduction <maximumf>, %76, %cst_24 [1] : vector<32x32xf32> to vector<32xf32>
    %78 = vector.shape_cast %77 : vector<32xf32> to vector<32x1xf32>
    %79 = vector.broadcast %78 : vector<32x1xf32> to vector<32x32xf32>
    %80 = arith.subf %76, %79 : vector<32x32xf32>
    %81 = math.exp %80 : vector<32x32xf32>
    %cst_25 = arith.constant dense<0.000000e+00> : vector<32xf32>
    %82 = vector.multi_reduction <add>, %81, %cst_25 [1] : vector<32x32xf32> to vector<32xf32>
    %83 = vector.shape_cast %82 : vector<32xf32> to vector<32x1xf32>
    %84 = tpu.reciprocal %83 {approx = true} : vector<32x1xf32> -> vector<32x1xf32>
    %85 = vector.broadcast %84 : vector<32x1xf32> to vector<32x32xf32>
    %86 = arith.mulf %81, %85 : vector<32x32xf32>
    %87 = arith.truncf %86 : vector<32x32xf32> to vector<32x32xbf16>
    %cst_26 = arith.constant dense<0.000000e+00> : vector<32x32xf32>
    %88 = tpu.matmul %87, %71, %cst_26 {dimension_numbers = #tpu.dot_dimension_numbers<[1], [0], [0], [1], [0, 0, 1, 1], [], []>} : vector<32x32xbf16>, vector<32x32xbf16>, vector<32x32xf32> -> vector<32x32xf32>
    %89 = tpu.concatenate %28, %48, %68, %88 in 1 : vector<32x32xf32>, vector<32x32xf32>, vector<32x32xf32>, vector<32x32xf32> -> vector<32x128xf32>
    %90 = arith.truncf %89 : vector<32x128xf32> to vector<32x128xbf16>
    %c0_27 = arith.constant 0 : index
    %c0_28 = arith.constant 0 : index
    %c0_29 = arith.constant 0 : index
    %91 = vector.load %arg5[%c0_27, %c0_28, %c0_29] : memref<1x32x128xbf16, #tpu.memory_space<vmem>>, vector<1x32x128xbf16>
    %92 = vector.shape_cast %91 : vector<1x32x128xbf16> to vector<32x128xbf16>
    %93 = vector.shape_cast %90 : vector<32x128xbf16> to vector<1x32x128xbf16>
    tpu.vector_store %arg5[%c0_27, %c0_28, %c0_29], %93 {strides = array<i32>} : memref<1x32x128xbf16, #tpu.memory_space<vmem>>, vector<1x32x128xbf16>,
    return
  }
  func.func @transform_0(%arg0: i32, %arg1: i32) -> (i32, i32, i32) {
    %c0_i32 = arith.constant 0 : i32
    %c0_i32_0 = arith.constant 0 : i32
    return %arg0, %c0_i32, %arg1 : i32, i32, i32
  }
  func.func @transform_1(%arg0: i32, %arg1: i32) -> (i32, i32, i32) {
    %c1_i32 = arith.constant 1 : i32
    %0 = arith.addi %c1_i32, %arg1 : i32
    %c0_i32 = arith.constant 0 : i32
    %c0_i32_0 = arith.constant 0 : i32
    return %arg0, %c0_i32, %0 : i32, i32, i32
  }
  func.func @transform_2(%arg0: i32, %arg1: i32) -> (i32, i32, i32) {
    %c2_i32 = arith.constant 2 : i32
    %0 = arith.addi %c2_i32, %arg1 : i32
    %c0_i32 = arith.constant 0 : i32
    %c0_i32_0 = arith.constant 0 : i32
    return %arg0, %c0_i32, %0 : i32, i32, i32
  }
  func.func @transform_3(%arg0: i32, %arg1: i32) -> (i32, i32, i32) {
    %c0_i32 = arith.constant 0 : i32
    %c0_i32_0 = arith.constant 0 : i32
    return %arg0, %c0_i32, %arg1 : i32, i32, i32
  }
}

module attributes {stable_mosaic.version = 11 : i64} {
  func.func @_fused_matmul_kernel(%arg0: i32, %arg1: i32, %arg2: memref<64x128xf32, #tpu.memory_space<vmem>>, %arg3: memref<1x128xf32, #tpu.memory_space<vmem>>, %arg4: memref<1x128xf32, #tpu.memory_space<vmem>>, %arg5: memref<128x256xbf16, #tpu.memory_space<vmem>>, %arg6: memref<1x256xf32, #tpu.memory_space<vmem>>, %arg7: memref<64x256xbf16, #tpu.memory_space<vmem>>, %arg8: memref<64x128xbf16, #tpu.memory_space<vmem>>) attributes {dimension_semantics = [#tpu.dimension_semantics<parallel>, #tpu.dimension_semantics<arbitrary>], iteration_bounds = array<i64: 1, 1>, scalar_prefetch = 0 : i64, scratch_operands = 1 : i64, tpu.core_type = #tpu.core_type<tc>, window_params = [{transform_indices = @transform_0, window_bounds = array<i64: 64, 128>}, {pipeline_mode = #tpu.pipeline_mode<synchronous>, transform_indices = @transform_1, window_bounds = array<i64: 1, 128>}, {pipeline_mode = #tpu.pipeline_mode<synchronous>, transform_indices = @transform_2, window_bounds = array<i64: 1, 128>}, {transform_indices = @transform_3, window_bounds = array<i64: 128, 256>}, {transform_indices = @transform_4, window_bounds = array<i64: 1, 256>}, {transform_indices = @transform_5, window_bounds = array<i64: 64, 256>}]} {
    %c0_i32 = arith.constant 0 : i32
    %0 = arith.cmpi eq, %arg1, %c0_i32 : i32
    %1 = arith.extui %0 : i1 to i32
    %c0_i32_0 = arith.constant 0 : i32
    %2 = arith.cmpi ne, %1, %c0_i32_0 : i32
    scf.if %2 {
      %c0_12 = arith.constant 0 : index
      %c0_13 = arith.constant 0 : index
      %24 = vector.load %arg2[%c0_12, %c0_13] : memref<64x128xf32, #tpu.memory_space<vmem>>, vector<64x128xf32>
      %cst_14 = arith.constant dense<0.000000e+00> : vector<64xf32>
      %25 = vector.multi_reduction <add>, %24, %cst_14 [1] : vector<64x128xf32> to vector<64xf32>
      %26 = vector.shape_cast %25 : vector<64xf32> to vector<64x1xf32>
      %cst_15 = arith.constant 1.280000e+02 : f32
      %27 = vector.broadcast %cst_15 : f32 to vector<64x1xf32>
      %28 = arith.divf %26, %27 : vector<64x1xf32>
      %29 = vector.broadcast %28 : vector<64x1xf32> to vector<64x128xf32>
      %30 = arith.subf %24, %29 : vector<64x128xf32>
      %31 = arith.mulf %30, %30 : vector<64x128xf32>
      %cst_16 = arith.constant dense<0.000000e+00> : vector<64xf32>
      %32 = vector.multi_reduction <add>, %31, %cst_16 [1] : vector<64x128xf32> to vector<64xf32>
      %33 = vector.shape_cast %32 : vector<64xf32> to vector<64x1xf32>
      %cst_17 = arith.constant 1.280000e+02 : f32
      %34 = vector.broadcast %cst_17 : f32 to vector<64x1xf32>
      %35 = arith.divf %33, %34 : vector<64x1xf32>
      %36 = vector.broadcast %28 : vector<64x1xf32> to vector<64x128xf32>
      %37 = arith.subf %24, %36 : vector<64x128xf32>
      %cst_18 = arith.constant 9.99999996E-13 : f32
      %38 = vector.broadcast %cst_18 : f32 to vector<64x1xf32>
      %39 = arith.addf %35, %38 : vector<64x1xf32>
      %40 = math.rsqrt %39 : vector<64x1xf32>
      %41 = vector.broadcast %40 : vector<64x1xf32> to vector<64x128xf32>
      %42 = arith.mulf %37, %41 : vector<64x128xf32>
      %c0_19 = arith.constant 0 : index
      %c0_20 = arith.constant 0 : index
      %43 = vector.load %arg3[%c0_19, %c0_20] : memref<1x128xf32, #tpu.memory_space<vmem>>, vector<1x128xf32>
      %44 = vector.broadcast %43 : vector<1x128xf32> to vector<64x128xf32>
      %45 = arith.mulf %42, %44 : vector<64x128xf32>
      %c0_21 = arith.constant 0 : index
      %c0_22 = arith.constant 0 : index
      %46 = vector.load %arg4[%c0_21, %c0_22] : memref<1x128xf32, #tpu.memory_space<vmem>>, vector<1x128xf32>
      %47 = vector.broadcast %46 : vector<1x128xf32> to vector<64x128xf32>
      %48 = arith.addf %45, %47 : vector<64x128xf32>
      %49 = arith.truncf %48 : vector<64x128xf32> to vector<64x128xbf16>
      %c0_23 = arith.constant 0 : index
      %c0_24 = arith.constant 0 : index
      %50 = vector.load %arg8[%c0_23, %c0_24] : memref<64x128xbf16, #tpu.memory_space<vmem>>, vector<64x128xbf16>
      tpu.vector_store %arg8[%c0_23, %c0_24], %49 {strides = array<i32>} : memref<64x128xbf16, #tpu.memory_space<vmem>>, vector<64x128xbf16>,
    } else {
    }
    %c0 = arith.constant 0 : index
    %c0_1 = arith.constant 0 : index
    %3 = vector.load %arg8[%c0, %c0_1] : memref<64x128xbf16, #tpu.memory_space<vmem>>, vector<64x128xbf16>
    %c0_2 = arith.constant 0 : index
    %c0_3 = arith.constant 0 : index
    %4 = vector.load %arg5[%c0_2, %c0_3] : memref<128x256xbf16, #tpu.memory_space<vmem>>, vector<128x256xbf16>
    %cst = arith.constant dense<0.000000e+00> : vector<64x256xf32>
    %5 = tpu.matmul %3, %4, %cst {dimension_numbers = #tpu.dot_dimension_numbers<[1], [0], [0], [1], [0, 0, 1, 1], [], []>} : vector<64x128xbf16>, vector<128x256xbf16>, vector<64x256xf32> -> vector<64x256xf32>
    %c0_4 = arith.constant 0 : index
    %c0_5 = arith.constant 0 : index
    %6 = vector.load %arg6[%c0_4, %c0_5] : memref<1x256xf32, #tpu.memory_space<vmem>>, vector<1x256xf32>
    %7 = vector.broadcast %6 : vector<1x256xf32> to vector<64x256xf32>
    %8 = arith.addf %5, %7 : vector<64x256xf32>
    %cst_6 = arith.constant 5.000000e-01 : f32
    %9 = vector.broadcast %cst_6 : f32 to vector<64x256xf32>
    %10 = arith.mulf %9, %8 : vector<64x256xf32>
    %cst_7 = arith.constant 4.471500e-02 : f32
    %11 = vector.broadcast %cst_7 : f32 to vector<64x256xf32>
    %12 = arith.mulf %11, %8 : vector<64x256xf32>
    %13 = arith.mulf %12, %8 : vector<64x256xf32>
    %14 = arith.mulf %13, %8 : vector<64x256xf32>
    %15 = arith.addf %8, %14 : vector<64x256xf32>
    %cst_8 = arith.constant 0.797884583 : f32
    %16 = vector.broadcast %cst_8 : f32 to vector<64x256xf32>
    %17 = arith.mulf %16, %15 : vector<64x256xf32>
    %18 = math.tanh %17 : vector<64x256xf32>
    %cst_9 = arith.constant 1.000000e+00 : f32
    %19 = vector.broadcast %cst_9 : f32 to vector<64x256xf32>
    %20 = arith.addf %19, %18 : vector<64x256xf32>
    %21 = arith.mulf %10, %20 : vector<64x256xf32>
    %22 = arith.truncf %21 : vector<64x256xf32> to vector<64x256xbf16>
    %c0_10 = arith.constant 0 : index
    %c0_11 = arith.constant 0 : index
    %23 = vector.load %arg7[%c0_10, %c0_11] : memref<64x256xbf16, #tpu.memory_space<vmem>>, vector<64x256xbf16>
    tpu.vector_store %arg7[%c0_10, %c0_11], %22 {strides = array<i32>} : memref<64x256xbf16, #tpu.memory_space<vmem>>, vector<64x256xbf16>,
    return
  }
  func.func @transform_0(%arg0: i32, %arg1: i32) -> (i32, i32) {
    %c0_i32 = arith.constant 0 : i32
    %c0_i32_0 = arith.constant 0 : i32
    return %arg0, %c0_i32 : i32, i32
  }
  func.func @transform_1(%arg0: i32, %arg1: i32) -> (i32, i32) {
    %c0_i32 = arith.constant 0 : i32
    %c0_i32_0 = arith.constant 0 : i32
    %c0_i32_1 = arith.constant 0 : i32
    return %c0_i32, %c0_i32_0 : i32, i32
  }
  func.func @transform_2(%arg0: i32, %arg1: i32) -> (i32, i32) {
    %c0_i32 = arith.constant 0 : i32
    %c0_i32_0 = arith.constant 0 : i32
    %c0_i32_1 = arith.constant 0 : i32
    return %c0_i32, %c0_i32_0 : i32, i32
  }
  func.func @transform_3(%arg0: i32, %arg1: i32) -> (i32, i32) {
    %c0_i32 = arith.constant 0 : i32
    %c0_i32_0 = arith.constant 0 : i32
    return %c0_i32, %arg1 : i32, i32
  }
  func.func @transform_4(%arg0: i32, %arg1: i32) -> (i32, i32) {
    %c0_i32 = arith.constant 0 : i32
    %c0_i32_0 = arith.constant 0 : i32
    return %c0_i32, %arg1 : i32, i32
  }
  func.func @transform_5(%arg0: i32, %arg1: i32) -> (i32, i32) {
    %c0_i32 = arith.constant 0 : i32
    return %arg0, %arg1 : i32, i32
  }
}

module attributes {stable_mosaic.version = 11 : i64} {
  func.func @_fused_matmul_kernel(%arg0: i32, %arg1: i32, %arg2: memref<64x256xbf16, #tpu.memory_space<vmem>>, %arg3: memref<256x128xbf16, #tpu.memory_space<vmem>>, %arg4: memref<1x128xf32, #tpu.memory_space<vmem>>, %arg5: memref<64x128xf32, #tpu.memory_space<vmem>>, %arg6: memref<64x128xf32, #tpu.memory_space<vmem>>) attributes {dimension_semantics = [#tpu.dimension_semantics<parallel>, #tpu.dimension_semantics<parallel>], iteration_bounds = array<i64: 1, 1>, scalar_prefetch = 0 : i64, scratch_operands = 0 : i64, tpu.core_type = #tpu.core_type<tc>, window_params = [{transform_indices = @transform_0, window_bounds = array<i64: 64, 256>}, {transform_indices = @transform_1, window_bounds = array<i64: 256, 128>}, {transform_indices = @transform_2, window_bounds = array<i64: 1, 128>}, {transform_indices = @transform_3, window_bounds = array<i64: 64, 128>}, {transform_indices = @transform_4, window_bounds = array<i64: 64, 128>}]} {
    %c0 = arith.constant 0 : index
    %c0_0 = arith.constant 0 : index
    %0 = vector.load %arg2[%c0, %c0_0] : memref<64x256xbf16, #tpu.memory_space<vmem>>, vector<64x256xbf16>
    %c0_1 = arith.constant 0 : index
    %c0_2 = arith.constant 0 : index
    %1 = vector.load %arg3[%c0_1, %c0_2] : memref<256x128xbf16, #tpu.memory_space<vmem>>, vector<256x128xbf16>
    %cst = arith.constant dense<0.000000e+00> : vector<64x128xf32>
    %2 = tpu.matmul %0, %1, %cst {dimension_numbers = #tpu.dot_dimension_numbers<[1], [0], [0], [1], [0, 0, 1, 1], [], []>} : vector<64x256xbf16>, vector<256x128xbf16>, vector<64x128xf32> -> vector<64x128xf32>
    %c0_3 = arith.constant 0 : index
    %c0_4 = arith.constant 0 : index
    %3 = vector.load %arg4[%c0_3, %c0_4] : memref<1x128xf32, #tpu.memory_space<vmem>>, vector<1x128xf32>
    %4 = vector.broadcast %3 : vector<1x128xf32> to vector<64x128xf32>
    %5 = arith.addf %2, %4 : vector<64x128xf32>
    %c0_5 = arith.constant 0 : index
    %c0_6 = arith.constant 0 : index
    %6 = vector.load %arg5[%c0_5, %c0_6] : memref<64x128xf32, #tpu.memory_space<vmem>>, vector<64x128xf32>
    %7 = arith.addf %5, %6 : vector<64x128xf32>
    %c0_7 = arith.constant 0 : index
    %c0_8 = arith.constant 0 : index
    %8 = vector.load %arg6[%c0_7, %c0_8] : memref<64x128xf32, #tpu.memory_space<vmem>>, vector<64x128xf32>
    tpu.vector_store %arg6[%c0_7, %c0_8], %7 {strides = array<i32>} : memref<64x128xf32, #tpu.memory_space<vmem>>, vector<64x128xf32>,
    return
  }
  func.func @transform_0(%arg0: i32, %arg1: i32) -> (i32, i32) {
    %c0_i32 = arith.constant 0 : i32
    %c0_i32_0 = arith.constant 0 : i32
    return %arg0, %c0_i32 : i32, i32
  }
  func.func @transform_1(%arg0: i32, %arg1: i32) -> (i32, i32) {
    %c0_i32 = arith.constant 0 : i32
    %c0_i32_0 = arith.constant 0 : i32
    return %c0_i32, %arg1 : i32, i32
  }
  func.func @transform_2(%arg0: i32, %arg1: i32) -> (i32, i32) {
    %c0_i32 = arith.constant 0 : i32
    %c0_i32_0 = arith.constant 0 : i32
    return %c0_i32, %arg1 : i32, i32
  }
  func.func @transform_3(%arg0: i32, %arg1: i32) -> (i32, i32) {
    %c0_i32 = arith.constant 0 : i32
    return %arg0, %arg1 : i32, i32
  }
  func.func @transform_4(%arg0: i32, %arg1: i32) -> (i32, i32) {
    %c0_i32 = arith.constant 0 : i32
    return %arg0, %arg1 : i32, i32
  }
}

module attributes {stable_mosaic.version = 11 : i64} {
  func.func @_fused_matmul_kernel(%arg0: i32, %arg1: i32, %arg2: memref<2x128xf32, #tpu.memory_space<vmem>>, %arg3: memref<1x128xf32, #tpu.memory_space<vmem>>, %arg4: memref<1x128xf32, #tpu.memory_space<vmem>>, %arg5: memref<128x128xbf16, #tpu.memory_space<vmem>>, %arg6: memref<1x128xf32, #tpu.memory_space<vmem>>, %arg7: memref<2x128xf32, #tpu.memory_space<vmem>>, %arg8: memref<2x128xbf16, #tpu.memory_space<vmem>>) attributes {dimension_semantics = [#tpu.dimension_semantics<parallel>, #tpu.dimension_semantics<arbitrary>], iteration_bounds = array<i64: 1, 1>, scalar_prefetch = 0 : i64, scratch_operands = 1 : i64, tpu.core_type = #tpu.core_type<tc>, window_params = [{transform_indices = @transform_0, window_bounds = array<i64: 2, 128>}, {pipeline_mode = #tpu.pipeline_mode<synchronous>, transform_indices = @transform_1, window_bounds = array<i64: 1, 128>}, {pipeline_mode = #tpu.pipeline_mode<synchronous>, transform_indices = @transform_2, window_bounds = array<i64: 1, 128>}, {transform_indices = @transform_3, window_bounds = array<i64: 128, 128>}, {transform_indices = @transform_4, window_bounds = array<i64: 1, 128>}, {transform_indices = @transform_5, window_bounds = array<i64: 2, 128>}]} {
    %c0_i32 = arith.constant 0 : i32
    %0 = arith.cmpi eq, %arg1, %c0_i32 : i32
    %1 = arith.extui %0 : i1 to i32
    %c0_i32_0 = arith.constant 0 : i32
    %2 = arith.cmpi ne, %1, %c0_i32_0 : i32
    scf.if %2 {
      %c0_8 = arith.constant 0 : index
      %c0_9 = arith.constant 0 : index
      %11 = vector.load %arg2[%c0_8, %c0_9] : memref<2x128xf32, #tpu.memory_space<vmem>>, vector<2x128xf32>
      %cst_10 = arith.constant dense<0.000000e+00> : vector<2xf32>
      %12 = vector.multi_reduction <add>, %11, %cst_10 [1] : vector<2x128xf32> to vector<2xf32>
      %13 = vector.shape_cast %12 : vector<2xf32> to vector<2x1xf32>
      %cst_11 = arith.constant 1.280000e+02 : f32
      %14 = vector.broadcast %cst_11 : f32 to vector<2x1xf32>
      %15 = arith.divf %13, %14 : vector<2x1xf32>
      %16 = vector.broadcast %15 : vector<2x1xf32> to vector<2x128xf32>
      %17 = arith.subf %11, %16 : vector<2x128xf32>
      %18 = arith.mulf %17, %17 : vector<2x128xf32>
      %cst_12 = arith.constant dense<0.000000e+00> : vector<2xf32>
      %19 = vector.multi_reduction <add>, %18, %cst_12 [1] : vector<2x128xf32> to vector<2xf32>
      %20 = vector.shape_cast %19 : vector<2xf32> to vector<2x1xf32>
      %cst_13 = arith.constant 1.280000e+02 : f32
      %21 = vector.broadcast %cst_13 : f32 to vector<2x1xf32>
      %22 = arith.divf %20, %21 : vector<2x1xf32>
      %23 = vector.broadcast %15 : vector<2x1xf32> to vector<2x128xf32>
      %24 = arith.subf %11, %23 : vector<2x128xf32>
      %cst_14 = arith.constant 9.99999996E-13 : f32
      %25 = vector.broadcast %cst_14 : f32 to vector<2x1xf32>
      %26 = arith.addf %22, %25 : vector<2x1xf32>
      %27 = math.rsqrt %26 : vector<2x1xf32>
      %28 = vector.broadcast %27 : vector<2x1xf32> to vector<2x128xf32>
      %29 = arith.mulf %24, %28 : vector<2x128xf32>
      %c0_15 = arith.constant 0 : index
      %c0_16 = arith.constant 0 : index
      %30 = vector.load %arg3[%c0_15, %c0_16] : memref<1x128xf32, #tpu.memory_space<vmem>>, vector<1x128xf32>
      %31 = vector.broadcast %30 : vector<1x128xf32> to vector<2x128xf32>
      %32 = arith.mulf %29, %31 : vector<2x128xf32>
      %c0_17 = arith.constant 0 : index
      %c0_18 = arith.constant 0 : index
      %33 = vector.load %arg4[%c0_17, %c0_18] : memref<1x128xf32, #tpu.memory_space<vmem>>, vector<1x128xf32>
      %34 = vector.broadcast %33 : vector<1x128xf32> to vector<2x128xf32>
      %35 = arith.addf %32, %34 : vector<2x128xf32>
      %36 = arith.truncf %35 : vector<2x128xf32> to vector<2x128xbf16>
      %c0_19 = arith.constant 0 : index
      %c0_20 = arith.constant 0 : index
      %37 = vector.load %arg8[%c0_19, %c0_20] : memref<2x128xbf16, #tpu.memory_space<vmem>>, vector<2x128xbf16>
      tpu.vector_store %arg8[%c0_19, %c0_20], %36 {strides = array<i32>} : memref<2x128xbf16, #tpu.memory_space<vmem>>, vector<2x128xbf16>,
    } else {
    }
    %c0 = arith.constant 0 : index
    %c0_1 = arith.constant 0 : index
    %3 = vector.load %arg8[%c0, %c0_1] : memref<2x128xbf16, #tpu.memory_space<vmem>>, vector<2x128xbf16>
    %c0_2 = arith.constant 0 : index
    %c0_3 = arith.constant 0 : index
    %4 = vector.load %arg5[%c0_2, %c0_3] : memref<128x128xbf16, #tpu.memory_space<vmem>>, vector<128x128xbf16>
    %cst = arith.constant dense<0.000000e+00> : vector<2x128xf32>
    %5 = tpu.matmul %3, %4, %cst {dimension_numbers = #tpu.dot_dimension_numbers<[1], [0], [0], [1], [0, 0, 1, 1], [], []>} : vector<2x128xbf16>, vector<128x128xbf16>, vector<2x128xf32> -> vector<2x128xf32>
    %c0_4 = arith.constant 0 : index
    %c0_5 = arith.constant 0 : index
    %6 = vector.load %arg6[%c0_4, %c0_5] : memref<1x128xf32, #tpu.memory_space<vmem>>, vector<1x128xf32>
    %7 = vector.broadcast %6 : vector<1x128xf32> to vector<2x128xf32>
    %8 = arith.addf %5, %7 : vector<2x128xf32>
    %9 = math.tanh %8 : vector<2x128xf32>
    %c0_6 = arith.constant 0 : index
    %c0_7 = arith.constant 0 : index
    %10 = vector.load %arg7[%c0_6, %c0_7] : memref<2x128xf32, #tpu.memory_space<vmem>>, vector<2x128xf32>
    tpu.vector_store %arg7[%c0_6, %c0_7], %9 {strides = array<i32>} : memref<2x128xf32, #tpu.memory_space<vmem>>, vector<2x128xf32>,
    return
  }
  func.func @transform_0(%arg0: i32, %arg1: i32) -> (i32, i32) {
    %c0_i32 = arith.constant 0 : i32
    %c0_i32_0 = arith.constant 0 : i32
    return %arg0, %c0_i32 : i32, i32
  }
  func.func @transform_1(%arg0: i32, %arg1: i32) -> (i32, i32) {
    %c0_i32 = arith.constant 0 : i32
    %c0_i32_0 = arith.constant 0 : i32
    %c0_i32_1 = arith.constant 0 : i32
    return %c0_i32, %c0_i32_0 : i32, i32
  }
  func.func @transform_2(%arg0: i32, %arg1: i32) -> (i32, i32) {
    %c0_i32 = arith.constant 0 : i32
    %c0_i32_0 = arith.constant 0 : i32
    %c0_i32_1 = arith.constant 0 : i32
    return %c0_i32, %c0_i32_0 : i32, i32
  }
  func.func @transform_3(%arg0: i32, %arg1: i32) -> (i32, i32) {
    %c0_i32 = arith.constant 0 : i32
    %c0_i32_0 = arith.constant 0 : i32
    return %c0_i32, %arg1 : i32, i32
  }
  func.func @transform_4(%arg0: i32, %arg1: i32) -> (i32, i32) {
    %c0_i32 = arith.constant 0 : i32
    %c0_i32_0 = arith.constant 0 : i32
    return %c0_i32, %arg1 : i32, i32
  }
  func.func @transform_5(%arg0: i32, %arg1: i32) -> (i32, i32) {
    %c0_i32 = arith.constant 0 : i32
    return %arg0, %arg1 : i32, i32
  }
}

</mosaic_0001>

<llo_original>
// kernel: vit_forward.12
$region0: #{vit_forward.12}
  #allocation0 [shape = 'u32[]', space=smem, size = 0x4, offset = 0x4, fixed_abs, tag = 'smem constant byte address 0x4 - core index']
  #allocation1 [shape = 'u32[144,128]{1,0:T(1,128)}', space=vmem, size = 0x12000, scoped, tag = 'internal scratch']
  #allocation2 [shape = 'bf16[32,192]{1,0:T(16,128)(2,1)}', space=vmem, size = 0x4000, scoped, tag = 'scratch operand']
  %s0 = inlined_call_operand.vmem [shape: f32[32,192], index: 0, kind: input, shape index: {}]
  %s1 = inlined_call_operand.vmem [shape: bf16[192,128], index: 1, kind: input, shape index: {}]
  %s2 = inlined_call_operand.vmem [shape: f32[1,128], index: 2, kind: input, shape index: {}]
  %s3 = inlined_call_operand.vmem [shape: f32[32,128], index: 3, kind: output, shape index: {}]
  %s4 = sld [smem:[#allocation0]]
  $region26: #{vit_forward.12} parent=0
    _
  %s6 = ssub.s32 1, %s4
  %s7 = scalar_select 0, %s6, %s4
  // Predicated region
  $region2: #{vit_forward.12} parent=0 // pred_check
    _
  $region3: #{vit_forward.12} parent=0 // pred_check_branch
    %9 = sbr.rel (0) target = $region5
  $region4: #{vit_forward.12} parent=0 // pred_region
    _
  $region5: #{vit_forward.12} parent=0 // pred_fallthru
    _
  // Predicated region
  $region6: #{vit_forward.12} parent=0 // pred_check
    _
  $region7: #{vit_forward.12} parent=0 // pred_check_branch
    %11 = sbr.rel (0) target = $region9
  $region8: #{vit_forward.12} parent=0 // pred_region
    _
  $region9: #{vit_forward.12} parent=0 // pred_fallthru
    _
  // Predicated region
  $region10: #{vit_forward.12} parent=0 // pred_check
    _
  $region11: #{vit_forward.12} parent=0 // pred_check_branch
    %13 = sbr.rel (0) target = $region13
  $region12: #{vit_forward.12} parent=0 // pred_region
    _
  $region13: #{vit_forward.12} parent=0 // pred_fallthru
    _
  %p15 = scmp.eq.s32.totalorder 0, 0
  // Predicated region
  $region14: #{vit_forward.12} parent=0 // pred_check
    %p16 = pneg %p15
  $region15: #{vit_forward.12} parent=0 // pred_check_branch
    %18 = sbr.rel (%p16) target = $region17
  $region16: #{vit_forward.12} parent=0 // pred_region
    %v19 = vld [vmem:[%s0] sm:$0xff]
    %v20 = vld [vmem:[%s0 + $0x8] sm:$0xff]
    %v21 = vld [vmem:[%s0 + $0x10] sm:$0xff]
    %v22 = vld [vmem:[%s0 + $0x18] sm:$0xff]
    %v23 = vld [vmem:[%s0 + $0x20] sm:$0xff]
    %v24 = vld [vmem:[%s0 + $0x28] sm:$0xff]
    %v25 = vld [vmem:[%s0 + $0x30] sm:$0xff]
    %v26 = vld [vmem:[%s0 + $0x38] sm:$0xff]
    %v27 = vpack.c.bf16 %v21, %v19
    %v28 = vpack.c.bf16 %v22, %v20
    %v29 = vpack.c.bf16 %v25, %v23
    %v30 = vpack.c.bf16 %v26, %v24
    %31 = vst [vmem:[#allocation2] sm:$0xff] %v27
    %vm32 = vcmask 523264
    %33 = vst.msk [vmem:[#allocation2 + $0x8] sm:$0xff] %vm32, %v28
    %34 = vst [vmem:[#allocation2 + $0x10] sm:$0xff] %v29
    %35 = vst.msk [vmem:[#allocation2 + $0x18] sm:$0xff] %vm32, %v30
  $region17: #{vit_forward.12} parent=0 // pred_fallthru
    _
  %v36 = vld [vmem:[#allocation2] sm:$0xff]
  %v37 = vld [vmem:[#allocation2 + $0x8] sm:$0xff]
  %v38 = vld [vmem:[#allocation2 + $0x10] sm:$0xff]
  %v39 = vld [vmem:[#allocation2 + $0x18] sm:$0xff]
  %v40 = vld [vmem:[%s1] sm:$0xf]
  %v41 = vld [vmem:[%s1 + $0x4] sm:$0xf]
  %v42 = vld [vmem:[%s1 + $0x8] sm:$0xf]
  %v43 = vld [vmem:[%s1 + $0xc] sm:$0xf]
  %v44 = vld [vmem:[%s1 + $0x10] sm:$0xf]
  %v45 = vld [vmem:[%s1 + $0x14] sm:$0xf]
  %v46 = vld [vmem:[%s1 + $0x18] sm:$0xf]
  %v47 = vld [vmem:[%s1 + $0x1c] sm:$0xf]
  %v48 = vld [vmem:[%s1 + $0x20] sm:$0xf]
  %v49 = vld [vmem:[%s1 + $0x24] sm:$0xf]
  %v50 = vld [vmem:[%s1 + $0x28] sm:$0xf]
  %v51 = vld [vmem:[%s1 + $0x2c] sm:$0xf]
  %v52 = vld [vmem:[%s1 + $0x30] sm:$0xf]
  %v53 = vld [vmem:[%s1 + $0x34] sm:$0xf]
  %v54 = vld [vmem:[%s1 + $0x38] sm:$0xf]
  %v55 = vld [vmem:[%s1 + $0x3c] sm:$0xf]
  %v56 = vld [vmem:[%s1 + $0x40] sm:$0xf]
  %v57 = vld [vmem:[%s1 + $0x44] sm:$0xf]
  %v58 = vld [vmem:[%s1 + $0x48] sm:$0xf]
  %v59 = vld [vmem:[%s1 + $0x4c] sm:$0xf]
  %v60 = vld [vmem:[%s1 + $0x50] sm:$0xf]
  %v61 = vld [vmem:[%s1 + $0x54] sm:$0xf]
  %v62 = vld [vmem:[%s1 + $0x58] sm:$0xf]
  %v63 = vld [vmem:[%s1 + $0x5c] sm:$0xf]
  %v64 = vld [vmem:[%s2] sm:$0x1]
  %v66 = vlaneseq
  %v67 = vshrl.u32 %v66, 7
  %v68 = vsub.s32 0, %v67
  %v69 = vrot.slane %v64, %v68
  %v95 = vunpack.c.l.b16 %v40
  %v96 = vunpack.c.l.b16 %v41
  %v97 = vunpack.c.l.b16 %v42
  %v98 = vunpack.c.l.b16 %v43
  %v99 = vunpack.c.l.b16 %v44
  %v100 = vunpack.c.l.b16 %v45
  %v101 = vunpack.c.l.b16 %v46
  %v102 = vunpack.c.l.b16 %v47
  %v103 = vunpack.c.l.b16 %v48
  %v104 = vunpack.c.l.b16 %v49
  %v105 = vunpack.c.l.b16 %v50
  %v106 = vunpack.c.l.b16 %v51
  %v107 = vunpack.c.l.b16 %v52
  %v108 = vunpack.c.l.b16 %v53
  %v109 = vunpack.c.l.b16 %v54
  %v110 = vunpack.c.l.b16 %v55
  %v111 = vunpack.c.l.b16 %v56
  %v112 = vunpack.c.l.b16 %v57
  %v113 = vunpack.c.l.b16 %v58
  %v114 = vunpack.c.l.b16 %v59
  %v115 = vunpack.c.l.b16 %v60
  %v116 = vunpack.c.l.b16 %v61
  %v117 = vunpack.c.l.b16 %v62
  %v118 = vunpack.c.l.b16 %v63
  %v119 = vpack.c.b16 %v96, %v95
  %v120 = vpack.c.b16 %v98, %v97
  %v121 = vpack.c.b16 %v100, %v99
  %v122 = vpack.c.b16 %v102, %v101
  %v123 = vpack.c.b16 %v104, %v103
  %v124 = vpack.c.b16 %v106, %v105
  %v125 = vpack.c.b16 %v108, %v107
  %v126 = vpack.c.b16 %v110, %v109
  %v127 = vpack.c.b16 %v112, %v111
  %v128 = vpack.c.b16 %v114, %v113
  %v129 = vpack.c.b16 %v116, %v115
  %v130 = vpack.c.b16 %v118, %v117
  %vm143 = vcmask 523264
  %v145 = vsel %vm143, %v37, 0
  %v148 = vsel %vm143, %v39, 0
  %150 = vmatprep.subr.bf16.mxu0 0
  %151 = vmatpush1.bf16.msra.mxu0 %v119
  %152 = vmatprep.subr.bf16.mxu0 0
  %153 = vmatpush1.bf16.msra.mxu0 %v120
  %154 = vmatprep.subr.bf16.mxu0 0
  %155 = vmatpush1.bf16.msra.mxu0 %v121
  %156 = vmatprep.subr.bf16.mxu0 0
  %157 = vmatpush1.bf16.msra.mxu0 %v122
  %158 = vmatprep.subr.bf16.mxu0 0
  %159 = vmatpush1.bf16.msra.mxu0 %v123
  %160 = vmatprep.subr.bf16.mxu0 0
  %161 = vmatpush1.bf16.msra.mxu0 %v124
  %162 = vmatprep.subr.bf16.mxu0 0
  %163 = vmatpush1.bf16.msra.mxu0 %v125
  %164 = vmatprep.subr.bf16.mxu0 0
  %165 = vmatpush1.bf16.msra.mxu0 %v126
  %166 = vmatprep.subr.bf16.mxu0 0
  %167 = vmatpush1.bf16.msra.mxu0 %v127
  %168 = vmatprep.subr.bf16.mxu0 0
  %169 = vmatpush1.bf16.msra.mxu0 %v128
  %170 = vmatprep.subr.bf16.mxu0 0
  %171 = vmatpush1.bf16.msra.mxu0 %v129
  %172 = vmatprep.subr.bf16.mxu0 0
  %173 = vmatpush1.bf16.msra.mxu0 %v130
  %174 = vmatprep.subr.bf16.mxu0 0
  %175 = vmatpush1.bf16.msra.mxu0 0
  %176 = vmatprep.subr.bf16.mxu0 0
  %177 = vmatpush1.bf16.msra.mxu0 0
  %178 = vmatprep.subr.bf16.mxu0 0
  %179 = vmatpush1.bf16.msra.mxu0 0
  %180 = vmatprep.subr.bf16.mxu0 0
  %181 = vmatpush1.bf16.msra.mxu0 0
  %182 = vmatprep.mubr.bf16.mxu0 %v145
  %183 = vmatmul.mubr.bf16.gmra.mrb[0].mxu0 %v36
  %v184 = vpop.f32.mrb[0].mxu0
  %v185 = vadd.f32 %v69, %v184
  %v186 = vpop.f32.mrb[0].mxu0
  %v187 = vpop.f32.mrb[0].mxu0
  %v188 = vadd.f32 %v69, %v187
  %v189 = vpop.f32.mrb[0].mxu0
  %190 = vmatprep.mubr.bf16.mxu0 %v148
  %191 = vmatmul.mubr.bf16.gmra.mrb[0].mxu0 %v38
  %v192 = vpop.f32.mrb[0].mxu0
  %v193 = vadd.f32 %v69, %v192
  %v194 = vpop.f32.mrb[0].mxu0
  %v195 = vpop.f32.mrb[0].mxu0
  %v196 = vadd.f32 %v69, %v195
  %v197 = vpop.f32.mrb[0].mxu0
  %198 = vdwg.mxu0
  %199 = vst [vmem:[%s3] sm:$0xff] %v185
  %200 = vst [vmem:[%s3 + $0x8] sm:$0xff] %v188
  %201 = vst [vmem:[%s3 + $0x10] sm:$0xff] %v193
  %202 = vst [vmem:[%s3 + $0x18] sm:$0xff] %v196
  // Predicated region
  $region18: #{vit_forward.12} parent=0 // pred_check
    _
  $region19: #{vit_forward.12} parent=0 // pred_check_branch
    %204 = sbr.rel (0) target = $region21
  $region20: #{vit_forward.12} parent=0 // pred_region
    _
  $region21: #{vit_forward.12} parent=0 // pred_fallthru
    _
  // Predicated region
  $region22: #{vit_forward.12} parent=0 // pred_check
    _
  $region23: #{vit_forward.12} parent=0 // pred_check_branch
    %206 = sbr.rel (0) target = $region25
  $region24: #{vit_forward.12} parent=0 // pred_region
    _
  $region25: #{vit_forward.12} parent=0 // pred_fallthru
    _

// kernel: vit_forward.15
$region0: #{vit_forward.15}
  #allocation0 [shape = 'u32[]', space=smem, size = 0x4, offset = 0x4, fixed_abs, tag = 'smem constant byte address 0x4 - core index']
  #allocation1 [shape = 'u32[144,128]{1,0:T(1,128)}', space=vmem, size = 0x12000, scoped, tag = 'internal scratch']
  %s0 = inlined_call_operand.vmem [shape: bf16[64,128], index: 0, kind: input, shape index: {}]
  %s1 = inlined_call_operand.vmem [shape: bf16[128,128], index: 1, kind: input, shape index: {}]
  %s2 = inlined_call_operand.vmem [shape: f32[1,128], index: 2, kind: input, shape index: {}]
  %s3 = inlined_call_operand.vmem [shape: f32[64,128], index: 3, kind: input, shape index: {}]
  %s4 = inlined_call_operand.vmem [shape: f32[64,128], index: 4, kind: output, shape index: {}]
  %s5 = sld [smem:[#allocation0]]
  $region26: #{vit_forward.15} parent=0
    _
  %s7 = ssub.s32 1, %s5
  %s8 = scalar_select 0, %s7, %s5
  // Predicated region
  $region2: #{vit_forward.15} parent=0 // pred_check
    _
  $region3: #{vit_forward.15} parent=0 // pred_check_branch
    %10 = sbr.rel (0) target = $region5
  $region4: #{vit_forward.15} parent=0 // pred_region
    _
  $region5: #{vit_forward.15} parent=0 // pred_fallthru
    _
  // Predicated region
  $region6: #{vit_forward.15} parent=0 // pred_check
    _
  $region7: #{vit_forward.15} parent=0 // pred_check_branch
    %12 = sbr.rel (0) target = $region9
  $region8: #{vit_forward.15} parent=0 // pred_region
    _
  $region9: #{vit_forward.15} parent=0 // pred_fallthru
    _
  // Predicated region
  $region10: #{vit_forward.15} parent=0 // pred_check
    _
  $region11: #{vit_forward.15} parent=0 // pred_check_branch
    %14 = sbr.rel (0) target = $region13
  $region12: #{vit_forward.15} parent=0 // pred_region
    _
  $region13: #{vit_forward.15} parent=0 // pred_fallthru
    _
  // Predicated region
  $region14: #{vit_forward.15} parent=0 // pred_check
    _
  $region15: #{vit_forward.15} parent=0 // pred_check_branch
    %16 = sbr.rel (0) target = $region17
  $region16: #{vit_forward.15} parent=0 // pred_region
    _
  $region17: #{vit_forward.15} parent=0 // pred_fallthru
    _
  %v18 = vld [vmem:[%s0] sm:$0xf]
  %v19 = vld [vmem:[%s0 + $0x4] sm:$0xf]
  %v20 = vld [vmem:[%s0 + $0x8] sm:$0xf]
  %v21 = vld [vmem:[%s0 + $0xc] sm:$0xf]
  %v22 = vld [vmem:[%s0 + $0x10] sm:$0xf]
  %v23 = vld [vmem:[%s0 + $0x14] sm:$0xf]
  %v24 = vld [vmem:[%s0 + $0x18] sm:$0xf]
  %v25 = vld [vmem:[%s0 + $0x1c] sm:$0xf]
  %v26 = vld [vmem:[%s1] sm:$0xf]
  %v27 = vld [vmem:[%s1 + $0x4] sm:$0xf]
  %v28 = vld [vmem:[%s1 + $0x8] sm:$0xf]
  %v29 = vld [vmem:[%s1 + $0xc] sm:$0xf]
  %v30 = vld [vmem:[%s1 + $0x10] sm:$0xf]
  %v31 = vld [vmem:[%s1 + $0x14] sm:$0xf]
  %v32 = vld [vmem:[%s1 + $0x18] sm:$0xf]
  %v33 = vld [vmem:[%s1 + $0x1c] sm:$0xf]
  %v34 = vld [vmem:[%s1 + $0x20] sm:$0xf]
  %v35 = vld [vmem:[%s1 + $0x24] sm:$0xf]
  %v36 = vld [vmem:[%s1 + $0x28] sm:$0xf]
  %v37 = vld [vmem:[%s1 + $0x2c] sm:$0xf]
  %v38 = vld [vmem:[%s1 + $0x30] sm:$0xf]
  %v39 = vld [vmem:[%s1 + $0x34] sm:$0xf]
  %v40 = vld [vmem:[%s1 + $0x38] sm:$0xf]
  %v41 = vld [vmem:[%s1 + $0x3c] sm:$0xf]
  %v42 = vld [vmem:[%s2] sm:$0x1]
  %v44 = vlaneseq
  %v45 = vshrl.u32 %v44, 7
  %v46 = vsub.s32 0, %v45
  %v47 = vrot.slane %v42, %v46
  %v57 = vunpack.c.l.b16 %v18
  %v58 = vunpack.c.l.b16 %v19
  %v59 = vunpack.c.l.b16 %v20
  %v60 = vunpack.c.l.b16 %v21
  %v61 = vunpack.c.l.b16 %v22
  %v62 = vunpack.c.l.b16 %v23
  %v63 = vunpack.c.l.b16 %v24
  %v64 = vunpack.c.l.b16 %v25
  %v65 = vpack.c.b16 %v58, %v57
  %v66 = vpack.c.b16 %v60, %v59
  %v67 = vpack.c.b16 %v62, %v61
  %v68 = vpack.c.b16 %v64, %v63
  %v89 = vunpack.c.l.b16 %v26
  %v90 = vunpack.c.l.b16 %v27
  %v91 = vunpack.c.l.b16 %v28
  %v92 = vunpack.c.l.b16 %v29
  %v93 = vunpack.c.l.b16 %v30
  %v94 = vunpack.c.l.b16 %v31
  %v95 = vunpack.c.l.b16 %v32
  %v96 = vunpack.c.l.b16 %v33
  %v97 = vunpack.c.l.b16 %v34
  %v98 = vunpack.c.l.b16 %v35
  %v99 = vunpack.c.l.b16 %v36
  %v100 = vunpack.c.l.b16 %v37
  %v101 = vunpack.c.l.b16 %v38
  %v102 = vunpack.c.l.b16 %v39
  %v103 = vunpack.c.l.b16 %v40
  %v104 = vunpack.c.l.b16 %v41
  %v105 = vpack.c.b16 %v90, %v89
  %v106 = vpack.c.b16 %v92, %v91
  %v107 = vpack.c.b16 %v94, %v93
  %v108 = vpack.c.b16 %v96, %v95
  %v109 = vpack.c.b16 %v98, %v97
  %v110 = vpack.c.b16 %v100, %v99
  %v111 = vpack.c.b16 %v102, %v101
  %v112 = vpack.c.b16 %v104, %v103
  %121 = vmatprep.subr.bf16.mxu0 0
  %122 = vmatpush1.bf16.msra.mxu0 %v105
  %123 = vmatprep.subr.bf16.mxu0 0
  %124 = vmatpush1.bf16.msra.mxu0 %v106
  %125 = vmatprep.subr.bf16.mxu0 0
  %126 = vmatpush1.bf16.msra.mxu0 %v107
  %127 = vmatprep.subr.bf16.mxu0 0
  %128 = vmatpush1.bf16.msra.mxu0 %v108
  %129 = vmatprep.subr.bf16.mxu0 0
  %130 = vmatpush1.bf16.msra.mxu0 %v109
  %131 = vmatprep.subr.bf16.mxu0 0
  %132 = vmatpush1.bf16.msra.mxu0 %v110
  %133 = vmatprep.subr.bf16.mxu0 0
  %134 = vmatpush1.bf16.msra.mxu0 %v111
  %135 = vmatprep.subr.bf16.mxu0 0
  %136 = vmatpush1.bf16.msra.mxu0 %v112
  %137 = vmatprep.subr.bf16.mxu0 0
  %138 = vmatpush1.bf16.msra.mxu0 0
  %139 = vmatprep.subr.bf16.mxu0 0
  %140 = vmatpush1.bf16.msra.mxu0 0
  %141 = vmatprep.subr.bf16.mxu0 0
  %142 = vmatpush1.bf16.msra.mxu0 0
  %143 = vmatprep.subr.bf16.mxu0 0
  %144 = vmatpush1.bf16.msra.mxu0 0
  %145 = vmatprep.subr.bf16.mxu0 0
  %146 = vmatpush1.bf16.msra.mxu0 0
  %147 = vmatprep.subr.bf16.mxu0 0
  %148 = vmatpush1.bf16.msra.mxu0 0
  %149 = vmatprep.subr.bf16.mxu0 0
  %150 = vmatpush1.bf16.msra.mxu0 0
  %151 = vmatprep.subr.bf16.mxu0 0
  %152 = vmatpush1.bf16.msra.mxu0 0
  %153 = vmatprep.mubr.bf16.mxu0 0
  %154 = vmatmul.mubr.bf16.gmra.mrb[0].mxu0 %v65
  %v155 = vpop.f32.mrb[0].mxu0
  %v156 = vadd.f32 %v47, %v155
  %v157 = vpop.f32.mrb[0].mxu0
  %v158 = vpop.f32.mrb[0].mxu0
  %v159 = vadd.f32 %v47, %v158
  %v160 = vpop.f32.mrb[0].mxu0
  %161 = vmatprep.mubr.bf16.mxu0 0
  %162 = vmatmul.mubr.bf16.gmra.mrb[0].mxu0 %v66
  %v163 = vpop.f32.mrb[0].mxu0
  %v164 = vadd.f32 %v47, %v163
  %v165 = vpop.f32.mrb[0].mxu0
  %v166 = vpop.f32.mrb[0].mxu0
  %v167 = vadd.f32 %v47, %v166
  %v168 = vpop.f32.mrb[0].mxu0
  %169 = vmatprep.mubr.bf16.mxu0 0
  %170 = vmatmul.mubr.bf16.gmra.mrb[0].mxu0 %v67
  %v171 = vpop.f32.mrb[0].mxu0
  %v172 = vadd.f32 %v47, %v171
  %v173 = vpop.f32.mrb[0].mxu0
  %v174 = vpop.f32.mrb[0].mxu0
  %v175 = vadd.f32 %v47, %v174
  %v176 = vpop.f32.mrb[0].mxu0
  %177 = vmatprep.mubr.bf16.mxu0 0
  %178 = vmatmul.mubr.bf16.gmra.mrb[0].mxu0 %v68
  %v179 = vpop.f32.mrb[0].mxu0
  %v180 = vadd.f32 %v47, %v179
  %v181 = vpop.f32.mrb[0].mxu0
  %v182 = vpop.f32.mrb[0].mxu0
  %v183 = vadd.f32 %v47, %v182
  %v184 = vpop.f32.mrb[0].mxu0
  %185 = vdwg.mxu0
  %v186 = vld [vmem:[%s3] sm:$0xff]
  %v187 = vld [vmem:[%s3 + $0x8] sm:$0xff]
  %v188 = vld [vmem:[%s3 + $0x10] sm:$0xff]
  %v189 = vld [vmem:[%s3 + $0x18] sm:$0xff]
  %v190 = vld [vmem:[%s3 + $0x20] sm:$0xff]
  %v191 = vld [vmem:[%s3 + $0x28] sm:$0xff]
  %v192 = vld [vmem:[%s3 + $0x30] sm:$0xff]
  %v193 = vld [vmem:[%s3 + $0x38] sm:$0xff]
  %v194 = vadd.f32 %v156, %v186
  %v195 = vadd.f32 %v159, %v187
  %v196 = vadd.f32 %v164, %v188
  %v197 = vadd.f32 %v167, %v189
  %v198 = vadd.f32 %v172, %v190
  %v199 = vadd.f32 %v175, %v191
  %v200 = vadd.f32 %v180, %v192
  %v201 = vadd.f32 %v183, %v193
  %202 = vst [vmem:[%s4] sm:$0xff] %v194
  %203 = vst [vmem:[%s4 + $0x8] sm:$0xff] %v195
  %204 = vst [vmem:[%s4 + $0x10] sm:$0xff] %v196
  %205 = vst [vmem:[%s4 + $0x18] sm:$0xff] %v197
  %206 = vst [vmem:[%s4 + $0x20] sm:$0xff] %v198
  %207 = vst [vmem:[%s4 + $0x28] sm:$0xff] %v199
  %208 = vst [vmem:[%s4 + $0x30] sm:$0xff] %v200
  %209 = vst [vmem:[%s4 + $0x38] sm:$0xff] %v201
  // Predicated region
  $region18: #{vit_forward.15} parent=0 // pred_check
    _
  $region19: #{vit_forward.15} parent=0 // pred_check_branch
    %211 = sbr.rel (0) target = $region21
  $region20: #{vit_forward.15} parent=0 // pred_region
    _
  $region21: #{vit_forward.15} parent=0 // pred_fallthru
    _
  // Predicated region
  $region22: #{vit_forward.15} parent=0 // pred_check
    _
  $region23: #{vit_forward.15} parent=0 // pred_check_branch
    %213 = sbr.rel (0) target = $region25
  $region24: #{vit_forward.15} parent=0 // pred_region
    _
  $region25: #{vit_forward.15} parent=0 // pred_fallthru
    _

// kernel: vit_forward.13
$region0: #{vit_forward.13}
  #allocation0 [shape = 'u32[]', space=smem, size = 0x4, offset = 0x4, fixed_abs, tag = 'smem constant byte address 0x4 - core index']
  #allocation1 [shape = 'u32[144,128]{1,0:T(1,128)}', space=vmem, size = 0x12000, scoped, tag = 'internal scratch']
  #allocation2 [shape = 'bf16[64,128]{1,0:T(16,128)(2,1)}', space=vmem, size = 0x4000, scoped, tag = 'scratch operand']
  %s0 = inlined_call_operand.vmem [shape: f32[64,128], index: 0, kind: input, shape index: {}]
  %s1 = inlined_call_operand.vmem [shape: f32[1,128], index: 1, kind: input, shape index: {}]
  %s2 = inlined_call_operand.vmem [shape: f32[1,128], index: 2, kind: input, shape index: {}]
  %s3 = inlined_call_operand.vmem [shape: bf16[128,384], index: 3, kind: input, shape index: {}]
  %s4 = inlined_call_operand.vmem [shape: f32[1,384], index: 4, kind: input, shape index: {}]
  %s5 = inlined_call_operand.vmem [shape: bf16[64,384], index: 5, kind: output, shape index: {}]
  %s6 = sld [smem:[#allocation0]]
  $region34: #{vit_forward.13} parent=0
    _
  %s8 = ssub.s32 1, %s6
  %s9 = scalar_select 0, %s8, %s6
  // Predicated region
  $region2: #{vit_forward.13} parent=0 // pred_check
    _
  $region3: #{vit_forward.13} parent=0 // pred_check_branch
    %11 = sbr.rel (0) target = $region5
  $region4: #{vit_forward.13} parent=0 // pred_region
    _
  $region5: #{vit_forward.13} parent=0 // pred_fallthru
    _
  // Predicated region
  $region6: #{vit_forward.13} parent=0 // pred_check
    _
  $region7: #{vit_forward.13} parent=0 // pred_check_branch
    %13 = sbr.rel (0) target = $region9
  $region8: #{vit_forward.13} parent=0 // pred_region
    _
  $region9: #{vit_forward.13} parent=0 // pred_fallthru
    _
  // Predicated region
  $region10: #{vit_forward.13} parent=0 // pred_check
    _
  $region11: #{vit_forward.13} parent=0 // pred_check_branch
    %15 = sbr.rel (0) target = $region13
  $region12: #{vit_forward.13} parent=0 // pred_region
    _
  $region13: #{vit_forward.13} parent=0 // pred_fallthru
    _
  // Predicated region
  $region14: #{vit_forward.13} parent=0 // pred_check
    _
  $region15: #{vit_forward.13} parent=0 // pred_check_branch
    %17 = sbr.rel (0) target = $region17
  $region16: #{vit_forward.13} parent=0 // pred_region
    _
  $region17: #{vit_forward.13} parent=0 // pred_fallthru
    _
  // Predicated region
  $region18: #{vit_forward.13} parent=0 // pred_check
    _
  $region19: #{vit_forward.13} parent=0 // pred_check_branch
    %19 = sbr.rel (0) target = $region21
  $region20: #{vit_forward.13} parent=0 // pred_region
    _
  $region21: #{vit_forward.13} parent=0 // pred_fallthru
    _
  %p21 = scmp.eq.s32.totalorder 0, 0
  // Predicated region
  $region22: #{vit_forward.13} parent=0 // pred_check
    %p22 = pneg %p21
  $region23: #{vit_forward.13} parent=0 // pred_check_branch
    %24 = sbr.rel (%p22) target = $region25
  $region24: #{vit_forward.13} parent=0 // pred_region
    %v25 = vld [vmem:[%s0] sm:$0xff]
    %v26 = vld [vmem:[%s0 + $0x8] sm:$0xff]
    %v27 = vld [vmem:[%s0 + $0x10] sm:$0xff]
    %v28 = vld [vmem:[%s0 + $0x18] sm:$0xff]
    %v29 = vld [vmem:[%s0 + $0x20] sm:$0xff]
    %v30 = vld [vmem:[%s0 + $0x28] sm:$0xff]
    %v31 = vld [vmem:[%s0 + $0x30] sm:$0xff]
    %v32 = vld [vmem:[%s0 + $0x38] sm:$0xff]
    %33 = vadd.xlane.f32.xlu0 %v25
    %v34 = vpop.xlane.xlu0 %33
    %35 = vadd.xlane.f32.xlu0 %v26
    %v36 = vpop.xlane.xlu0 %35
    %37 = vadd.xlane.f32.xlu0 %v27
    %v38 = vpop.xlane.xlu0 %37
    %39 = vadd.xlane.f32.xlu0 %v28
    %v40 = vpop.xlane.xlu0 %39
    %41 = vadd.xlane.f32.xlu0 %v29
    %v42 = vpop.xlane.xlu0 %41
    %43 = vadd.xlane.f32.xlu0 %v30
    %v44 = vpop.xlane.xlu0 %43
    %45 = vadd.xlane.f32.xlu0 %v31
    %v46 = vpop.xlane.xlu0 %45
    %47 = vadd.xlane.f32.xlu0 %v32
    %v48 = vpop.xlane.xlu0 %47
    %v49 = vrcp.pop 128.0
    %v50 = vmul.f32 %v34, %v49
    %v51 = vmul.f32 %v36, %v49
    %v52 = vmul.f32 %v38, %v49
    %v53 = vmul.f32 %v40, %v49
    %v54 = vmul.f32 %v42, %v49
    %v55 = vmul.f32 %v44, %v49
    %v56 = vmul.f32 %v46, %v49
    %v57 = vmul.f32 %v48, %v49
    %v58 = vsub.f32 %v25, %v50
    %v59 = vsub.f32 %v26, %v51
    %v60 = vsub.f32 %v27, %v52
    %v61 = vsub.f32 %v28, %v53
    %v62 = vsub.f32 %v29, %v54
    %v63 = vsub.f32 %v30, %v55
    %v64 = vsub.f32 %v31, %v56
    %v65 = vsub.f32 %v32, %v57
    %v66 = vmul.f32 %v58, %v58
    %v67 = vmul.f32 %v59, %v59
    %v68 = vmul.f32 %v60, %v60
    %v69 = vmul.f32 %v61, %v61
    %v70 = vmul.f32 %v62, %v62
    %v71 = vmul.f32 %v63, %v63
    %v72 = vmul.f32 %v64, %v64
    %v73 = vmul.f32 %v65, %v65
    %74 = vadd.xlane.f32.xlu0 %v66
    %v75 = vpop.xlane.xlu0 %74
    %76 = vadd.xlane.f32.xlu0 %v67
    %v77 = vpop.xlane.xlu0 %76
    %78 = vadd.xlane.f32.xlu0 %v68
    %v79 = vpop.xlane.xlu0 %78
    %80 = vadd.xlane.f32.xlu0 %v69
    %v81 = vpop.xlane.xlu0 %80
    %82 = vadd.xlane.f32.xlu0 %v70
    %v83 = vpop.xlane.xlu0 %82
    %84 = vadd.xlane.f32.xlu0 %v71
    %v85 = vpop.xlane.xlu0 %84
    %86 = vadd.xlane.f32.xlu0 %v72
    %v87 = vpop.xlane.xlu0 %86
    %88 = vadd.xlane.f32.xlu0 %v73
    %v89 = vpop.xlane.xlu0 %88
    %v90 = vmul.f32 %v75, %v49
    %v91 = vmul.f32 %v77, %v49
    %v92 = vmul.f32 %v79, %v49
    %v93 = vmul.f32 %v81, %v49
    %v94 = vmul.f32 %v83, %v49
    %v95 = vmul.f32 %v85, %v49
    %v96 = vmul.f32 %v87, %v49
    %v97 = vmul.f32 %v89, %v49
    %v98 = vadd.f32 %v90, 1e-12
    %v99 = vadd.f32 %v91, 1e-12
    %v100 = vadd.f32 %v92, 1e-12
    %v101 = vadd.f32 %v93, 1e-12
    %v102 = vadd.f32 %v94, 1e-12
    %v103 = vadd.f32 %v95, 1e-12
    %v104 = vadd.f32 %v96, 1e-12
    %v105 = vadd.f32 %v97, 1e-12
    %v106 = vrsqrt.pop %v98
    %v107 = vrsqrt.pop %v99
    %v108 = vrsqrt.pop %v100
    %v109 = vrsqrt.pop %v101
    %v110 = vrsqrt.pop %v102
    %v111 = vrsqrt.pop %v103
    %v112 = vrsqrt.pop %v104
    %v113 = vrsqrt.pop %v105
    %v114 = vmul.f32 %v58, %v106
    %v115 = vmul.f32 %v59, %v107
    %v116 = vmul.f32 %v60, %v108
    %v117 = vmul.f32 %v61, %v109
    %v118 = vmul.f32 %v62, %v110
    %v119 = vmul.f32 %v63, %v111
    %v120 = vmul.f32 %v64, %v112
    %v121 = vmul.f32 %v65, %v113
    %v122 = vld [vmem:[%s1] sm:$0x1]
    %v124 = vlaneseq
    %v125 = vshrl.u32 %v124, 7
    %v126 = vsub.s32 0, %v125
    %v127 = vrot.slane %v122, %v126
    %v129 = vmul.f32 %v114, %v127
    %v130 = vmul.f32 %v115, %v127
    %v131 = vmul.f32 %v116, %v127
    %v132 = vmul.f32 %v117, %v127
    %v133 = vmul.f32 %v118, %v127
    %v134 = vmul.f32 %v119, %v127
    %v135 = vmul.f32 %v120, %v127
    %v136 = vmul.f32 %v121, %v127
    %v137 = vld [vmem:[%s2] sm:$0x1]
    %v139 = vlaneseq
    %v140 = vshrl.u32 %v139, 7
    %v141 = vsub.s32 0, %v140
    %v142 = vrot.slane %v137, %v141
    %v144 = vadd.f32 %v129, %v142
    %v145 = vadd.f32 %v130, %v142
    %v146 = vadd.f32 %v131, %v142
    %v147 = vadd.f32 %v132, %v142
    %v148 = vadd.f32 %v133, %v142
    %v149 = vadd.f32 %v134, %v142
    %v150 = vadd.f32 %v135, %v142
    %v151 = vadd.f32 %v136, %v142
    %v152 = vpack.c.bf16 %v145, %v144
    %v153 = vpack.c.bf16 %v147, %v146
    %v154 = vpack.c.bf16 %v149, %v148
    %v155 = vpack.c.bf16 %v151, %v150
    %156 = vst [vmem:[#allocation2] sm:$0xff] %v152
    %157 = vst [vmem:[#allocation2 + $0x8] sm:$0xff] %v153
    %158 = vst [vmem:[#allocation2 + $0x10] sm:$0xff] %v154
    %159 = vst [vmem:[#allocation2 + $0x18] sm:$0xff] %v155
  $region25: #{vit_forward.13} parent=0 // pred_fallthru
    _
  %v160 = vld [vmem:[#allocation2] sm:$0xff]
  %v161 = vld [vmem:[#allocation2 + $0x8] sm:$0xff]
  %v162 = vld [vmem:[#allocation2 + $0x10] sm:$0xff]
  %v163 = vld [vmem:[#allocation2 + $0x18] sm:$0xff]
  %v164 = vld [vmem:[%s3] sm:$0xff]
  %v165 = vld [vmem:[%s3 + $0x8] sm:$0xf]
  %v166 = vld [vmem:[%s3 + $0xc] sm:$0xff]
  %v167 = vld [vmem:[%s3 + $0x14] sm:$0xf]
  %v168 = vld [vmem:[%s3 + $0x18] sm:$0xff]
  %v169 = vld [vmem:[%s3 + $0x20] sm:$0xf]
  %v170 = vld [vmem:[%s3 + $0x24] sm:$0xff]
  %v171 = vld [vmem:[%s3 + $0x2c] sm:$0xf]
  %v172 = vld [vmem:[%s3 + $0x30] sm:$0xff]
  %v173 = vld [vmem:[%s3 + $0x38] sm:$0xf]
  %v174 = vld [vmem:[%s3 + $0x3c] sm:$0xff]
  %v175 = vld [vmem:[%s3 + $0x44] sm:$0xf]
  %v176 = vld [vmem:[%s3 + $0x48] sm:$0xff]
  %v177 = vld [vmem:[%s3 + $0x50] sm:$0xf]
  %v178 = vld [vmem:[%s3 + $0x54] sm:$0xff]
  %v179 = vld [vmem:[%s3 + $0x5c] sm:$0xf]
  %v180 = vld [vmem:[%s3 + $0x60] sm:$0xff]
  %v181 = vld [vmem:[%s3 + $0x68] sm:$0xf]
  %v182 = vld [vmem:[%s3 + $0x6c] sm:$0xff]
  %v183 = vld [vmem:[%s3 + $0x74] sm:$0xf]
  %v184 = vld [vmem:[%s3 + $0x78] sm:$0xff]
  %v185 = vld [vmem:[%s3 + $0x80] sm:$0xf]
  %v186 = vld [vmem:[%s3 + $0x84] sm:$0xff]
  %v187 = vld [vmem:[%s3 + $0x8c] sm:$0xf]
  %v188 = vld [vmem:[%s3 + $0x90] sm:$0xff]
  %v189 = vld [vmem:[%s3 + $0x98] sm:$0xf]
  %v190 = vld [vmem:[%s3 + $0x9c] sm:$0xff]
  %v191 = vld [vmem:[%s3 + $0xa4] sm:$0xf]
  %v192 = vld [vmem:[%s3 + $0xa8] sm:$0xff]
  %v193 = vld [vmem:[%s3 + $0xb0] sm:$0xf]
  %v194 = vld [vmem:[%s3 + $0xb4] sm:$0xff]
  %v195 = vld [vmem:[%s3 + $0xbc] sm:$0xf]
  %v196 = vld [vmem:[%s4] sm:$0x7]
  %v198 = vlaneseq
  %v199 = vshrl.u32 %v198, 7
  %v200 = vsub.s32 0, %v199
  %v201 = vrot.slane %v196, %v200
  %v202 = vlaneseq
  %v203 = vshrl.u32 %v202, 7
  %v204 = vsub.s32 1, %v203
  %v205 = vrot.slane %v196, %v204
  %v206 = vlaneseq
  %v207 = vshrl.u32 %v206, 7
  %v208 = vsub.s32 2, %v207
  %v209 = vrot.slane %v196, %v208
  %v245 = vunpack.c.l.b16 %v164
  %v246 = vunpack.c.h.b16 %v164
  %v247 = vunpack.c.l.b16 %v165
  %v248 = vunpack.c.l.b16 %v166
  %v249 = vunpack.c.h.b16 %v166
  %v250 = vunpack.c.l.b16 %v167
  %v251 = vunpack.c.l.b16 %v168
  %v252 = vunpack.c.h.b16 %v168
  %v253 = vunpack.c.l.b16 %v169
  %v254 = vunpack.c.l.b16 %v170
  %v255 = vunpack.c.h.b16 %v170
  %v256 = vunpack.c.l.b16 %v171
  %v257 = vunpack.c.l.b16 %v172
  %v258 = vunpack.c.h.b16 %v172
  %v259 = vunpack.c.l.b16 %v173
  %v260 = vunpack.c.l.b16 %v174
  %v261 = vunpack.c.h.b16 %v174
  %v262 = vunpack.c.l.b16 %v175
  %v263 = vunpack.c.l.b16 %v176
  %v264 = vunpack.c.h.b16 %v176
  %v265 = vunpack.c.l.b16 %v177
  %v266 = vunpack.c.l.b16 %v178
  %v267 = vunpack.c.h.b16 %v178
  %v268 = vunpack.c.l.b16 %v179
  %v269 = vunpack.c.l.b16 %v180
  %v270 = vunpack.c.h.b16 %v180
  %v271 = vunpack.c.l.b16 %v181
  %v272 = vunpack.c.l.b16 %v182
  %v273 = vunpack.c.h.b16 %v182
  %v274 = vunpack.c.l.b16 %v183
  %v275 = vunpack.c.l.b16 %v184
  %v276 = vunpack.c.h.b16 %v184
  %v277 = vunpack.c.l.b16 %v185
  %v278 = vunpack.c.l.b16 %v186
  %v279 = vunpack.c.h.b16 %v186
  %v280 = vunpack.c.l.b16 %v187
  %v281 = vunpack.c.l.b16 %v188
  %v282 = vunpack.c.h.b16 %v188
  %v283 = vunpack.c.l.b16 %v189
  %v284 = vunpack.c.l.b16 %v190
  %v285 = vunpack.c.h.b16 %v190
  %v286 = vunpack.c.l.b16 %v191
  %v287 = vunpack.c.l.b16 %v192
  %v288 = vunpack.c.h.b16 %v192
  %v289 = vunpack.c.l.b16 %v193
  %v290 = vunpack.c.l.b16 %v194
  %v291 = vunpack.c.h.b16 %v194
  %v292 = vunpack.c.l.b16 %v195
  %v293 = vpack.c.b16 %v248, %v245
  %v294 = vpack.c.b16 %v249, %v246
  %v295 = vpack.c.b16 %v250, %v247
  %v296 = vpack.c.b16 %v254, %v251
  %v297 = vpack.c.b16 %v255, %v252
  %v298 = vpack.c.b16 %v256, %v253
  %v299 = vpack.c.b16 %v260, %v257
  %v300 = vpack.c.b16 %v261, %v258
  %v301 = vpack.c.b16 %v262, %v259
  %v302 = vpack.c.b16 %v266, %v263
  %v303 = vpack.c.b16 %v267, %v264
  %v304 = vpack.c.b16 %v268, %v265
  %v305 = vpack.c.b16 %v272, %v269
  %v306 = vpack.c.b16 %v273, %v270
  %v307 = vpack.c.b16 %v274, %v271
  %v308 = vpack.c.b16 %v278, %v275
  %v309 = vpack.c.b16 %v279, %v276
  %v310 = vpack.c.b16 %v280, %v277
  %v311 = vpack.c.b16 %v284, %v281
  %v312 = vpack.c.b16 %v285, %v282
  %v313 = vpack.c.b16 %v286, %v283
  %v314 = vpack.c.b16 %v290, %v287
  %v315 = vpack.c.b16 %v291, %v288
  %v316 = vpack.c.b16 %v292, %v289
  %341 = vmatprep.subr.bf16.mxu0 %v294
  %342 = vmatpush1.bf16.msra.mxu0 %v293
  %343 = vmatprep.subr.bf16.mxu0 %v297
  %344 = vmatpush1.bf16.msra.mxu0 %v296
  %345 = vmatprep.subr.bf16.mxu0 %v300
  %346 = vmatpush1.bf16.msra.mxu0 %v299
  %347 = vmatprep.subr.bf16.mxu0 %v303
  %348 = vmatpush1.bf16.msra.mxu0 %v302
  %349 = vmatprep.subr.bf16.mxu0 %v306
  %350 = vmatpush1.bf16.msra.mxu0 %v305
  %351 = vmatprep.subr.bf16.mxu0 %v309
  %352 = vmatpush1.bf16.msra.mxu0 %v308
  %353 = vmatprep.subr.bf16.mxu0 %v312
  %354 = vmatpush1.bf16.msra.mxu0 %v311
  %355 = vmatprep.subr.bf16.mxu0 %v315
  %356 = vmatpush1.bf16.msra.mxu0 %v314
  %357 = vmatprep.subr.bf16.mxu0 0
  %358 = vmatpush1.bf16.msra.mxu0 0
  %359 = vmatprep.subr.bf16.mxu0 0
  %360 = vmatpush1.bf16.msra.mxu0 0
  %361 = vmatprep.subr.bf16.mxu0 0
  %362 = vmatpush1.bf16.msra.mxu0 0
  %363 = vmatprep.subr.bf16.mxu0 0
  %364 = vmatpush1.bf16.msra.mxu0 0
  %365 = vmatprep.subr.bf16.mxu0 0
  %366 = vmatpush1.bf16.msra.mxu0 0
  %367 = vmatprep.subr.bf16.mxu0 0
  %368 = vmatpush1.bf16.msra.mxu0 0
  %369 = vmatprep.subr.bf16.mxu0 0
  %370 = vmatpush1.bf16.msra.mxu0 0
  %371 = vmatprep.subr.bf16.mxu0 0
  %372 = vmatpush1.bf16.msra.mxu0 0
  %373 = vmatprep.mubr.bf16.mxu0 0
  %374 = vmatmul.mubr.bf16.gmra.mrb[0].mxu0 %v160
  %v375 = vpop.f32.mrb[0].mxu0
  %v376 = vadd.f32 %v201, %v375
  %v377 = vpop.f32.mrb[0].mxu0
  %v378 = vadd.f32 %v205, %v377
  %v379 = vpop.f32.mrb[0].mxu0
  %v380 = vadd.f32 %v201, %v379
  %v381 = vpop.f32.mrb[0].mxu0
  %v382 = vadd.f32 %v205, %v381
  %383 = vmatprep.mubr.bf16.mxu0 0
  %384 = vmatmul.mubr.bf16.gmra.mrb[0].mxu0 %v161
  %v385 = vpop.f32.mrb[0].mxu0
  %v386 = vadd.f32 %v201, %v385
  %v387 = vpop.f32.mrb[0].mxu0
  %v388 = vadd.f32 %v205, %v387
  %v389 = vpop.f32.mrb[0].mxu0
  %v390 = vadd.f32 %v201, %v389
  %v391 = vpop.f32.mrb[0].mxu0
  %v392 = vadd.f32 %v205, %v391
  %393 = vmatprep.mubr.bf16.mxu0 0
  %394 = vmatmul.mubr.bf16.gmra.mrb[0].mxu0 %v162
  %v395 = vpop.f32.mrb[0].mxu0
  %v396 = vadd.f32 %v201, %v395
  %v397 = vpop.f32.mrb[0].mxu0
  %v398 = vadd.f32 %v205, %v397
  %v399 = vpop.f32.mrb[0].mxu0
  %v400 = vadd.f32 %v201, %v399
  %v401 = vpop.f32.mrb[0].mxu0
  %v402 = vadd.f32 %v205, %v401
  %403 = vmatprep.mubr.bf16.mxu0 0
  %404 = vmatmul.mubr.bf16.gmra.mrb[0].mxu0 %v163
  %v405 = vpop.f32.mrb[0].mxu0
  %v406 = vadd.f32 %v201, %v405
  %v407 = vpop.f32.mrb[0].mxu0
  %v408 = vadd.f32 %v205, %v407
  %v409 = vpop.f32.mrb[0].mxu0
  %v410 = vadd.f32 %v201, %v409
  %v411 = vpop.f32.mrb[0].mxu0
  %v412 = vadd.f32 %v205, %v411
  %413 = vdwg.mxu0
  %414 = vmatprep.subr.bf16.mxu0 0
  %415 = vmatpush1.bf16.msra.mxu0 %v295
  %416 = vmatprep.subr.bf16.mxu0 0
  %417 = vmatpush1.bf16.msra.mxu0 %v298
  %418 = vmatprep.subr.bf16.mxu0 0
  %419 = vmatpush1.bf16.msra.mxu0 %v301
  %420 = vmatprep.subr.bf16.mxu0 0
  %421 = vmatpush1.bf16.msra.mxu0 %v304
  %422 = vmatprep.subr.bf16.mxu0 0
  %423 = vmatpush1.bf16.msra.mxu0 %v307
  %424 = vmatprep.subr.bf16.mxu0 0
  %425 = vmatpush1.bf16.msra.mxu0 %v310
  %426 = vmatprep.subr.bf16.mxu0 0
  %427 = vmatpush1.bf16.msra.mxu0 %v313
  %428 = vmatprep.subr.bf16.mxu0 0
  %429 = vmatpush1.bf16.msra.mxu0 %v316
  %430 = vmatprep.subr.bf16.mxu0 0
  %431 = vmatpush1.bf16.msra.mxu0 0
  %432 = vmatprep.subr.bf16.mxu0 0
  %433 = vmatpush1.bf16.msra.mxu0 0
  %434 = vmatprep.subr.bf16.mxu0 0
  %435 = vmatpush1.bf16.msra.mxu0 0
  %436 = vmatprep.subr.bf16.mxu0 0
  %437 = vmatpush1.bf16.msra.mxu0 0
  %438 = vmatprep.subr.bf16.mxu0 0
  %439 = vmatpush1.bf16.msra.mxu0 0
  %440 = vmatprep.subr.bf16.mxu0 0
  %441 = vmatpush1.bf16.msra.mxu0 0
  %442 = vmatprep.subr.bf16.mxu0 0
  %443 = vmatpush1.bf16.msra.mxu0 0
  %444 = vmatprep.subr.bf16.mxu0 0
  %445 = vmatpush1.bf16.msra.mxu0 0
  %446 = vmatprep.mubr.bf16.mxu0 0
  %447 = vmatmul.mubr.bf16.gmra.mrb[0].mxu0 %v160
  %v448 = vpop.f32.mrb[0].mxu0
  %v449 = vadd.f32 %v209, %v448
  %v450 = vpop.f32.mrb[0].mxu0
  %v451 = vpop.f32.mrb[0].mxu0
  %v452 = vadd.f32 %v209, %v451
  %v453 = vpop.f32.mrb[0].mxu0
  %454 = vmatprep.mubr.bf16.mxu0 0
  %455 = vmatmul.mubr.bf16.gmra.mrb[0].mxu0 %v161
  %v456 = vpop.f32.mrb[0].mxu0
  %v457 = vadd.f32 %v209, %v456
  %v458 = vpop.f32.mrb[0].mxu0
  %v459 = vpop.f32.mrb[0].mxu0
  %v460 = vadd.f32 %v209, %v459
  %v461 = vpop.f32.mrb[0].mxu0
  %462 = vmatprep.mubr.bf16.mxu0 0
  %463 = vmatmul.mubr.bf16.gmra.mrb[0].mxu0 %v162
  %v464 = vpop.f32.mrb[0].mxu0
  %v465 = vadd.f32 %v209, %v464
  %v466 = vpop.f32.mrb[0].mxu0
  %v467 = vpop.f32.mrb[0].mxu0
  %v468 = vadd.f32 %v209, %v467
  %v469 = vpop.f32.mrb[0].mxu0
  %470 = vmatprep.mubr.bf16.mxu0 0
  %471 = vmatmul.mubr.bf16.gmra.mrb[0].mxu0 %v163
  %v472 = vpop.f32.mrb[0].mxu0
  %v473 = vadd.f32 %v209, %v472
  %v474 = vpop.f32.mrb[0].mxu0
  %v475 = vpop.f32.mrb[0].mxu0
  %v476 = vadd.f32 %v209, %v475
  %v477 = vpop.f32.mrb[0].mxu0
  %478 = vdwg.mxu0
  %v479 = vpack.c.bf16 %v380, %v376
  %v480 = vpack.c.bf16 %v382, %v378
  %v481 = vpack.c.bf16 %v452, %v449
  %v482 = vpack.c.bf16 %v390, %v386
  %v483 = vpack.c.bf16 %v392, %v388
  %v484 = vpack.c.bf16 %v460, %v457
  %v485 = vpack.c.bf16 %v400, %v396
  %v486 = vpack.c.bf16 %v402, %v398
  %v487 = vpack.c.bf16 %v468, %v465
  %v488 = vpack.c.bf16 %v410, %v406
  %v489 = vpack.c.bf16 %v412, %v408
  %v490 = vpack.c.bf16 %v476, %v473
  %v503 = vunpack.c.l.b16 %v479
  %v504 = vunpack.c.l.b16 %v480
  %v505 = vunpack.c.l.b16 %v481
  %v506 = vunpack.c.h.b16 %v479
  %v507 = vunpack.c.h.b16 %v480
  %v508 = vunpack.c.h.b16 %v481
  %v509 = vunpack.c.l.b16 %v482
  %v510 = vunpack.c.l.b16 %v483
  %v511 = vunpack.c.l.b16 %v484
  %v512 = vunpack.c.h.b16 %v482
  %v513 = vunpack.c.h.b16 %v483
  %v514 = vunpack.c.h.b16 %v484
  %v515 = vunpack.c.l.b16 %v485
  %v516 = vunpack.c.l.b16 %v486
  %v517 = vunpack.c.l.b16 %v487
  %v518 = vunpack.c.h.b16 %v485
  %v519 = vunpack.c.h.b16 %v486
  %v520 = vunpack.c.h.b16 %v487
  %v521 = vunpack.c.l.b16 %v488
  %v522 = vunpack.c.l.b16 %v489
  %v523 = vunpack.c.l.b16 %v490
  %v524 = vunpack.c.h.b16 %v488
  %v525 = vunpack.c.h.b16 %v489
  %v526 = vunpack.c.h.b16 %v490
  %v527 = vpack.c.b16 %v504, %v503
  %v528 = vpack.c.b16 %v505, %v505
  %v529 = vpack.c.b16 %v507, %v506
  %v530 = vpack.c.b16 %v508, %v508
  %v531 = vpack.c.b16 %v510, %v509
  %v532 = vpack.c.b16 %v511, %v511
  %v533 = vpack.c.b16 %v513, %v512
  %v534 = vpack.c.b16 %v514, %v514
  %v535 = vpack.c.b16 %v516, %v515
  %v536 = vpack.c.b16 %v517, %v517
  %v537 = vpack.c.b16 %v519, %v518
  %v538 = vpack.c.b16 %v520, %v520
  %v539 = vpack.c.b16 %v522, %v521
  %v540 = vpack.c.b16 %v523, %v523
  %v541 = vpack.c.b16 %v525, %v524
  %v542 = vpack.c.b16 %v526, %v526
  %559 = vst [vmem:[%s5] sm:$0xff] %v527
  %560 = vst [vmem:[%s5 + $0x8] sm:$0xf] %v528
  %561 = vst [vmem:[%s5 + $0xc] sm:$0xff] %v529
  %562 = vst [vmem:[%s5 + $0x14] sm:$0xf] %v530
  %563 = vst [vmem:[%s5 + $0x18] sm:$0xff] %v531
  %564 = vst [vmem:[%s5 + $0x20] sm:$0xf] %v532
  %565 = vst [vmem:[%s5 + $0x24] sm:$0xff] %v533
  %566 = vst [vmem:[%s5 + $0x2c] sm:$0xf] %v534
  %567 = vst [vmem:[%s5 + $0x30] sm:$0xff] %v535
  %568 = vst [vmem:[%s5 + $0x38] sm:$0xf] %v536
  %569 = vst [vmem:[%s5 + $0x3c] sm:$0xff] %v537
  %570 = vst [vmem:[%s5 + $0x44] sm:$0xf] %v538
  %571 = vst [vmem:[%s5 + $0x48] sm:$0xff] %v539
  %572 = vst [vmem:[%s5 + $0x50] sm:$0xf] %v540
  %573 = vst [vmem:[%s5 + $0x54] sm:$0xff] %v541
  %574 = vst [vmem:[%s5 + $0x5c] sm:$0xf] %v542
  // Predicated region
  $region26: #{vit_forward.13} parent=0 // pred_check
    _
  $region27: #{vit_forward.13} parent=0 // pred_check_branch
    %576 = sbr.rel (0) target = $region29
  $region28: #{vit_forward.13} parent=0 // pred_region
    _
  $region29: #{vit_forward.13} parent=0 // pred_fallthru
    _
  // Predicated region
  $region30: #{vit_forward.13} parent=0 // pred_check
    _
  $region31: #{vit_forward.13} parent=0 // pred_check_branch
    %578 = sbr.rel (0) target = $region33
  $region32: #{vit_forward.13} parent=0 // pred_region
    _
  $region33: #{vit_forward.13} parent=0 // pred_fallthru
    _

// kernel: vit_forward.14
$region0: #{vit_forward.14}
  #allocation0 [shape = 'u32[]', space=smem, size = 0x4, offset = 0x4, fixed_abs, tag = 'smem constant byte address 0x4 - core index']
  #allocation1 [shape = 'u32[144,128]{1,0:T(1,128)}', space=vmem, size = 0x12000, scoped, tag = 'internal scratch']
  %s0 = inlined_call_operand.vmem [shape: bf16[2,32,384], index: 0, kind: input, shape index: {}, may-alias: {0,1,2}]
  %s1 = inlined_call_operand.vmem [shape: bf16[2,32,384], index: 1, kind: input, shape index: {}, may-alias: {0,1,2}]
  %s2 = inlined_call_operand.vmem [shape: bf16[2,32,384], index: 2, kind: input, shape index: {}, may-alias: {0,1,2}]
  %s3 = inlined_call_operand.vmem [shape: bf16[2,32,128], index: 3, kind: output, shape index: {}]
  %s4 = sld [smem:[#allocation0]]
  $region168: #{vit_forward.14} parent=0
    _
  %s6 = ssub.s32 1, %s4
  %s7 = scalar_select 0, %s6, %s4
  $region1: #{vit_forward.14} parent=0
    #allocation2 [shape = 'u8[16384]{0}', space=vmem, size = 0x4000, scoped, tag = 'input window, operand 0']
    #allocation3 [shape = 'u8[16384]{0}', space=vmem, size = 0x4000, scoped, tag = 'input window, operand 1']
    #allocation4 [shape = 'u8[16384]{0}', space=vmem, size = 0x4000, scoped, tag = 'input window, operand 2']
    loop: start=0, step=1, limit=4
    $region2: #{vit_forward.14} parent=1 // loop_pre_header
      _
    $region3: #{vit_forward.14} parent=1 // loop_header
      %s9 = sphi 0, %s13
      %p10 = scmp.ge.s32.totalorder %s9, 4
      %s16 = sphi 0, %s28
      %s17 = sphi 0, %s24
      %s18 = sphi 0, %s16
      %s19 = sphi 0, %s17
      %s20 = sphi 0, %s18
      %s21 = sphi 0, %s19
      %s33 = sphi 0, %s35
      %s36 = sphi 0, %s33
      %s37 = sphi 0, %s36
      %s53 = sphi 0, %s37
      %s63 = sphi 0, %s65
      %s66 = sphi 0, %s63
      %s67 = sphi 0, %s66
      %s83 = sphi 0, %s67
      %s93 = sphi 0, %s95
      %s96 = sphi 0, %s93
      %s97 = sphi 0, %s96
      %s113 = sphi 0, %s97
      %s121 = sphi 0, %s123
      %s124 = sphi 0, %s121
      %s125 = sphi 0, %s124
      %s141 = sphi 0, %s125
    $region4: #{vit_forward.14} parent=1 // loop_header_branch
      %12 = sbr.rel (%p10) target = $region8
    $region5: #{vit_forward.14} parent=1 // loop_body
      %s14 = ssub.s32 %s9, 1
      %s15 = ssub.s32 %s9, 2
      %s22 = sadd.s32 1, %s17
      %p23 = scmp.ge.s32.totalorder %s22, 1
      %s24 = scalar_select %p23, 0, %s22
      %s25 = sadd.s32 1, %s16
      %s26 = scalar_select %p23, %s25, %s16
      %p27 = scmp.ge.s32.totalorder %s26, 2
      %s28 = scalar_select %p27, 0, %s26
      %s29 = ssub.s32 %s16, %s28
      %s30 = ssub.s32 %s17, %s24
      %s31 = sor.u32 %s29, %s30
      %p32 = scmp.eq.s32.totalorder %s31, 0
      %s34 = sadd.s32 %s33, 1
      %s35 = scalar_select %p32, %s33, %s34
      %p38 = pneg %p32
      %p39 = scmp.eq.s32.totalorder %s9, 1
      %p40 = por %p38, %p39
      %p41 = scmp.ne.s32.totalorder %s33, %s36
      %p42 = scmp.eq.s32.totalorder %s9, 0
      %p43 = por %p41, %p42
      %p44 = scmp.ne.s32.totalorder %s33, %s36
      %p45 = scmp.eq.s32.totalorder %s14, 1
      %p46 = por %p44, %p45
      %p47 = scmp.ne.s32.totalorder %s36, %s37
      %p48 = scmp.eq.s32.totalorder %s14, 0
      %p49 = por %p47, %p48
      %p50 = scmp.ne.s32.totalorder %s36, %s37
      %p51 = scmp.eq.s32.totalorder %s15, 1
      %p52 = por %p50, %p51
      %p54 = scmp.ne.s32.totalorder %s37, %s53
      %p55 = scmp.eq.s32.totalorder %s15, 0
      %p56 = por %p54, %p55
      %s57 = sadd.s32 %s17, 1
      %s58 = sadd.s32 %s24, 1
      %s59 = ssub.s32 %s16, %s28
      %s60 = ssub.s32 %s57, %s58
      %s61 = sor.u32 %s59, %s60
      %p62 = scmp.eq.s32.totalorder %s61, 0
      %s64 = sadd.s32 %s63, 1
      %s65 = scalar_select %p62, %s63, %s64
      %p68 = pneg %p62
      %p69 = scmp.eq.s32.totalorder %s9, 1
      %p70 = por %p68, %p69
      %p71 = scmp.ne.s32.totalorder %s63, %s66
      %p72 = scmp.eq.s32.totalorder %s9, 0
      %p73 = por %p71, %p72
      %p74 = scmp.ne.s32.totalorder %s63, %s66
      %p75 = scmp.eq.s32.totalorder %s14, 1
      %p76 = por %p74, %p75
      %p77 = scmp.ne.s32.totalorder %s66, %s67
      %p78 = scmp.eq.s32.totalorder %s14, 0
      %p79 = por %p77, %p78
      %p80 = scmp.ne.s32.totalorder %s66, %s67
      %p81 = scmp.eq.s32.totalorder %s15, 1
      %p82 = por %p80, %p81
      %p84 = scmp.ne.s32.totalorder %s67, %s83
      %p85 = scmp.eq.s32.totalorder %s15, 0
      %p86 = por %p84, %p85
      %s87 = sadd.s32 %s17, 2
      %s88 = sadd.s32 %s24, 2
      %s89 = ssub.s32 %s16, %s28
      %s90 = ssub.s32 %s87, %s88
      %s91 = sor.u32 %s89, %s90
      %p92 = scmp.eq.s32.totalorder %s91, 0
      %s94 = sadd.s32 %s93, 1
      %s95 = scalar_select %p92, %s93, %s94
      %p98 = pneg %p92
      %p99 = scmp.eq.s32.totalorder %s9, 1
      %p100 = por %p98, %p99
      %p101 = scmp.ne.s32.totalorder %s93, %s96
      %p102 = scmp.eq.s32.totalorder %s9, 0
      %p103 = por %p101, %p102
      %p104 = scmp.ne.s32.totalorder %s93, %s96
      %p105 = scmp.eq.s32.totalorder %s14, 1
      %p106 = por %p104, %p105
      %p107 = scmp.ne.s32.totalorder %s96, %s97
      %p108 = scmp.eq.s32.totalorder %s14, 0
      %p109 = por %p107, %p108
      %p110 = scmp.ne.s32.totalorder %s96, %s97
      %p111 = scmp.eq.s32.totalorder %s15, 1
      %p112 = por %p110, %p111
      %p114 = scmp.ne.s32.totalorder %s97, %s113
      %p115 = scmp.eq.s32.totalorder %s15, 0
      %p116 = por %p114, %p115
      %s117 = ssub.s32 %s16, %s28
      %s118 = ssub.s32 %s17, %s24
      %s119 = sor.u32 %s117, %s118
      %p120 = scmp.eq.s32.totalorder %s119, 0
      %s122 = sadd.s32 %s121, 1
      %s123 = scalar_select %p120, %s121, %s122
      %p126 = pneg %p120
      %p127 = scmp.eq.s32.totalorder %s9, 1
      %p128 = por %p126, %p127
      %p129 = scmp.ne.s32.totalorder %s121, %s124
      %p130 = scmp.eq.s32.totalorder %s9, 0
      %p131 = por %p129, %p130
      %p132 = scmp.ne.s32.totalorder %s121, %s124
      %p133 = scmp.eq.s32.totalorder %s14, 1
      %p134 = por %p132, %p133
      %p135 = scmp.ne.s32.totalorder %s124, %s125
      %p136 = scmp.eq.s32.totalorder %s14, 0
      %p137 = por %p135, %p136
      %p138 = scmp.ne.s32.totalorder %s124, %s125
      %p139 = scmp.eq.s32.totalorder %s15, 1
      %p140 = por %p138, %p139
      %p142 = scmp.ne.s32.totalorder %s125, %s141
      %p143 = scmp.eq.s32.totalorder %s15, 0
      %p144 = por %p142, %p143
      %p145 = scmp.le.s32.totalorder 1, %s9
      %p146 = scmp.lt.s32.totalorder %s9, 3
      %p147 = pnand %p145, %p146
      %p148 = pneg %p147
      // Predicated region
      $region9: #{vit_forward.14} parent=5 // pred_check
        _
      $region10: #{vit_forward.14} parent=5 // pred_check_branch
        %150 = sbr.rel (%p147) target = $region12
      $region11: #{vit_forward.14} parent=5 // pred_region
        %s151 = ssub.s32 %s9, 1
      $region12: #{vit_forward.14} parent=5 // pred_fallthru
        _
      %p152 = scmp.lt.s32.totalorder %s9, 2
      // Predicated region
      $region13: #{vit_forward.14} parent=5 // pred_check
        %p153 = pneg %p152
      $region14: #{vit_forward.14} parent=5 // pred_check_branch
        %155 = sbr.rel (%p153) target = $region16
      $region15: #{vit_forward.14} parent=5 // pred_region
        // Predicated region
        $region17: #{vit_forward.14} parent=15 // pred_check
          %p156 = pneg %p43
        $region18: #{vit_forward.14} parent=15 // pred_check_branch
          %158 = sbr.rel (%p156) target = $region20
        $region19: #{vit_forward.14} parent=15 // pred_region
          %s159 = sand.u32 %s33, 1
          %s160 = sand.u32 %s33, 1
          %s161 = smul.addr %s160, 16
          %s162 = scalar_lea.vmem [#allocation2], %s161
          %s163 = smul.addr %s16, 12
          %s164 = sadd.s32 %s17, %s163
          %s165 = smul.addr %s164, 4
          %s166 = scalar_lea.vmem %s0, %s165
          // Predicated region
          $region21: #{vit_forward.14} parent=19 // pred_check
            _
          $region22: #{vit_forward.14} parent=19 // pred_check_branch
            %168 = sbr.rel (0) target = $region24
          $region23: #{vit_forward.14} parent=19 // pred_region
            // Predicated region
            $region25: #{vit_forward.14} parent=23 // pred_check
              _
            $region26: #{vit_forward.14} parent=23 // pred_check_branch
              %170 = sbr.rel target = $region28
            $region27: #{vit_forward.14} parent=23 // pred_region
              // Predicated region
              $region40: #{vit_forward.14} parent=27 // pred_check
                _
              $region41: #{vit_forward.14} parent=27 // pred_check_branch
                %191 = sbr.rel (0) target = $region43
              $region42: #{vit_forward.14} parent=27 // pred_region
                loop: start=0, step=1, limit=1
                $region44: #{vit_forward.14} parent=42 // loop_pre_header
                  _
                $region45: #{vit_forward.14} parent=42 // loop_header
                  %s193 = sphi 0, %s197
                  %p194 = scmp.ge.s32.totalorder %s193, 1
                  %s198 = sphi %s166, %s166
                  %s199 = sphi %s162, %s162
                $region46: #{vit_forward.14} parent=42 // loop_header_branch
                  %196 = sbr.rel (%p194) target = $region50
                $region47: #{vit_forward.14} parent=42 // loop_body
                  _
                $region48: #{vit_forward.14} parent=42 // loop_footer
                  %s197 = sadd.s32 1, %s193
                $region49: #{vit_forward.14} parent=42 // loop_footer_branch
                  %192 = sbr.rel target = $region45
                $region50: #{vit_forward.14} parent=42 // loop_exit
                  _
                loop: start=0, step=1, limit=1
                $region51: #{vit_forward.14} parent=42 // loop_pre_header
                  _
                $region52: #{vit_forward.14} parent=42 // loop_header
                  %s202 = sphi 0, %s206
                  %p203 = scmp.ge.s32.totalorder %s202, 1
                  %s207 = sphi %s166, %s166
                  %s208 = sphi %s162, %s162
                $region53: #{vit_forward.14} parent=42 // loop_header_branch
                  %205 = sbr.rel (%p203) target = $region57
                $region54: #{vit_forward.14} parent=42 // loop_body
                  %v209 = vld [vmem:[%s207] sm:$0xf]
                  %210 = vst [vmem:[%s208] sm:$0xf] %v209
                  %v211 = vld [vmem:[%s207 + $0xc] sm:$0xf]
                  %212 = vst [vmem:[%s208 + $0x4] sm:$0xf] %v211
                  %v213 = vld [vmem:[%s207 + $0x18] sm:$0xf]
                  %214 = vst [vmem:[%s208 + $0x8] sm:$0xf] %v213
                  %v215 = vld [vmem:[%s207 + $0x24] sm:$0xf]
                  %216 = vst [vmem:[%s208 + $0xc] sm:$0xf] %v215
                $region55: #{vit_forward.14} parent=42 // loop_footer
                  %s206 = sadd.s32 1, %s202
                $region56: #{vit_forward.14} parent=42 // loop_footer_branch
                  %201 = sbr.rel target = $region52
                $region57: #{vit_forward.14} parent=42 // loop_exit
                  _
              $region43: #{vit_forward.14} parent=27 // pred_fallthru
                _
            $region28: #{vit_forward.14} parent=23 // pred_fallthru
              _
            // Predicated region
            $region29: #{vit_forward.14} parent=23 // pred_check
              _
            $region30: #{vit_forward.14} parent=23 // pred_check_branch
              %172 = sbr.rel (0) target = $region32
            $region31: #{vit_forward.14} parent=23 // pred_region
              loop: start=0, step=1, limit=1
              $region33: #{vit_forward.14} parent=31 // loop_pre_header
                _
              $region34: #{vit_forward.14} parent=31 // loop_header
                %s175 = sphi 0, %s179
                %p176 = scmp.ge.s32.totalorder %s175, 1
                %s180 = sphi %s166, %s166
                %s181 = sphi %s162, %s162
              $region35: #{vit_forward.14} parent=31 // loop_header_branch
                %178 = sbr.rel (%p176) target = $region39
              $region36: #{vit_forward.14} parent=31 // loop_body
                %v182 = vld [vmem:[%s180] sm:$0xf]
                %183 = vst [vmem:[%s181] sm:$0xf] %v182
                %v184 = vld [vmem:[%s180 + $0xc] sm:$0xf]
                %185 = vst [vmem:[%s181 + $0x4] sm:$0xf] %v184
                %v186 = vld [vmem:[%s180 + $0x18] sm:$0xf]
                %187 = vst [vmem:[%s181 + $0x8] sm:$0xf] %v186
                %v188 = vld [vmem:[%s180 + $0x24] sm:$0xf]
                %189 = vst [vmem:[%s181 + $0xc] sm:$0xf] %v188
              $region37: #{vit_forward.14} parent=31 // loop_footer
                %s179 = sadd.s32 1, %s175
              $region38: #{vit_forward.14} parent=31 // loop_footer_branch
                %174 = sbr.rel target = $region34
              $region39: #{vit_forward.14} parent=31 // loop_exit
                _
            $region32: #{vit_forward.14} parent=23 // pred_fallthru
              _
          $region24: #{vit_forward.14} parent=19 // pred_fallthru
            _
          %217 = vnop
        $region20: #{vit_forward.14} parent=15 // pred_fallthru
          _
        // Predicated region
        $region58: #{vit_forward.14} parent=15 // pred_check
          %p218 = pneg %p73
        $region59: #{vit_forward.14} parent=15 // pred_check_branch
          %220 = sbr.rel (%p218) target = $region61
        $region60: #{vit_forward.14} parent=15 // pred_region
          %s221 = sand.u32 %s63, 1
          %s222 = sand.u32 %s63, 1
          %s223 = smul.addr %s222, 16
          %s224 = scalar_lea.vmem [#allocation3], %s223
          %s225 = sadd.s32 %s17, 1
          %s226 = smul.addr %s16, 12
          %s227 = sadd.s32 %s225, %s226
          %s228 = smul.addr %s227, 4
          %s229 = scalar_lea.vmem %s1, %s228
          // Predicated region
          $region62: #{vit_forward.14} parent=60 // pred_check
            _
          $region63: #{vit_forward.14} parent=60 // pred_check_branch
            %231 = sbr.rel (0) target = $region65
          $region64: #{vit_forward.14} parent=60 // pred_region
            // Predicated region
            $region66: #{vit_forward.14} parent=64 // pred_check
              _
            $region67: #{vit_forward.14} parent=64 // pred_check_branch
              %233 = sbr.rel target = $region69
            $region68: #{vit_forward.14} parent=64 // pred_region
              // Predicated region
              $region81: #{vit_forward.14} parent=68 // pred_check
                _
              $region82: #{vit_forward.14} parent=68 // pred_check_branch
                %254 = sbr.rel (0) target = $region84
              $region83: #{vit_forward.14} parent=68 // pred_region
                loop: start=0, step=1, limit=1
                $region85: #{vit_forward.14} parent=83 // loop_pre_header
                  _
                $region86: #{vit_forward.14} parent=83 // loop_header
                  %s256 = sphi 0, %s260
                  %p257 = scmp.ge.s32.totalorder %s256, 1
                  %s261 = sphi %s229, %s229
                  %s262 = sphi %s224, %s224
                $region87: #{vit_forward.14} parent=83 // loop_header_branch
                  %259 = sbr.rel (%p257) target = $region91
                $region88: #{vit_forward.14} parent=83 // loop_body
                  _
                $region89: #{vit_forward.14} parent=83 // loop_footer
                  %s260 = sadd.s32 1, %s256
                $region90: #{vit_forward.14} parent=83 // loop_footer_branch
                  %255 = sbr.rel target = $region86
                $region91: #{vit_forward.14} parent=83 // loop_exit
                  _
                loop: start=0, step=1, limit=1
                $region92: #{vit_forward.14} parent=83 // loop_pre_header
                  _
                $region93: #{vit_forward.14} parent=83 // loop_header
                  %s265 = sphi 0, %s269
                  %p266 = scmp.ge.s32.totalorder %s265, 1
                  %s270 = sphi %s229, %s229
                  %s271 = sphi %s224, %s224
                $region94: #{vit_forward.14} parent=83 // loop_header_branch
                  %268 = sbr.rel (%p266) target = $region98
                $region95: #{vit_forward.14} parent=83 // loop_body
                  %v272 = vld [vmem:[%s270] sm:$0xf]
                  %273 = vst [vmem:[%s271] sm:$0xf] %v272
                  %v274 = vld [vmem:[%s270 + $0xc] sm:$0xf]
                  %275 = vst [vmem:[%s271 + $0x4] sm:$0xf] %v274
                  %v276 = vld [vmem:[%s270 + $0x18] sm:$0xf]
                  %277 = vst [vmem:[%s271 + $0x8] sm:$0xf] %v276
                  %v278 = vld [vmem:[%s270 + $0x24] sm:$0xf]
                  %279 = vst [vmem:[%s271 + $0xc] sm:$0xf] %v278
                $region96: #{vit_forward.14} parent=83 // loop_footer
                  %s269 = sadd.s32 1, %s265
                $region97: #{vit_forward.14} parent=83 // loop_footer_branch
                  %264 = sbr.rel target = $region93
                $region98: #{vit_forward.14} parent=83 // loop_exit
                  _
              $region84: #{vit_forward.14} parent=68 // pred_fallthru
                _
            $region69: #{vit_forward.14} parent=64 // pred_fallthru
              _
            // Predicated region
            $region70: #{vit_forward.14} parent=64 // pred_check
              _
            $region71: #{vit_forward.14} parent=64 // pred_check_branch
              %235 = sbr.rel (0) target = $region73
            $region72: #{vit_forward.14} parent=64 // pred_region
              loop: start=0, step=1, limit=1
              $region74: #{vit_forward.14} parent=72 // loop_pre_header
                _
              $region75: #{vit_forward.14} parent=72 // loop_header
                %s238 = sphi 0, %s242
                %p239 = scmp.ge.s32.totalorder %s238, 1
                %s243 = sphi %s229, %s229
                %s244 = sphi %s224, %s224
              $region76: #{vit_forward.14} parent=72 // loop_header_branch
                %241 = sbr.rel (%p239) target = $region80
              $region77: #{vit_forward.14} parent=72 // loop_body
                %v245 = vld [vmem:[%s243] sm:$0xf]
                %246 = vst [vmem:[%s244] sm:$0xf] %v245
                %v247 = vld [vmem:[%s243 + $0xc] sm:$0xf]
                %248 = vst [vmem:[%s244 + $0x4] sm:$0xf] %v247
                %v249 = vld [vmem:[%s243 + $0x18] sm:$0xf]
                %250 = vst [vmem:[%s244 + $0x8] sm:$0xf] %v249
                %v251 = vld [vmem:[%s243 + $0x24] sm:$0xf]
                %252 = vst [vmem:[%s244 + $0xc] sm:$0xf] %v251
              $region78: #{vit_forward.14} parent=72 // loop_footer
                %s242 = sadd.s32 1, %s238
              $region79: #{vit_forward.14} parent=72 // loop_footer_branch
                %237 = sbr.rel target = $region75
              $region80: #{vit_forward.14} parent=72 // loop_exit
                _
            $region73: #{vit_forward.14} parent=64 // pred_fallthru
              _
          $region65: #{vit_forward.14} parent=60 // pred_fallthru
            _
          %280 = vnop
        $region61: #{vit_forward.14} parent=15 // pred_fallthru
          _
        // Predicated region
        $region99: #{vit_forward.14} parent=15 // pred_check
          %p281 = pneg %p103
        $region100: #{vit_forward.14} parent=15 // pred_check_branch
          %283 = sbr.rel (%p281) target = $region102
        $region101: #{vit_forward.14} parent=15 // pred_region
          %s284 = sand.u32 %s93, 1
          %s285 = sand.u32 %s93, 1
          %s286 = smul.addr %s285, 16
          %s287 = scalar_lea.vmem [#allocation4], %s286
          %s288 = sadd.s32 %s17, 2
          %s289 = smul.addr %s16, 12
          %s290 = sadd.s32 %s288, %s289
          %s291 = smul.addr %s290, 4
          %s292 = scalar_lea.vmem %s2, %s291
          // Predicated region
          $region103: #{vit_forward.14} parent=101 // pred_check
            _
          $region104: #{vit_forward.14} parent=101 // pred_check_branch
            %294 = sbr.rel (0) target = $region106
          $region105: #{vit_forward.14} parent=101 // pred_region
            // Predicated region
            $region107: #{vit_forward.14} parent=105 // pred_check
              _
            $region108: #{vit_forward.14} parent=105 // pred_check_branch
              %296 = sbr.rel target = $region110
            $region109: #{vit_forward.14} parent=105 // pred_region
              // Predicated region
              $region122: #{vit_forward.14} parent=109 // pred_check
                _
              $region123: #{vit_forward.14} parent=109 // pred_check_branch
                %317 = sbr.rel (0) target = $region125
              $region124: #{vit_forward.14} parent=109 // pred_region
                loop: start=0, step=1, limit=1
                $region126: #{vit_forward.14} parent=124 // loop_pre_header
                  _
                $region127: #{vit_forward.14} parent=124 // loop_header
                  %s319 = sphi 0, %s323
                  %p320 = scmp.ge.s32.totalorder %s319, 1
                  %s324 = sphi %s292, %s292
                  %s325 = sphi %s287, %s287
                $region128: #{vit_forward.14} parent=124 // loop_header_branch
                  %322 = sbr.rel (%p320) target = $region132
                $region129: #{vit_forward.14} parent=124 // loop_body
                  _
                $region130: #{vit_forward.14} parent=124 // loop_footer
                  %s323 = sadd.s32 1, %s319
                $region131: #{vit_forward.14} parent=124 // loop_footer_branch
                  %318 = sbr.rel target = $region127
                $region132: #{vit_forward.14} parent=124 // loop_exit
                  _
                loop: start=0, step=1, limit=1
                $region133: #{vit_forward.14} parent=124 // loop_pre_header
                  _
                $region134: #{vit_forward.14} parent=124 // loop_header
                  %s328 = sphi 0, %s332
                  %p329 = scmp.ge.s32.totalorder %s328, 1
                  %s333 = sphi %s292, %s292
                  %s334 = sphi %s287, %s287
                $region135: #{vit_forward.14} parent=124 // loop_header_branch
                  %331 = sbr.rel (%p329) target = $region139
                $region136: #{vit_forward.14} parent=124 // loop_body
                  %v335 = vld [vmem:[%s333] sm:$0xf]
                  %336 = vst [vmem:[%s334] sm:$0xf] %v335
                  %v337 = vld [vmem:[%s333 + $0xc] sm:$0xf]
                  %338 = vst [vmem:[%s334 + $0x4] sm:$0xf] %v337
                  %v339 = vld [vmem:[%s333 + $0x18] sm:$0xf]
                  %340 = vst [vmem:[%s334 + $0x8] sm:$0xf] %v339
                  %v341 = vld [vmem:[%s333 + $0x24] sm:$0xf]
                  %342 = vst [vmem:[%s334 + $0xc] sm:$0xf] %v341
                $region137: #{vit_forward.14} parent=124 // loop_footer
                  %s332 = sadd.s32 1, %s328
                $region138: #{vit_forward.14} parent=124 // loop_footer_branch
                  %327 = sbr.rel target = $region134
                $region139: #{vit_forward.14} parent=124 // loop_exit
                  _
              $region125: #{vit_forward.14} parent=109 // pred_fallthru
                _
            $region110: #{vit_forward.14} parent=105 // pred_fallthru
              _
            // Predicated region
            $region111: #{vit_forward.14} parent=105 // pred_check
              _
            $region112: #{vit_forward.14} parent=105 // pred_check_branch
              %298 = sbr.rel (0) target = $region114
            $region113: #{vit_forward.14} parent=105 // pred_region
              loop: start=0, step=1, limit=1
              $region115: #{vit_forward.14} parent=113 // loop_pre_header
                _
              $region116: #{vit_forward.14} parent=113 // loop_header
                %s301 = sphi 0, %s305
                %p302 = scmp.ge.s32.totalorder %s301, 1
                %s306 = sphi %s292, %s292
                %s307 = sphi %s287, %s287
              $region117: #{vit_forward.14} parent=113 // loop_header_branch
                %304 = sbr.rel (%p302) target = $region121
              $region118: #{vit_forward.14} parent=113 // loop_body
                %v308 = vld [vmem:[%s306] sm:$0xf]
                %309 = vst [vmem:[%s307] sm:$0xf] %v308
                %v310 = vld [vmem:[%s306 + $0xc] sm:$0xf]
                %311 = vst [vmem:[%s307 + $0x4] sm:$0xf] %v310
                %v312 = vld [vmem:[%s306 + $0x18] sm:$0xf]
                %313 = vst [vmem:[%s307 + $0x8] sm:$0xf] %v312
                %v314 = vld [vmem:[%s306 + $0x24] sm:$0xf]
                %315 = vst [vmem:[%s307 + $0xc] sm:$0xf] %v314
              $region119: #{vit_forward.14} parent=113 // loop_footer
                %s305 = sadd.s32 1, %s301
              $region120: #{vit_forward.14} parent=113 // loop_footer_branch
                %300 = sbr.rel target = $region116
              $region121: #{vit_forward.14} parent=113 // loop_exit
                _
            $region114: #{vit_forward.14} parent=105 // pred_fallthru
              _
          $region106: #{vit_forward.14} parent=101 // pred_fallthru
            _
          %343 = vnop
        $region102: #{vit_forward.14} parent=15 // pred_fallthru
          _
      $region16: #{vit_forward.14} parent=5 // pred_fallthru
        _
      %p344 = scmp.le.s32.totalorder 1, %s9
      %p345 = scmp.lt.s32.totalorder %s9, 3
      %p346 = pnand %p344, %p345
      %p347 = pneg %p346
      // Predicated region
      $region140: #{vit_forward.14} parent=5 // pred_check
        _
      $region141: #{vit_forward.14} parent=5 // pred_check_branch
        %349 = sbr.rel (%p346) target = $region143
      $region142: #{vit_forward.14} parent=5 // pred_region
        %s350 = ssub.s32 %s9, 1
        %s351 = sand.u32 %s36, 1
        %s352 = sand.u32 %s36, 1
        %s353 = smul.addr %s352, 16
        %s354 = scalar_lea.vmem [#allocation2], %s353
        // Predicated region
        $region144: #{vit_forward.14} parent=142 // pred_check
          %p355 = pneg %p49
        $region145: #{vit_forward.14} parent=142 // pred_check_branch
          %357 = sbr.rel (%p355) target = $region147
        $region146: #{vit_forward.14} parent=142 // pred_region
          _
        $region147: #{vit_forward.14} parent=142 // pred_fallthru
          _
        %s358 = sand.u32 %s66, 1
        %s359 = sand.u32 %s66, 1
        %s360 = smul.addr %s359, 16
        %s361 = scalar_lea.vmem [#allocation3], %s360
        // Predicated region
        $region148: #{vit_forward.14} parent=142 // pred_check
          %p362 = pneg %p79
        $region149: #{vit_forward.14} parent=142 // pred_check_branch
          %364 = sbr.rel (%p362) target = $region151
        $region150: #{vit_forward.14} parent=142 // pred_region
          _
        $region151: #{vit_forward.14} parent=142 // pred_fallthru
          _
        %s365 = sand.u32 %s96, 1
        %s366 = sand.u32 %s96, 1
        %s367 = smul.addr %s366, 16
        %s368 = scalar_lea.vmem [#allocation4], %s367
        // Predicated region
        $region152: #{vit_forward.14} parent=142 // pred_check
          %p369 = pneg %p109
        $region153: #{vit_forward.14} parent=142 // pred_check_branch
          %371 = sbr.rel (%p369) target = $region155
        $region154: #{vit_forward.14} parent=142 // pred_region
          _
        $region155: #{vit_forward.14} parent=142 // pred_fallthru
          _
        %s372 = sand.u32 %s36, 1
        %s373 = sand.u32 %s36, 1
        %s374 = smul.addr %s373, 16
        %s375 = scalar_lea.vmem [#allocation2], %s374
        %p376 = pneg %p49
        %p377 = pneg %p46
        %s378 = sand.u32 %s66, 1
        %s379 = sand.u32 %s66, 1
        %s380 = smul.addr %s379, 16
        %s381 = scalar_lea.vmem [#allocation3], %s380
        %p382 = pneg %p79
        %p383 = pneg %p76
        %s384 = sand.u32 %s96, 1
        %s385 = sand.u32 %s96, 1
        %s386 = smul.addr %s385, 16
        %s387 = scalar_lea.vmem [#allocation4], %s386
        %p388 = pneg %p109
        %p389 = pneg %p106
        %p390 = pneg %p137
        %p391 = pneg %p134
        %p392 = scmp.lt.s32.totalorder %s18, 1
        %s393 = scalar_select %p392, %s18, 1
        %p394 = scmp.lt.s32.totalorder %s19, 0
        %s395 = scalar_select %p394, %s19, 0
        %s396 = smul.addr %s393, 4
        %s397 = sadd.s32 %s395, %s396
        %s398 = smul.addr %s397, 4
        %s399 = scalar_lea.vmem %s3, %s398
        %s400 = sadd.s32 %s19, 1
        %s401 = sadd.s32 %s19, 2
        %p402 = scmp.lt.s32.totalorder %s18, 1
        %s403 = scalar_select %p402, %s18, 1
        %p404 = scmp.lt.s32.totalorder %s19, 0
        %s405 = scalar_select %p404, %s19, 0
        %s406 = smul.addr %s403, 4
        %s407 = sadd.s32 %s405, %s406
        %s408 = smul.addr %s407, 4
        %s409 = scalar_lea.vmem %s3, %s408
        %v411 = vld [vmem:[%s354] sm:$0xf]
        %v412 = vld [vmem:[%s354 + $0x4] sm:$0xf]
        %v413 = vld [vmem:[%s354 + $0x8] sm:$0xf]
        %v414 = vld [vmem:[%s354 + $0xc] sm:$0xf]
        %v415 = vld [vmem:[%s361] sm:$0xf]
        %v416 = vld [vmem:[%s361 + $0x4] sm:$0xf]
        %v417 = vld [vmem:[%s361 + $0x8] sm:$0xf]
        %v418 = vld [vmem:[%s361 + $0xc] sm:$0xf]
        %v419 = vld [vmem:[%s368] sm:$0xf]
        %v420 = vld [vmem:[%s368 + $0x4] sm:$0xf]
        %v421 = vld [vmem:[%s368 + $0x8] sm:$0xf]
        %v422 = vld [vmem:[%s368 + $0xc] sm:$0xf]
        %v423 = vlaneseq
        %v424 = vand.u32 %v423, 127
        %vm425 = vcmp.lt.s32.totalorder %v424, 17
        %v430 = vunpack.c.l.b16 %v411
        %v431 = vunpack.c.l.b16 %v412
        %v432 = vunpack.c.l.b16 %v413
        %v433 = vunpack.c.l.b16 %v414
        %v434 = vpack.c.b16 %v431, %v430
        %v435 = vpack.c.b16 %v433, %v432
        %v440 = vunpack.c.l.b16 %v415
        %v441 = vunpack.c.l.b16 %v416
        %v442 = vunpack.c.l.b16 %v417
        %v443 = vunpack.c.l.b16 %v418
        %v444 = vpack.c.b16 %v441, %v440
        %v445 = vpack.c.b16 %v443, %v442
        %vm446 = vcmask 261120
        %v448 = vsel %vm446, %v434, 0
        %v451 = vsel %vm446, %v435, 0
        %v454 = vsel %vm446, %v444, 0
        %v457 = vsel %vm446, %v445, 0
        %459 = vmatprep.subr.bf16.mxu0 0
        %460 = vmatpush1.bf16.xpose.msra.mxu0 %v454
        %461 = vmatprep.subr.bf16.mxu0 0
        %462 = vmatpush1.bf16.xpose.msra.mxu0 %v457
        %463 = vmatprep.subr.bf16.mxu0 0
        %464 = vmatpush1.bf16.xpose.msra.mxu0 0
        %465 = vmatprep.subr.bf16.mxu0 0
        %466 = vmatpush1.bf16.xpose.msra.mxu0 0
        %467 = vmatprep.subr.bf16.mxu0 0
        %468 = vmatpush1.bf16.xpose.msra.mxu0 0
        %469 = vmatprep.subr.bf16.mxu0 0
        %470 = vmatpush1.bf16.xpose.msra.mxu0 0
        %471 = vmatprep.subr.bf16.mxu0 0
        %472 = vmatpush1.bf16.xpose.msra.mxu0 0
        %473 = vmatprep.subr.bf16.mxu0 0
        %474 = vmatpush1.bf16.xpose.msra.mxu0 0
        %475 = vmatprep.subr.bf16.mxu0 0
        %476 = vmatpush1.bf16.xpose.msra.mxu0 0
        %477 = vmatprep.subr.bf16.mxu0 0
        %478 = vmatpush1.bf16.xpose.msra.mxu0 0
        %479 = vmatprep.subr.bf16.mxu0 0
        %480 = vmatpush1.bf16.xpose.msra.mxu0 0
        %481 = vmatprep.subr.bf16.mxu0 0
        %482 = vmatpush1.bf16.xpose.msra.mxu0 0
        %483 = vmatprep.subr.bf16.mxu0 0
        %484 = vmatpush1.bf16.xpose.msra.mxu0 0
        %485 = vmatprep.subr.bf16.mxu0 0
        %486 = vmatpush1.bf16.xpose.msra.mxu0 0
        %487 = vmatprep.subr.bf16.mxu0 0
        %488 = vmatpush1.bf16.xpose.msra.mxu0 0
        %489 = vmatprep.subr.bf16.mxu0 0
        %490 = vmatpush1.bf16.xpose.msra.mxu0 0
        %491 = vmatprep.mubr.bf16.mxu0 0
        %492 = vmatmul.mubr.bf16.gmra.mrb[0].mxu0 %v448
        %v493 = vpop.f32.mrb[0].mxu0
        %v494 = vadd.f32 0.0, %v493
        %v495 = vpop.f32.mrb[0].mxu0
        %v496 = vpop.f32.mrb[0].mxu0
        %v497 = vadd.f32 0.0, %v496
        %v498 = vpop.f32.mrb[0].mxu0
        %499 = vmatprep.mubr.bf16.mxu0 0
        %500 = vmatmul.mubr.bf16.gmra.mrb[0].mxu0 %v451
        %v501 = vpop.f32.mrb[0].mxu0
        %v502 = vadd.f32 0.0, %v501
        %v503 = vpop.f32.mrb[0].mxu0
        %v504 = vpop.f32.mrb[0].mxu0
        %v505 = vadd.f32 0.0, %v504
        %v506 = vpop.f32.mrb[0].mxu0
        %507 = vdwg.mxu0
        %v508 = vsel %vm425, 1, 0
        %vm509 = vcmp.eq.s32.totalorder %v508, 1
        %v510 = vsel %vm509, %v494, -1e+30
        %v511 = vsel %vm509, %v497, -1e+30
        %v512 = vsel %vm509, %v502, -1e+30
        %v513 = vsel %vm509, %v505, -1e+30
        %v514 = vsel %vm446, %v510, -inf
        %515 = vmax.xlane.f32.xlu0 %v514
        %v516 = vpop.xlane.xlu0 %515
        %v517 = vsel %vm446, %v511, -inf
        %518 = vmax.xlane.f32.xlu0 %v517
        %v519 = vpop.xlane.xlu0 %518
        %v520 = vsel %vm446, %v512, -inf
        %521 = vmax.xlane.f32.xlu0 %v520
        %v522 = vpop.xlane.xlu0 %521
        %v523 = vsel %vm446, %v513, -inf
        %524 = vmax.xlane.f32.xlu0 %v523
        %v525 = vpop.xlane.xlu0 %524
        %v526 = vsub.f32 %v510, %v516
        %v527 = vsub.f32 %v511, %v519
        %v528 = vsub.f32 %v512, %v522
        %v529 = vsub.f32 %v513, %v525
        %v530 = vmul.f32 %v526, 1.442695
        %v531 = vpow.pop %v530
        %v532 = vmul.f32 %v527, 1.442695
        %v533 = vpow.pop %v532
        %v534 = vmul.f32 %v528, 1.442695
        %v535 = vpow.pop %v534
        %v536 = vmul.f32 %v529, 1.442695
        %v537 = vpow.pop %v536
        %v538 = vsel %vm446, %v531, 0.0
        %539 = vadd.xlane.f32.xlu0 %v538
        %v540 = vpop.xlane.xlu0 %539
        %v541 = vsel %vm446, %v533, 0.0
        %542 = vadd.xlane.f32.xlu0 %v541
        %v543 = vpop.xlane.xlu0 %542
        %v544 = vsel %vm446, %v535, 0.0
        %545 = vadd.xlane.f32.xlu0 %v544
        %v546 = vpop.xlane.xlu0 %545
        %v547 = vsel %vm446, %v537, 0.0
        %548 = vadd.xlane.f32.xlu0 %v547
        %v549 = vpop.xlane.xlu0 %548
        %v550 = vrcp.pop %v540
        %v551 = vrcp.pop %v543
        %v552 = vrcp.pop %v546
        %v553 = vrcp.pop %v549
        %v554 = vmul.f32 %v531, %v550
        %v555 = vmul.f32 %v533, %v551
        %v556 = vmul.f32 %v535, %v552
        %v557 = vmul.f32 %v537, %v553
        %v558 = vpack.c.bf16 %v555, %v554
        %v559 = vpack.c.bf16 %v557, %v556
        %v564 = vunpack.c.l.b16 %v419
        %v565 = vunpack.c.l.b16 %v420
        %v566 = vunpack.c.l.b16 %v421
        %v567 = vunpack.c.l.b16 %v422
        %v568 = vpack.c.b16 %v565, %v564
        %v569 = vpack.c.b16 %v567, %v566
        %v573 = vsel %vm446, %v558, 0
        %v576 = vsel %vm446, %v559, 0
        %578 = vmatprep.subr.bf16.mxu0 0
        %579 = vmatpush1.bf16.msra.mxu0 %v568
        %580 = vmatprep.subr.bf16.mxu0 0
        %581 = vmatpush1.bf16.msra.mxu0 %v569
        %582 = vmatprep.subr.bf16.mxu0 0
        %583 = vmatpush1.bf16.msra.mxu0 0
        %584 = vmatprep.subr.bf16.mxu0 0
        %585 = vmatpush1.bf16.msra.mxu0 0
        %586 = vmatprep.subr.bf16.mxu0 0
        %587 = vmatpush1.bf16.msra.mxu0 0
        %588 = vmatprep.subr.bf16.mxu0 0
        %589 = vmatpush1.bf16.msra.mxu0 0
        %590 = vmatprep.subr.bf16.mxu0 0
        %591 = vmatpush1.bf16.msra.mxu0 0
        %592 = vmatprep.subr.bf16.mxu0 0
        %593 = vmatpush1.bf16.msra.mxu0 0
        %594 = vmatprep.subr.bf16.mxu0 0
        %595 = vmatpush1.bf16.msra.mxu0 0
        %596 = vmatprep.subr.bf16.mxu0 0
        %597 = vmatpush1.bf16.msra.mxu0 0
        %598 = vmatprep.subr.bf16.mxu0 0
        %599 = vmatpush1.bf16.msra.mxu0 0
        %600 = vmatprep.subr.bf16.mxu0 0
        %601 = vmatpush1.bf16.msra.mxu0 0
        %602 = vmatprep.subr.bf16.mxu0 0
        %603 = vmatpush1.bf16.msra.mxu0 0
        %604 = vmatprep.subr.bf16.mxu0 0
        %605 = vmatpush1.bf16.msra.mxu0 0
        %606 = vmatprep.subr.bf16.mxu0 0
        %607 = vmatpush1.bf16.msra.mxu0 0
        %608 = vmatprep.subr.bf16.mxu0 0
        %609 = vmatpush1.bf16.msra.mxu0 0
        %610 = vmatprep.mubr.bf16.mxu0 0
        %611 = vmatmul.mubr.bf16.gmra.mrb[0].mxu0 %v573
        %v612 = vpop.f32.mrb[0].mxu0
        %v613 = vadd.f32 0.0, %v612
        %v614 = vpop.f32.mrb[0].mxu0
        %v615 = vpop.f32.mrb[0].mxu0
        %v616 = vadd.f32 0.0, %v615
        %v617 = vpop.f32.mrb[0].mxu0
        %618 = vmatprep.mubr.bf16.mxu0 0
        %619 = vmatmul.mubr.bf16.gmra.mrb[0].mxu0 %v576
        %v620 = vpop.f32.mrb[0].mxu0
        %v621 = vadd.f32 0.0, %v620
        %v622 = vpop.f32.mrb[0].mxu0
        %v623 = vpop.f32.mrb[0].mxu0
        %v624 = vadd.f32 0.0, %v623
        %v625 = vpop.f32.mrb[0].mxu0
        %626 = vdwg.mxu0
        %627 = vrot.lane.b32.xlu0 %v434, 96
        %v628 = vpop.permute.xlu0 %627
        %629 = vrot.lane.b32.xlu0 %v435, 96
        %v630 = vpop.permute.xlu0 %629
        %631 = vrot.lane.b32.xlu0 %v444, 96
        %v632 = vpop.permute.xlu0 %631
        %633 = vrot.lane.b32.xlu0 %v445, 96
        %v634 = vpop.permute.xlu0 %633
        %v636 = vsel %vm446, %v628, 0
        %v639 = vsel %vm446, %v630, 0
        %v642 = vsel %vm446, %v632, 0
        %v645 = vsel %vm446, %v634, 0
        %647 = vmatprep.subr.bf16.mxu0 0
        %648 = vmatpush1.bf16.xpose.msra.mxu0 %v642
        %649 = vmatprep.subr.bf16.mxu0 0
        %650 = vmatpush1.bf16.xpose.msra.mxu0 %v645
        %651 = vmatprep.subr.bf16.mxu0 0
        %652 = vmatpush1.bf16.xpose.msra.mxu0 0
        %653 = vmatprep.subr.bf16.mxu0 0
        %654 = vmatpush1.bf16.xpose.msra.mxu0 0
        %655 = vmatprep.subr.bf16.mxu0 0
        %656 = vmatpush1.bf16.xpose.msra.mxu0 0
        %657 = vmatprep.subr.bf16.mxu0 0
        %658 = vmatpush1.bf16.xpose.msra.mxu0 0
        %659 = vmatprep.subr.bf16.mxu0 0
        %660 = vmatpush1.bf16.xpose.msra.mxu0 0
        %661 = vmatprep.subr.bf16.mxu0 0
        %662 = vmatpush1.bf16.xpose.msra.mxu0 0
        %663 = vmatprep.subr.bf16.mxu0 0
        %664 = vmatpush1.bf16.xpose.msra.mxu0 0
        %665 = vmatprep.subr.bf16.mxu0 0
        %666 = vmatpush1.bf16.xpose.msra.mxu0 0
        %667 = vmatprep.subr.bf16.mxu0 0
        %668 = vmatpush1.bf16.xpose.msra.mxu0 0
        %669 = vmatprep.subr.bf16.mxu0 0
        %670 = vmatpush1.bf16.xpose.msra.mxu0 0
        %671 = vmatprep.subr.bf16.mxu0 0
        %672 = vmatpush1.bf16.xpose.msra.mxu0 0
        %673 = vmatprep.subr.bf16.mxu0 0
        %674 = vmatpush1.bf16.xpose.msra.mxu0 0
        %675 = vmatprep.subr.bf16.mxu0 0
        %676 = vmatpush1.bf16.xpose.msra.mxu0 0
        %677 = vmatprep.subr.bf16.mxu0 0
        %678 = vmatpush1.bf16.xpose.msra.mxu0 0
        %679 = vmatprep.mubr.bf16.mxu0 0
        %680 = vmatmul.mubr.bf16.gmra.mrb[0].mxu0 %v636
        %v681 = vpop.f32.mrb[0].mxu0
        %v682 = vadd.f32 0.0, %v681
        %v683 = vpop.f32.mrb[0].mxu0
        %v684 = vpop.f32.mrb[0].mxu0
        %v685 = vadd.f32 0.0, %v684
        %v686 = vpop.f32.mrb[0].mxu0
        %687 = vmatprep.mubr.bf16.mxu0 0
        %688 = vmatmul.mubr.bf16.gmra.mrb[0].mxu0 %v639
        %v689 = vpop.f32.mrb[0].mxu0
        %v690 = vadd.f32 0.0, %v689
        %v691 = vpop.f32.mrb[0].mxu0
        %v692 = vpop.f32.mrb[0].mxu0
        %v693 = vadd.f32 0.0, %v692
        %v694 = vpop.f32.mrb[0].mxu0
        %695 = vdwg.mxu0
        %v696 = vsel %vm509, %v682, -1e+30
        %v697 = vsel %vm509, %v685, -1e+30
        %v698 = vsel %vm509, %v690, -1e+30
        %v699 = vsel %vm509, %v693, -1e+30
        %v700 = vsel %vm446, %v696, -inf
        %701 = vmax.xlane.f32.xlu0 %v700
        %v702 = vpop.xlane.xlu0 %701
        %v703 = vsel %vm446, %v697, -inf
        %704 = vmax.xlane.f32.xlu0 %v703
        %v705 = vpop.xlane.xlu0 %704
        %v706 = vsel %vm446, %v698, -inf
        %707 = vmax.xlane.f32.xlu0 %v706
        %v708 = vpop.xlane.xlu0 %707
        %v709 = vsel %vm446, %v699, -inf
        %710 = vmax.xlane.f32.xlu0 %v709
        %v711 = vpop.xlane.xlu0 %710
        %v712 = vsub.f32 %v696, %v702
        %v713 = vsub.f32 %v697, %v705
        %v714 = vsub.f32 %v698, %v708
        %v715 = vsub.f32 %v699, %v711
        %v716 = vmul.f32 %v712, 1.442695
        %v717 = vpow.pop %v716
        %v718 = vmul.f32 %v713, 1.442695
        %v719 = vpow.pop %v718
        %v720 = vmul.f32 %v714, 1.442695
        %v721 = vpow.pop %v720
        %v722 = vmul.f32 %v715, 1.442695
        %v723 = vpow.pop %v722
        %v724 = vsel %vm446, %v717, 0.0
        %725 = vadd.xlane.f32.xlu0 %v724
        %v726 = vpop.xlane.xlu0 %725
        %v727 = vsel %vm446, %v719, 0.0
        %728 = vadd.xlane.f32.xlu0 %v727
        %v729 = vpop.xlane.xlu0 %728
        %v730 = vsel %vm446, %v721, 0.0
        %731 = vadd.xlane.f32.xlu0 %v730
        %v732 = vpop.xlane.xlu0 %731
        %v733 = vsel %vm446, %v723, 0.0
        %734 = vadd.xlane.f32.xlu0 %v733
        %v735 = vpop.xlane.xlu0 %734
        %v736 = vrcp.pop %v726
        %v737 = vrcp.pop %v729
        %v738 = vrcp.pop %v732
        %v739 = vrcp.pop %v735
        %v740 = vmul.f32 %v717, %v736
        %v741 = vmul.f32 %v719, %v737
        %v742 = vmul.f32 %v721, %v738
        %v743 = vmul.f32 %v723, %v739
        %v744 = vpack.c.bf16 %v741, %v740
        %v745 = vpack.c.bf16 %v743, %v742
        %746 = vrot.lane.b32.xlu0 %v568, 96
        %v747 = vpop.permute.xlu0 %746
        %748 = vrot.lane.b32.xlu0 %v569, 96
        %v749 = vpop.permute.xlu0 %748
        %v753 = vsel %vm446, %v744, 0
        %v756 = vsel %vm446, %v745, 0
        %758 = vmatprep.subr.bf16.mxu0 0
        %759 = vmatpush1.bf16.msra.mxu0 %v747
        %760 = vmatprep.subr.bf16.mxu0 0
        %761 = vmatpush1.bf16.msra.mxu0 %v749
        %762 = vmatprep.subr.bf16.mxu0 0
        %763 = vmatpush1.bf16.msra.mxu0 0
        %764 = vmatprep.subr.bf16.mxu0 0
        %765 = vmatpush1.bf16.msra.mxu0 0
        %766 = vmatprep.subr.bf16.mxu0 0
        %767 = vmatpush1.bf16.msra.mxu0 0
        %768 = vmatprep.subr.bf16.mxu0 0
        %769 = vmatpush1.bf16.msra.mxu0 0
        %770 = vmatprep.subr.bf16.mxu0 0
        %771 = vmatpush1.bf16.msra.mxu0 0
        %772 = vmatprep.subr.bf16.mxu0 0
        %773 = vmatpush1.bf16.msra.mxu0 0
        %774 = vmatprep.subr.bf16.mxu0 0
        %775 = vmatpush1.bf16.msra.mxu0 0
        %776 = vmatprep.subr.bf16.mxu0 0
        %777 = vmatpush1.bf16.msra.mxu0 0
        %778 = vmatprep.subr.bf16.mxu0 0
        %779 = vmatpush1.bf16.msra.mxu0 0
        %780 = vmatprep.subr.bf16.mxu0 0
        %781 = vmatpush1.bf16.msra.mxu0 0
        %782 = vmatprep.subr.bf16.mxu0 0
        %783 = vmatpush1.bf16.msra.mxu0 0
        %784 = vmatprep.subr.bf16.mxu0 0
        %785 = vmatpush1.bf16.msra.mxu0 0
        %786 = vmatprep.subr.bf16.mxu0 0
        %787 = vmatpush1.bf16.msra.mxu0 0
        %788 = vmatprep.subr.bf16.mxu0 0
        %789 = vmatpush1.bf16.msra.mxu0 0
        %790 = vmatprep.mubr.bf16.mxu0 0
        %791 = vmatmul.mubr.bf16.gmra.mrb[0].mxu0 %v753
        %v792 = vpop.f32.mrb[0].mxu0
        %v793 = vadd.f32 0.0, %v792
        %v794 = vpop.f32.mrb[0].mxu0
        %v795 = vpop.f32.mrb[0].mxu0
        %v796 = vadd.f32 0.0, %v795
        %v797 = vpop.f32.mrb[0].mxu0
        %798 = vmatprep.mubr.bf16.mxu0 0
        %799 = vmatmul.mubr.bf16.gmra.mrb[0].mxu0 %v756
        %v800 = vpop.f32.mrb[0].mxu0
        %v801 = vadd.f32 0.0, %v800
        %v802 = vpop.f32.mrb[0].mxu0
        %v803 = vpop.f32.mrb[0].mxu0
        %v804 = vadd.f32 0.0, %v803
        %v805 = vpop.f32.mrb[0].mxu0
        %806 = vdwg.mxu0
        %807 = vrot.lane.b32.xlu0 %v434, 64
        %v808 = vpop.permute.xlu0 %807
        %809 = vrot.lane.b32.xlu0 %v435, 64
        %v810 = vpop.permute.xlu0 %809
        %811 = vrot.lane.b32.xlu0 %v444, 64
        %v812 = vpop.permute.xlu0 %811
        %813 = vrot.lane.b32.xlu0 %v445, 64
        %v814 = vpop.permute.xlu0 %813
        %v816 = vsel %vm446, %v808, 0
        %v819 = vsel %vm446, %v810, 0
        %v822 = vsel %vm446, %v812, 0
        %v825 = vsel %vm446, %v814, 0
        %827 = vmatprep.subr.bf16.mxu0 0
        %828 = vmatpush1.bf16.xpose.msra.mxu0 %v822
        %829 = vmatprep.subr.bf16.mxu0 0
        %830 = vmatpush1.bf16.xpose.msra.mxu0 %v825
        %831 = vmatprep.subr.bf16.mxu0 0
        %832 = vmatpush1.bf16.xpose.msra.mxu0 0
        %833 = vmatprep.subr.bf16.mxu0 0
        %834 = vmatpush1.bf16.xpose.msra.mxu0 0
        %835 = vmatprep.subr.bf16.mxu0 0
        %836 = vmatpush1.bf16.xpose.msra.mxu0 0
        %837 = vmatprep.subr.bf16.mxu0 0
        %838 = vmatpush1.bf16.xpose.msra.mxu0 0
        %839 = vmatprep.subr.bf16.mxu0 0
        %840 = vmatpush1.bf16.xpose.msra.mxu0 0
        %841 = vmatprep.subr.bf16.mxu0 0
        %842 = vmatpush1.bf16.xpose.msra.mxu0 0
        %843 = vmatprep.subr.bf16.mxu0 0
        %844 = vmatpush1.bf16.xpose.msra.mxu0 0
        %845 = vmatprep.subr.bf16.mxu0 0
        %846 = vmatpush1.bf16.xpose.msra.mxu0 0
        %847 = vmatprep.subr.bf16.mxu0 0
        %848 = vmatpush1.bf16.xpose.msra.mxu0 0
        %849 = vmatprep.subr.bf16.mxu0 0
        %850 = vmatpush1.bf16.xpose.msra.mxu0 0
        %851 = vmatprep.subr.bf16.mxu0 0
        %852 = vmatpush1.bf16.xpose.msra.mxu0 0
        %853 = vmatprep.subr.bf16.mxu0 0
        %854 = vmatpush1.bf16.xpose.msra.mxu0 0
        %855 = vmatprep.subr.bf16.mxu0 0
        %856 = vmatpush1.bf16.xpose.msra.mxu0 0
        %857 = vmatprep.subr.bf16.mxu0 0
        %858 = vmatpush1.bf16.xpose.msra.mxu0 0
        %859 = vmatprep.mubr.bf16.mxu0 0
        %860 = vmatmul.mubr.bf16.gmra.mrb[0].mxu0 %v816
        %v861 = vpop.f32.mrb[0].mxu0
        %v862 = vadd.f32 0.0, %v861
        %v863 = vpop.f32.mrb[0].mxu0
        %v864 = vpop.f32.mrb[0].mxu0
        %v865 = vadd.f32 0.0, %v864
        %v866 = vpop.f32.mrb[0].mxu0
        %867 = vmatprep.mubr.bf16.mxu0 0
        %868 = vmatmul.mubr.bf16.gmra.mrb[0].mxu0 %v819
        %v869 = vpop.f32.mrb[0].mxu0
        %v870 = vadd.f32 0.0, %v869
        %v871 = vpop.f32.mrb[0].mxu0
        %v872 = vpop.f32.mrb[0].mxu0
        %v873 = vadd.f32 0.0, %v872
        %v874 = vpop.f32.mrb[0].mxu0
        %875 = vdwg.mxu0
        %v876 = vsel %vm509, %v862, -1e+30
        %v877 = vsel %vm509, %v865, -1e+30
        %v878 = vsel %vm509, %v870, -1e+30
        %v879 = vsel %vm509, %v873, -1e+30
        %v880 = vsel %vm446, %v876, -inf
        %881 = vmax.xlane.f32.xlu0 %v880
        %v882 = vpop.xlane.xlu0 %881
        %v883 = vsel %vm446, %v877, -inf
        %884 = vmax.xlane.f32.xlu0 %v883
        %v885 = vpop.xlane.xlu0 %884
        %v886 = vsel %vm446, %v878, -inf
        %887 = vmax.xlane.f32.xlu0 %v886
        %v888 = vpop.xlane.xlu0 %887
        %v889 = vsel %vm446, %v879, -inf
        %890 = vmax.xlane.f32.xlu0 %v889
        %v891 = vpop.xlane.xlu0 %890
        %v892 = vsub.f32 %v876, %v882
        %v893 = vsub.f32 %v877, %v885
        %v894 = vsub.f32 %v878, %v888
        %v895 = vsub.f32 %v879, %v891
        %v896 = vmul.f32 %v892, 1.442695
        %v897 = vpow.pop %v896
        %v898 = vmul.f32 %v893, 1.442695
        %v899 = vpow.pop %v898
        %v900 = vmul.f32 %v894, 1.442695
        %v901 = vpow.pop %v900
        %v902 = vmul.f32 %v895, 1.442695
        %v903 = vpow.pop %v902
        %v904 = vsel %vm446, %v897, 0.0
        %905 = vadd.xlane.f32.xlu0 %v904
        %v906 = vpop.xlane.xlu0 %905
        %v907 = vsel %vm446, %v899, 0.0
        %908 = vadd.xlane.f32.xlu0 %v907
        %v909 = vpop.xlane.xlu0 %908
        %v910 = vsel %vm446, %v901, 0.0
        %911 = vadd.xlane.f32.xlu0 %v910
        %v912 = vpop.xlane.xlu0 %911
        %v913 = vsel %vm446, %v903, 0.0
        %914 = vadd.xlane.f32.xlu0 %v913
        %v915 = vpop.xlane.xlu0 %914
        %v916 = vrcp.pop %v906
        %v917 = vrcp.pop %v909
        %v918 = vrcp.pop %v912
        %v919 = vrcp.pop %v915
        %v920 = vmul.f32 %v897, %v916
        %v921 = vmul.f32 %v899, %v917
        %v922 = vmul.f32 %v901, %v918
        %v923 = vmul.f32 %v903, %v919
        %v924 = vpack.c.bf16 %v921, %v920
        %v925 = vpack.c.bf16 %v923, %v922
        %926 = vrot.lane.b32.xlu0 %v568, 64
        %v927 = vpop.permute.xlu0 %926
        %928 = vrot.lane.b32.xlu0 %v569, 64
        %v929 = vpop.permute.xlu0 %928
        %v933 = vsel %vm446, %v924, 0
        %v936 = vsel %vm446, %v925, 0
        %938 = vmatprep.subr.bf16.mxu0 0
        %939 = vmatpush1.bf16.msra.mxu0 %v927
        %940 = vmatprep.subr.bf16.mxu0 0
        %941 = vmatpush1.bf16.msra.mxu0 %v929
        %942 = vmatprep.subr.bf16.mxu0 0
        %943 = vmatpush1.bf16.msra.mxu0 0
        %944 = vmatprep.subr.bf16.mxu0 0
        %945 = vmatpush1.bf16.msra.mxu0 0
        %946 = vmatprep.subr.bf16.mxu0 0
        %947 = vmatpush1.bf16.msra.mxu0 0
        %948 = vmatprep.subr.bf16.mxu0 0
        %949 = vmatpush1.bf16.msra.mxu0 0
        %950 = vmatprep.subr.bf16.mxu0 0
        %951 = vmatpush1.bf16.msra.mxu0 0
        %952 = vmatprep.subr.bf16.mxu0 0
        %953 = vmatpush1.bf16.msra.mxu0 0
        %954 = vmatprep.subr.bf16.mxu0 0
        %955 = vmatpush1.bf16.msra.mxu0 0
        %956 = vmatprep.subr.bf16.mxu0 0
        %957 = vmatpush1.bf16.msra.mxu0 0
        %958 = vmatprep.subr.bf16.mxu0 0
        %959 = vmatpush1.bf16.msra.mxu0 0
        %960 = vmatprep.subr.bf16.mxu0 0
        %961 = vmatpush1.bf16.msra.mxu0 0
        %962 = vmatprep.subr.bf16.mxu0 0
        %963 = vmatpush1.bf16.msra.mxu0 0
        %964 = vmatprep.subr.bf16.mxu0 0
        %965 = vmatpush1.bf16.msra.mxu0 0
        %966 = vmatprep.subr.bf16.mxu0 0
        %967 = vmatpush1.bf16.msra.mxu0 0
        %968 = vmatprep.subr.bf16.mxu0 0
        %969 = vmatpush1.bf16.msra.mxu0 0
        %970 = vmatprep.mubr.bf16.mxu0 0
        %971 = vmatmul.mubr.bf16.gmra.mrb[0].mxu0 %v933
        %v972 = vpop.f32.mrb[0].mxu0
        %v973 = vadd.f32 0.0, %v972
        %v974 = vpop.f32.mrb[0].mxu0
        %v975 = vpop.f32.mrb[0].mxu0
        %v976 = vadd.f32 0.0, %v975
        %v977 = vpop.f32.mrb[0].mxu0
        %978 = vmatprep.mubr.bf16.mxu0 0
        %979 = vmatmul.mubr.bf16.gmra.mrb[0].mxu0 %v936
        %v980 = vpop.f32.mrb[0].mxu0
        %v981 = vadd.f32 0.0, %v980
        %v982 = vpop.f32.mrb[0].mxu0
        %v983 = vpop.f32.mrb[0].mxu0
        %v984 = vadd.f32 0.0, %v983
        %v985 = vpop.f32.mrb[0].mxu0
        %986 = vdwg.mxu0
        %987 = vrot.lane.b32.xlu0 %v434, 32
        %v988 = vpop.permute.xlu0 %987
        %989 = vrot.lane.b32.xlu0 %v435, 32
        %v990 = vpop.permute.xlu0 %989
        %991 = vrot.lane.b32.xlu0 %v444, 32
        %v992 = vpop.permute.xlu0 %991
        %993 = vrot.lane.b32.xlu0 %v445, 32
        %v994 = vpop.permute.xlu0 %993
        %v996 = vsel %vm446, %v988, 0
        %v999 = vsel %vm446, %v990, 0
        %v1002 = vsel %vm446, %v992, 0
        %v1005 = vsel %vm446, %v994, 0
        %1007 = vmatprep.subr.bf16.mxu0 0
        %1008 = vmatpush1.bf16.xpose.msra.mxu0 %v1002
        %1009 = vmatprep.subr.bf16.mxu0 0
        %1010 = vmatpush1.bf16.xpose.msra.mxu0 %v1005
        %1011 = vmatprep.subr.bf16.mxu0 0
        %1012 = vmatpush1.bf16.xpose.msra.mxu0 0
        %1013 = vmatprep.subr.bf16.mxu0 0
        %1014 = vmatpush1.bf16.xpose.msra.mxu0 0
        %1015 = vmatprep.subr.bf16.mxu0 0
        %1016 = vmatpush1.bf16.xpose.msra.mxu0 0
        %1017 = vmatprep.subr.bf16.mxu0 0
        %1018 = vmatpush1.bf16.xpose.msra.mxu0 0
        %1019 = vmatprep.subr.bf16.mxu0 0
        %1020 = vmatpush1.bf16.xpose.msra.mxu0 0
        %1021 = vmatprep.subr.bf16.mxu0 0
        %1022 = vmatpush1.bf16.xpose.msra.mxu0 0
        %1023 = vmatprep.subr.bf16.mxu0 0
        %1024 = vmatpush1.bf16.xpose.msra.mxu0 0
        %1025 = vmatprep.subr.bf16.mxu0 0
        %1026 = vmatpush1.bf16.xpose.msra.mxu0 0
        %1027 = vmatprep.subr.bf16.mxu0 0
        %1028 = vmatpush1.bf16.xpose.msra.mxu0 0
        %1029 = vmatprep.subr.bf16.mxu0 0
        %1030 = vmatpush1.bf16.xpose.msra.mxu0 0
        %1031 = vmatprep.subr.bf16.mxu0 0
        %1032 = vmatpush1.bf16.xpose.msra.mxu0 0
        %1033 = vmatprep.subr.bf16.mxu0 0
        %1034 = vmatpush1.bf16.xpose.msra.mxu0 0
        %1035 = vmatprep.subr.bf16.mxu0 0
        %1036 = vmatpush1.bf16.xpose.msra.mxu0 0
        %1037 = vmatprep.subr.bf16.mxu0 0
        %1038 = vmatpush1.bf16.xpose.msra.mxu0 0
        %1039 = vmatprep.mubr.bf16.mxu0 0
        %1040 = vmatmul.mubr.bf16.gmra.mrb[0].mxu0 %v996
        %v1041 = vpop.f32.mrb[0].mxu0
        %v1042 = vadd.f32 0.0, %v1041
        %v1043 = vpop.f32.mrb[0].mxu0
        %v1044 = vpop.f32.mrb[0].mxu0
        %v1045 = vadd.f32 0.0, %v1044
        %v1046 = vpop.f32.mrb[0].mxu0
        %1047 = vmatprep.mubr.bf16.mxu0 0
        %1048 = vmatmul.mubr.bf16.gmra.mrb[0].mxu0 %v999
        %v1049 = vpop.f32.mrb[0].mxu0
        %v1050 = vadd.f32 0.0, %v1049
        %v1051 = vpop.f32.mrb[0].mxu0
        %v1052 = vpop.f32.mrb[0].mxu0
        %v1053 = vadd.f32 0.0, %v1052
        %v1054 = vpop.f32.mrb[0].mxu0
        %1055 = vdwg.mxu0
        %v1056 = vsel %vm509, %v1042, -1e+30
        %v1057 = vsel %vm509, %v1045, -1e+30
        %v1058 = vsel %vm509, %v1050, -1e+30
        %v1059 = vsel %vm509, %v1053, -1e+30
        %v1060 = vsel %vm446, %v1056, -inf
        %1061 = vmax.xlane.f32.xlu0 %v1060
        %v1062 = vpop.xlane.xlu0 %1061
        %v1063 = vsel %vm446, %v1057, -inf
        %1064 = vmax.xlane.f32.xlu0 %v1063
        %v1065 = vpop.xlane.xlu0 %1064
        %v1066 = vsel %vm446, %v1058, -inf
        %1067 = vmax.xlane.f32.xlu0 %v1066
        %v1068 = vpop.xlane.xlu0 %1067
        %v1069 = vsel %vm446, %v1059, -inf
        %1070 = vmax.xlane.f32.xlu0 %v1069
        %v1071 = vpop.xlane.xlu0 %1070
        %v1072 = vsub.f32 %v1056, %v1062
        %v1073 = vsub.f32 %v1057, %v1065
        %v1074 = vsub.f32 %v1058, %v1068
        %v1075 = vsub.f32 %v1059, %v1071
        %v1076 = vmul.f32 %v1072, 1.442695
        %v1077 = vpow.pop %v1076
        %v1078 = vmul.f32 %v1073, 1.442695
        %v1079 = vpow.pop %v1078
        %v1080 = vmul.f32 %v1074, 1.442695
        %v1081 = vpow.pop %v1080
        %v1082 = vmul.f32 %v1075, 1.442695
        %v1083 = vpow.pop %v1082
        %v1084 = vsel %vm446, %v1077, 0.0
        %1085 = vadd.xlane.f32.xlu0 %v1084
        %v1086 = vpop.xlane.xlu0 %1085
        %v1087 = vsel %vm446, %v1079, 0.0
        %1088 = vadd.xlane.f32.xlu0 %v1087
        %v1089 = vpop.xlane.xlu0 %1088
        %v1090 = vsel %vm446, %v1081, 0.0
        %1091 = vadd.xlane.f32.xlu0 %v1090
        %v1092 = vpop.xlane.xlu0 %1091
        %v1093 = vsel %vm446, %v1083, 0.0
        %1094 = vadd.xlane.f32.xlu0 %v1093
        %v1095 = vpop.xlane.xlu0 %1094
        %v1096 = vrcp.pop %v1086
        %v1097 = vrcp.pop %v1089
        %v1098 = vrcp.pop %v1092
        %v1099 = vrcp.pop %v1095
        %v1100 = vmul.f32 %v1077, %v1096
        %v1101 = vmul.f32 %v1079, %v1097
        %v1102 = vmul.f32 %v1081, %v1098
        %v1103 = vmul.f32 %v1083, %v1099
        %v1104 = vpack.c.bf16 %v1101, %v1100
        %v1105 = vpack.c.bf16 %v1103, %v1102
        %1106 = vrot.lane.b32.xlu0 %v568, 32
        %v1107 = vpop.permute.xlu0 %1106
        %1108 = vrot.lane.b32.xlu0 %v569, 32
        %v1109 = vpop.permute.xlu0 %1108
        %v1113 = vsel %vm446, %v1104, 0
        %v1116 = vsel %vm446, %v1105, 0
        %1118 = vmatprep.subr.bf16.mxu0 0
        %1119 = vmatpush1.bf16.msra.mxu0 %v1107
        %1120 = vmatprep.subr.bf16.mxu0 0
        %1121 = vmatpush1.bf16.msra.mxu0 %v1109
        %1122 = vmatprep.subr.bf16.mxu0 0
        %1123 = vmatpush1.bf16.msra.mxu0 0
        %1124 = vmatprep.subr.bf16.mxu0 0
        %1125 = vmatpush1.bf16.msra.mxu0 0
        %1126 = vmatprep.subr.bf16.mxu0 0
        %1127 = vmatpush1.bf16.msra.mxu0 0
        %1128 = vmatprep.subr.bf16.mxu0 0
        %1129 = vmatpush1.bf16.msra.mxu0 0
        %1130 = vmatprep.subr.bf16.mxu0 0
        %1131 = vmatpush1.bf16.msra.mxu0 0
        %1132 = vmatprep.subr.bf16.mxu0 0
        %1133 = vmatpush1.bf16.msra.mxu0 0
        %1134 = vmatprep.subr.bf16.mxu0 0
        %1135 = vmatpush1.bf16.msra.mxu0 0
        %1136 = vmatprep.subr.bf16.mxu0 0
        %1137 = vmatpush1.bf16.msra.mxu0 0
        %1138 = vmatprep.subr.bf16.mxu0 0
        %1139 = vmatpush1.bf16.msra.mxu0 0
        %1140 = vmatprep.subr.bf16.mxu0 0
        %1141 = vmatpush1.bf16.msra.mxu0 0
        %1142 = vmatprep.subr.bf16.mxu0 0
        %1143 = vmatpush1.bf16.msra.mxu0 0
        %1144 = vmatprep.subr.bf16.mxu0 0
        %1145 = vmatpush1.bf16.msra.mxu0 0
        %1146 = vmatprep.subr.bf16.mxu0 0
        %1147 = vmatpush1.bf16.msra.mxu0 0
        %1148 = vmatprep.subr.bf16.mxu0 0
        %1149 = vmatpush1.bf16.msra.mxu0 0
        %1150 = vmatprep.mubr.bf16.mxu0 0
        %1151 = vmatmul.mubr.bf16.gmra.mrb[0].mxu0 %v1113
        %v1152 = vpop.f32.mrb[0].mxu0
        %v1153 = vadd.f32 0.0, %v1152
        %v1154 = vpop.f32.mrb[0].mxu0
        %v1155 = vpop.f32.mrb[0].mxu0
        %v1156 = vadd.f32 0.0, %v1155
        %v1157 = vpop.f32.mrb[0].mxu0
        %1158 = vmatprep.mubr.bf16.mxu0 0
        %1159 = vmatmul.mubr.bf16.gmra.mrb[0].mxu0 %v1116
        %v1160 = vpop.f32.mrb[0].mxu0
        %v1161 = vadd.f32 0.0, %v1160
        %v1162 = vpop.f32.mrb[0].mxu0
        %v1163 = vpop.f32.mrb[0].mxu0
        %v1164 = vadd.f32 0.0, %v1163
        %v1165 = vpop.f32.mrb[0].mxu0
        %1166 = vdwg.mxu0
        %1171 = vrot.lane.b32.xlu0 %v793, 32
        %v1172 = vpop.permute.xlu0 %1171
        %1173 = vrot.lane.b32.xlu0 %v796, 32
        %v1174 = vpop.permute.xlu0 %1173
        %1175 = vrot.lane.b32.xlu0 %v801, 32
        %v1176 = vpop.permute.xlu0 %1175
        %1177 = vrot.lane.b32.xlu0 %v804, 32
        %v1178 = vpop.permute.xlu0 %1177
        %1187 = vrot.lane.b32.xlu0 %v973, 64
        %v1188 = vpop.permute.xlu0 %1187
        %1189 = vrot.lane.b32.xlu0 %v976, 64
        %v1190 = vpop.permute.xlu0 %1189
        %1191 = vrot.lane.b32.xlu0 %v981, 64
        %v1192 = vpop.permute.xlu0 %1191
        %1193 = vrot.lane.b32.xlu0 %v984, 64
        %v1194 = vpop.permute.xlu0 %1193
        %1203 = vrot.lane.b32.xlu0 %v1153, 96
        %v1204 = vpop.permute.xlu0 %1203
        %1205 = vrot.lane.b32.xlu0 %v1156, 96
        %v1206 = vpop.permute.xlu0 %1205
        %1207 = vrot.lane.b32.xlu0 %v1161, 96
        %v1208 = vpop.permute.xlu0 %1207
        %1209 = vrot.lane.b32.xlu0 %v1164, 96
        %v1210 = vpop.permute.xlu0 %1209
        %v1215 = vsel %vm446, %v613, %v1172
        %v1216 = vsel %vm446, %v616, %v1174
        %v1217 = vsel %vm446, %v621, %v1176
        %v1218 = vsel %vm446, %v624, %v1178
        %vm1219 = vcmask 523264
        %v1220 = vsel %vm1219, %v1215, %v1188
        %v1221 = vsel %vm1219, %v1216, %v1190
        %v1222 = vsel %vm1219, %v1217, %v1192
        %v1223 = vsel %vm1219, %v1218, %v1194
        %vm1224 = vcmask 785408
        %v1225 = vsel %vm1224, %v1220, %v1204
        %v1226 = vsel %vm1224, %v1221, %v1206
        %v1227 = vsel %vm1224, %v1222, %v1208
        %v1228 = vsel %vm1224, %v1223, %v1210
        %v1229 = vpack.c.bf16 %v1226, %v1225
        %v1230 = vpack.c.bf16 %v1228, %v1227
        %v1233 = vunpack.c.l.b16 %v1229
        %v1234 = vunpack.c.h.b16 %v1229
        %v1235 = vunpack.c.l.b16 %v1230
        %v1236 = vunpack.c.h.b16 %v1230
        %v1237 = vpack.c.b16 %v1233, %v1233
        %v1238 = vpack.c.b16 %v1234, %v1234
        %v1239 = vpack.c.b16 %v1235, %v1235
        %v1240 = vpack.c.b16 %v1236, %v1236
        %1245 = vst [vmem:[%s409] sm:$0xf] %v1237
        %1246 = vst [vmem:[%s409 + $0x4] sm:$0xf] %v1238
        %1247 = vst [vmem:[%s409 + $0x8] sm:$0xf] %v1239
        %1248 = vst [vmem:[%s409 + $0xc] sm:$0xf] %v1240
        %p1249 = scmp.lt.s32.totalorder %s18, 1
        %s1250 = scalar_select %p1249, %s18, 1
        %p1251 = scmp.lt.s32.totalorder %s19, 0
        %s1252 = scalar_select %p1251, %s19, 0
        %s1253 = smul.addr %s1250, 4
        %s1254 = sadd.s32 %s1252, %s1253
        %s1255 = smul.addr %s1254, 4
        %s1256 = scalar_lea.vmem %s3, %s1255
        // Predicated region
        $region156: #{vit_forward.14} parent=142 // pred_check
          %p1257 = pneg %p134
        $region157: #{vit_forward.14} parent=142 // pred_check_branch
          %1259 = sbr.rel (%p1257) target = $region159
        $region158: #{vit_forward.14} parent=142 // pred_region
          _
        $region159: #{vit_forward.14} parent=142 // pred_fallthru
          _
      $region143: #{vit_forward.14} parent=5 // pred_fallthru
        _
      %p1260 = scmp.le.s32.totalorder 2, %s9
      // Predicated region
      $region160: #{vit_forward.14} parent=5 // pred_check
        %p1261 = pneg %p1260
      $region161: #{vit_forward.14} parent=5 // pred_check_branch
        %1263 = sbr.rel (%p1261) target = $region163
      $region162: #{vit_forward.14} parent=5 // pred_region
        %s1264 = ssub.s32 %s9, 2
        // Predicated region
        $region164: #{vit_forward.14} parent=162 // pred_check
          %p1265 = pneg %p140
        $region165: #{vit_forward.14} parent=162 // pred_check_branch
          %1267 = sbr.rel (%p1265) target = $region167
        $region166: #{vit_forward.14} parent=162 // pred_region
          %p1268 = scmp.lt.s32.totalorder %s20, 1
          %s1269 = scalar_select %p1268, %s20, 1
          %p1270 = scmp.lt.s32.totalorder %s21, 0
          %s1271 = scalar_select %p1270, %s21, 0
          %s1272 = smul.addr %s1269, 4
          %s1273 = sadd.s32 %s1271, %s1272
          %s1274 = smul.addr %s1273, 4
          %s1275 = scalar_lea.vmem %s3, %s1274
        $region167: #{vit_forward.14} parent=162 // pred_fallthru
          _
      $region163: #{vit_forward.14} parent=5 // pred_fallthru
        _
    $region6: #{vit_forward.14} parent=1 // loop_footer
      %s13 = sadd.s32 1, %s9
    $region7: #{vit_forward.14} parent=1 // loop_footer_branch
      %8 = sbr.rel target = $region3
    $region8: #{vit_forward.14} parent=1 // loop_exit
      _

// kernel: vit_forward.16
$region0: #{vit_forward.16}
  #allocation0 [shape = 'u32[]', space=smem, size = 0x4, offset = 0x4, fixed_abs, tag = 'smem constant byte address 0x4 - core index']
  #allocation1 [shape = 'u32[144,128]{1,0:T(1,128)}', space=vmem, size = 0x12000, scoped, tag = 'internal scratch']
  #allocation2 [shape = 'bf16[64,128]{1,0:T(16,128)(2,1)}', space=vmem, size = 0x4000, scoped, tag = 'scratch operand']
  %s0 = inlined_call_operand.vmem [shape: f32[64,128], index: 0, kind: input, shape index: {}]
  %s1 = inlined_call_operand.vmem [shape: f32[1,128], index: 1, kind: input, shape index: {}]
  %s2 = inlined_call_operand.vmem [shape: f32[1,128], index: 2, kind: input, shape index: {}]
  %s3 = inlined_call_operand.vmem [shape: bf16[128,256], index: 3, kind: input, shape index: {}]
  %s4 = inlined_call_operand.vmem [shape: f32[1,256], index: 4, kind: input, shape index: {}]
  %s5 = inlined_call_operand.vmem [shape: bf16[64,256], index: 5, kind: output, shape index: {}]
  %s6 = sld [smem:[#allocation0]]
  $region34: #{vit_forward.16} parent=0
    _
  %s8 = ssub.s32 1, %s6
  %s9 = scalar_select 0, %s8, %s6
  // Predicated region
  $region2: #{vit_forward.16} parent=0 // pred_check
    _
  $region3: #{vit_forward.16} parent=0 // pred_check_branch
    %11 = sbr.rel (0) target = $region5
  $region4: #{vit_forward.16} parent=0 // pred_region
    _
  $region5: #{vit_forward.16} parent=0 // pred_fallthru
    _
  // Predicated region
  $region6: #{vit_forward.16} parent=0 // pred_check
    _
  $region7: #{vit_forward.16} parent=0 // pred_check_branch
    %13 = sbr.rel (0) target = $region9
  $region8: #{vit_forward.16} parent=0 // pred_region
    _
  $region9: #{vit_forward.16} parent=0 // pred_fallthru
    _
  // Predicated region
  $region10: #{vit_forward.16} parent=0 // pred_check
    _
  $region11: #{vit_forward.16} parent=0 // pred_check_branch
    %15 = sbr.rel (0) target = $region13
  $region12: #{vit_forward.16} parent=0 // pred_region
    _
  $region13: #{vit_forward.16} parent=0 // pred_fallthru
    _
  // Predicated region
  $region14: #{vit_forward.16} parent=0 // pred_check
    _
  $region15: #{vit_forward.16} parent=0 // pred_check_branch
    %17 = sbr.rel (0) target = $region17
  $region16: #{vit_forward.16} parent=0 // pred_region
    _
  $region17: #{vit_forward.16} parent=0 // pred_fallthru
    _
  // Predicated region
  $region18: #{vit_forward.16} parent=0 // pred_check
    _
  $region19: #{vit_forward.16} parent=0 // pred_check_branch
    %19 = sbr.rel (0) target = $region21
  $region20: #{vit_forward.16} parent=0 // pred_region
    _
  $region21: #{vit_forward.16} parent=0 // pred_fallthru
    _
  %p21 = scmp.eq.s32.totalorder 0, 0
  // Predicated region
  $region22: #{vit_forward.16} parent=0 // pred_check
    %p22 = pneg %p21
  $region23: #{vit_forward.16} parent=0 // pred_check_branch
    %24 = sbr.rel (%p22) target = $region25
  $region24: #{vit_forward.16} parent=0 // pred_region
    %v25 = vld [vmem:[%s0] sm:$0xff]
    %v26 = vld [vmem:[%s0 + $0x8] sm:$0xff]
    %v27 = vld [vmem:[%s0 + $0x10] sm:$0xff]
    %v28 = vld [vmem:[%s0 + $0x18] sm:$0xff]
    %v29 = vld [vmem:[%s0 + $0x20] sm:$0xff]
    %v30 = vld [vmem:[%s0 + $0x28] sm:$0xff]
    %v31 = vld [vmem:[%s0 + $0x30] sm:$0xff]
    %v32 = vld [vmem:[%s0 + $0x38] sm:$0xff]
    %33 = vadd.xlane.f32.xlu0 %v25
    %v34 = vpop.xlane.xlu0 %33
    %35 = vadd.xlane.f32.xlu0 %v26
    %v36 = vpop.xlane.xlu0 %35
    %37 = vadd.xlane.f32.xlu0 %v27
    %v38 = vpop.xlane.xlu0 %37
    %39 = vadd.xlane.f32.xlu0 %v28
    %v40 = vpop.xlane.xlu0 %39
    %41 = vadd.xlane.f32.xlu0 %v29
    %v42 = vpop.xlane.xlu0 %41
    %43 = vadd.xlane.f32.xlu0 %v30
    %v44 = vpop.xlane.xlu0 %43
    %45 = vadd.xlane.f32.xlu0 %v31
    %v46 = vpop.xlane.xlu0 %45
    %47 = vadd.xlane.f32.xlu0 %v32
    %v48 = vpop.xlane.xlu0 %47
    %v49 = vrcp.pop 128.0
    %v50 = vmul.f32 %v34, %v49
    %v51 = vmul.f32 %v36, %v49
    %v52 = vmul.f32 %v38, %v49
    %v53 = vmul.f32 %v40, %v49
    %v54 = vmul.f32 %v42, %v49
    %v55 = vmul.f32 %v44, %v49
    %v56 = vmul.f32 %v46, %v49
    %v57 = vmul.f32 %v48, %v49
    %v58 = vsub.f32 %v25, %v50
    %v59 = vsub.f32 %v26, %v51
    %v60 = vsub.f32 %v27, %v52
    %v61 = vsub.f32 %v28, %v53
    %v62 = vsub.f32 %v29, %v54
    %v63 = vsub.f32 %v30, %v55
    %v64 = vsub.f32 %v31, %v56
    %v65 = vsub.f32 %v32, %v57
    %v66 = vmul.f32 %v58, %v58
    %v67 = vmul.f32 %v59, %v59
    %v68 = vmul.f32 %v60, %v60
    %v69 = vmul.f32 %v61, %v61
    %v70 = vmul.f32 %v62, %v62
    %v71 = vmul.f32 %v63, %v63
    %v72 = vmul.f32 %v64, %v64
    %v73 = vmul.f32 %v65, %v65
    %74 = vadd.xlane.f32.xlu0 %v66
    %v75 = vpop.xlane.xlu0 %74
    %76 = vadd.xlane.f32.xlu0 %v67
    %v77 = vpop.xlane.xlu0 %76
    %78 = vadd.xlane.f32.xlu0 %v68
    %v79 = vpop.xlane.xlu0 %78
    %80 = vadd.xlane.f32.xlu0 %v69
    %v81 = vpop.xlane.xlu0 %80
    %82 = vadd.xlane.f32.xlu0 %v70
    %v83 = vpop.xlane.xlu0 %82
    %84 = vadd.xlane.f32.xlu0 %v71
    %v85 = vpop.xlane.xlu0 %84
    %86 = vadd.xlane.f32.xlu0 %v72
    %v87 = vpop.xlane.xlu0 %86
    %88 = vadd.xlane.f32.xlu0 %v73
    %v89 = vpop.xlane.xlu0 %88
    %v90 = vmul.f32 %v75, %v49
    %v91 = vmul.f32 %v77, %v49
    %v92 = vmul.f32 %v79, %v49
    %v93 = vmul.f32 %v81, %v49
    %v94 = vmul.f32 %v83, %v49
    %v95 = vmul.f32 %v85, %v49
    %v96 = vmul.f32 %v87, %v49
    %v97 = vmul.f32 %v89, %v49
    %v98 = vadd.f32 %v90, 1e-12
    %v99 = vadd.f32 %v91, 1e-12
    %v100 = vadd.f32 %v92, 1e-12
    %v101 = vadd.f32 %v93, 1e-12
    %v102 = vadd.f32 %v94, 1e-12
    %v103 = vadd.f32 %v95, 1e-12
    %v104 = vadd.f32 %v96, 1e-12
    %v105 = vadd.f32 %v97, 1e-12
    %v106 = vrsqrt.pop %v98
    %v107 = vrsqrt.pop %v99
    %v108 = vrsqrt.pop %v100
    %v109 = vrsqrt.pop %v101
    %v110 = vrsqrt.pop %v102
    %v111 = vrsqrt.pop %v103
    %v112 = vrsqrt.pop %v104
    %v113 = vrsqrt.pop %v105
    %v114 = vmul.f32 %v58, %v106
    %v115 = vmul.f32 %v59, %v107
    %v116 = vmul.f32 %v60, %v108
    %v117 = vmul.f32 %v61, %v109
    %v118 = vmul.f32 %v62, %v110
    %v119 = vmul.f32 %v63, %v111
    %v120 = vmul.f32 %v64, %v112
    %v121 = vmul.f32 %v65, %v113
    %v122 = vld [vmem:[%s1] sm:$0x1]
    %v124 = vlaneseq
    %v125 = vshrl.u32 %v124, 7
    %v126 = vsub.s32 0, %v125
    %v127 = vrot.slane %v122, %v126
    %v129 = vmul.f32 %v114, %v127
    %v130 = vmul.f32 %v115, %v127
    %v131 = vmul.f32 %v116, %v127
    %v132 = vmul.f32 %v117, %v127
    %v133 = vmul.f32 %v118, %v127
    %v134 = vmul.f32 %v119, %v127
    %v135 = vmul.f32 %v120, %v127
    %v136 = vmul.f32 %v121, %v127
    %v137 = vld [vmem:[%s2] sm:$0x1]
    %v139 = vlaneseq
    %v140 = vshrl.u32 %v139, 7
    %v141 = vsub.s32 0, %v140
    %v142 = vrot.slane %v137, %v141
    %v144 = vadd.f32 %v129, %v142
    %v145 = vadd.f32 %v130, %v142
    %v146 = vadd.f32 %v131, %v142
    %v147 = vadd.f32 %v132, %v142
    %v148 = vadd.f32 %v133, %v142
    %v149 = vadd.f32 %v134, %v142
    %v150 = vadd.f32 %v135, %v142
    %v151 = vadd.f32 %v136, %v142
    %v152 = vpack.c.bf16 %v145, %v144
    %v153 = vpack.c.bf16 %v147, %v146
    %v154 = vpack.c.bf16 %v149, %v148
    %v155 = vpack.c.bf16 %v151, %v150
    %156 = vst [vmem:[#allocation2] sm:$0xff] %v152
    %157 = vst [vmem:[#allocation2 + $0x8] sm:$0xff] %v153
    %158 = vst [vmem:[#allocation2 + $0x10] sm:$0xff] %v154
    %159 = vst [vmem:[#allocation2 + $0x18] sm:$0xff] %v155
  $region25: #{vit_forward.16} parent=0 // pred_fallthru
    _
  %v160 = vld [vmem:[#allocation2] sm:$0xff]
  %v161 = vld [vmem:[#allocation2 + $0x8] sm:$0xff]
  %v162 = vld [vmem:[#allocation2 + $0x10] sm:$0xff]
  %v163 = vld [vmem:[#allocation2 + $0x18] sm:$0xff]
  %v164 = vld [vmem:[%s3] sm:$0xff]
  %v165 = vld [vmem:[%s3 + $0x8] sm:$0xff]
  %v166 = vld [vmem:[%s3 + $0x10] sm:$0xff]
  %v167 = vld [vmem:[%s3 + $0x18] sm:$0xff]
  %v168 = vld [vmem:[%s3 + $0x20] sm:$0xff]
  %v169 = vld [vmem:[%s3 + $0x28] sm:$0xff]
  %v170 = vld [vmem:[%s3 + $0x30] sm:$0xff]
  %v171 = vld [vmem:[%s3 + $0x38] sm:$0xff]
  %v172 = vld [vmem:[%s3 + $0x40] sm:$0xff]
  %v173 = vld [vmem:[%s3 + $0x48] sm:$0xff]
  %v174 = vld [vmem:[%s3 + $0x50] sm:$0xff]
  %v175 = vld [vmem:[%s3 + $0x58] sm:$0xff]
  %v176 = vld [vmem:[%s3 + $0x60] sm:$0xff]
  %v177 = vld [vmem:[%s3 + $0x68] sm:$0xff]
  %v178 = vld [vmem:[%s3 + $0x70] sm:$0xff]
  %v179 = vld [vmem:[%s3 + $0x78] sm:$0xff]
  %v180 = vld [vmem:[%s4] sm:$0x3]
  %v182 = vlaneseq
  %v183 = vshrl.u32 %v182, 7
  %v184 = vsub.s32 0, %v183
  %v185 = vrot.slane %v180, %v184
  %v186 = vlaneseq
  %v187 = vshrl.u32 %v186, 7
  %v188 = vsub.s32 1, %v187
  %v189 = vrot.slane %v180, %v188
  %v208 = vunpack.c.l.b16 %v164
  %v209 = vunpack.c.h.b16 %v164
  %v210 = vunpack.c.l.b16 %v165
  %v211 = vunpack.c.h.b16 %v165
  %v212 = vunpack.c.l.b16 %v166
  %v213 = vunpack.c.h.b16 %v166
  %v214 = vunpack.c.l.b16 %v167
  %v215 = vunpack.c.h.b16 %v167
  %v216 = vunpack.c.l.b16 %v168
  %v217 = vunpack.c.h.b16 %v168
  %v218 = vunpack.c.l.b16 %v169
  %v219 = vunpack.c.h.b16 %v169
  %v220 = vunpack.c.l.b16 %v170
  %v221 = vunpack.c.h.b16 %v170
  %v222 = vunpack.c.l.b16 %v171
  %v223 = vunpack.c.h.b16 %v171
  %v224 = vunpack.c.l.b16 %v172
  %v225 = vunpack.c.h.b16 %v172
  %v226 = vunpack.c.l.b16 %v173
  %v227 = vunpack.c.h.b16 %v173
  %v228 = vunpack.c.l.b16 %v174
  %v229 = vunpack.c.h.b16 %v174
  %v230 = vunpack.c.l.b16 %v175
  %v231 = vunpack.c.h.b16 %v175
  %v232 = vunpack.c.l.b16 %v176
  %v233 = vunpack.c.h.b16 %v176
  %v234 = vunpack.c.l.b16 %v177
  %v235 = vunpack.c.h.b16 %v177
  %v236 = vunpack.c.l.b16 %v178
  %v237 = vunpack.c.h.b16 %v178
  %v238 = vunpack.c.l.b16 %v179
  %v239 = vunpack.c.h.b16 %v179
  %v240 = vpack.c.b16 %v210, %v208
  %v241 = vpack.c.b16 %v211, %v209
  %v242 = vpack.c.b16 %v214, %v212
  %v243 = vpack.c.b16 %v215, %v213
  %v244 = vpack.c.b16 %v218, %v216
  %v245 = vpack.c.b16 %v219, %v217
  %v246 = vpack.c.b16 %v222, %v220
  %v247 = vpack.c.b16 %v223, %v221
  %v248 = vpack.c.b16 %v226, %v224
  %v249 = vpack.c.b16 %v227, %v225
  %v250 = vpack.c.b16 %v230, %v228
  %v251 = vpack.c.b16 %v231, %v229
  %v252 = vpack.c.b16 %v234, %v232
  %v253 = vpack.c.b16 %v235, %v233
  %v254 = vpack.c.b16 %v238, %v236
  %v255 = vpack.c.b16 %v239, %v237
  %272 = vmatprep.subr.bf16.mxu0 %v241
  %273 = vmatpush1.bf16.msra.mxu0 %v240
  %274 = vmatprep.subr.bf16.mxu0 %v243
  %275 = vmatpush1.bf16.msra.mxu0 %v242
  %276 = vmatprep.subr.bf16.mxu0 %v245
  %277 = vmatpush1.bf16.msra.mxu0 %v244
  %278 = vmatprep.subr.bf16.mxu0 %v247
  %279 = vmatpush1.bf16.msra.mxu0 %v246
  %280 = vmatprep.subr.bf16.mxu0 %v249
  %281 = vmatpush1.bf16.msra.mxu0 %v248
  %282 = vmatprep.subr.bf16.mxu0 %v251
  %283 = vmatpush1.bf16.msra.mxu0 %v250
  %284 = vmatprep.subr.bf16.mxu0 %v253
  %285 = vmatpush1.bf16.msra.mxu0 %v252
  %286 = vmatprep.subr.bf16.mxu0 %v255
  %287 = vmatpush1.bf16.msra.mxu0 %v254
  %288 = vmatprep.subr.bf16.mxu0 0
  %289 = vmatpush1.bf16.msra.mxu0 0
  %290 = vmatprep.subr.bf16.mxu0 0
  %291 = vmatpush1.bf16.msra.mxu0 0
  %292 = vmatprep.subr.bf16.mxu0 0
  %293 = vmatpush1.bf16.msra.mxu0 0
  %294 = vmatprep.subr.bf16.mxu0 0
  %295 = vmatpush1.bf16.msra.mxu0 0
  %296 = vmatprep.subr.bf16.mxu0 0
  %297 = vmatpush1.bf16.msra.mxu0 0
  %298 = vmatprep.subr.bf16.mxu0 0
  %299 = vmatpush1.bf16.msra.mxu0 0
  %300 = vmatprep.subr.bf16.mxu0 0
  %301 = vmatpush1.bf16.msra.mxu0 0
  %302 = vmatprep.subr.bf16.mxu0 0
  %303 = vmatpush1.bf16.msra.mxu0 0
  %304 = vmatprep.mubr.bf16.mxu0 0
  %305 = vmatmul.mubr.bf16.gmra.mrb[0].mxu0 %v160
  %v306 = vpop.f32.mrb[0].mxu0
  %v307 = vadd.f32 %v185, %v306
  %v308 = vpop.f32.mrb[0].mxu0
  %v309 = vadd.f32 %v189, %v308
  %v310 = vpop.f32.mrb[0].mxu0
  %v311 = vadd.f32 %v185, %v310
  %v312 = vpop.f32.mrb[0].mxu0
  %v313 = vadd.f32 %v189, %v312
  %314 = vmatprep.mubr.bf16.mxu0 0
  %315 = vmatmul.mubr.bf16.gmra.mrb[0].mxu0 %v161
  %v316 = vpop.f32.mrb[0].mxu0
  %v317 = vadd.f32 %v185, %v316
  %v318 = vpop.f32.mrb[0].mxu0
  %v319 = vadd.f32 %v189, %v318
  %v320 = vpop.f32.mrb[0].mxu0
  %v321 = vadd.f32 %v185, %v320
  %v322 = vpop.f32.mrb[0].mxu0
  %v323 = vadd.f32 %v189, %v322
  %324 = vmatprep.mubr.bf16.mxu0 0
  %325 = vmatmul.mubr.bf16.gmra.mrb[0].mxu0 %v162
  %v326 = vpop.f32.mrb[0].mxu0
  %v327 = vadd.f32 %v185, %v326
  %v328 = vpop.f32.mrb[0].mxu0
  %v329 = vadd.f32 %v189, %v328
  %v330 = vpop.f32.mrb[0].mxu0
  %v331 = vadd.f32 %v185, %v330
  %v332 = vpop.f32.mrb[0].mxu0
  %v333 = vadd.f32 %v189, %v332
  %334 = vmatprep.mubr.bf16.mxu0 0
  %335 = vmatmul.mubr.bf16.gmra.mrb[0].mxu0 %v163
  %v336 = vpop.f32.mrb[0].mxu0
  %v337 = vadd.f32 %v185, %v336
  %v338 = vpop.f32.mrb[0].mxu0
  %v339 = vadd.f32 %v189, %v338
  %v340 = vpop.f32.mrb[0].mxu0
  %v341 = vadd.f32 %v185, %v340
  %v342 = vpop.f32.mrb[0].mxu0
  %v343 = vadd.f32 %v189, %v342
  %344 = vdwg.mxu0
  %v345 = vmul.f32 %v307, 0.5
  %v346 = vmul.f32 %v309, 0.5
  %v347 = vmul.f32 %v311, 0.5
  %v348 = vmul.f32 %v313, 0.5
  %v349 = vmul.f32 %v317, 0.5
  %v350 = vmul.f32 %v319, 0.5
  %v351 = vmul.f32 %v321, 0.5
  %v352 = vmul.f32 %v323, 0.5
  %v353 = vmul.f32 %v327, 0.5
  %v354 = vmul.f32 %v329, 0.5
  %v355 = vmul.f32 %v331, 0.5
  %v356 = vmul.f32 %v333, 0.5
  %v357 = vmul.f32 %v337, 0.5
  %v358 = vmul.f32 %v339, 0.5
  %v359 = vmul.f32 %v341, 0.5
  %v360 = vmul.f32 %v343, 0.5
  %v361 = vmul.f32 %v307, 0.044715
  %v362 = vmul.f32 %v309, 0.044715
  %v363 = vmul.f32 %v311, 0.044715
  %v364 = vmul.f32 %v313, 0.044715
  %v365 = vmul.f32 %v317, 0.044715
  %v366 = vmul.f32 %v319, 0.044715
  %v367 = vmul.f32 %v321, 0.044715
  %v368 = vmul.f32 %v323, 0.044715
  %v369 = vmul.f32 %v327, 0.044715
  %v370 = vmul.f32 %v329, 0.044715
  %v371 = vmul.f32 %v331, 0.044715
  %v372 = vmul.f32 %v333, 0.044715
  %v373 = vmul.f32 %v337, 0.044715
  %v374 = vmul.f32 %v339, 0.044715
  %v375 = vmul.f32 %v341, 0.044715
  %v376 = vmul.f32 %v343, 0.044715
  %v377 = vmul.f32 %v361, %v307
  %v378 = vmul.f32 %v362, %v309
  %v379 = vmul.f32 %v363, %v311
  %v380 = vmul.f32 %v364, %v313
  %v381 = vmul.f32 %v365, %v317
  %v382 = vmul.f32 %v366, %v319
  %v383 = vmul.f32 %v367, %v321
  %v384 = vmul.f32 %v368, %v323
  %v385 = vmul.f32 %v369, %v327
  %v386 = vmul.f32 %v370, %v329
  %v387 = vmul.f32 %v371, %v331
  %v388 = vmul.f32 %v372, %v333
  %v389 = vmul.f32 %v373, %v337
  %v390 = vmul.f32 %v374, %v339
  %v391 = vmul.f32 %v375, %v341
  %v392 = vmul.f32 %v376, %v343
  %v393 = vmul.f32 %v377, %v307
  %v394 = vmul.f32 %v378, %v309
  %v395 = vmul.f32 %v379, %v311
  %v396 = vmul.f32 %v380, %v313
  %v397 = vmul.f32 %v381, %v317
  %v398 = vmul.f32 %v382, %v319
  %v399 = vmul.f32 %v383, %v321
  %v400 = vmul.f32 %v384, %v323
  %v401 = vmul.f32 %v385, %v327
  %v402 = vmul.f32 %v386, %v329
  %v403 = vmul.f32 %v387, %v331
  %v404 = vmul.f32 %v388, %v333
  %v405 = vmul.f32 %v389, %v337
  %v406 = vmul.f32 %v390, %v339
  %v407 = vmul.f32 %v391, %v341
  %v408 = vmul.f32 %v392, %v343
  %v409 = vadd.f32 %v307, %v393
  %v410 = vadd.f32 %v309, %v394
  %v411 = vadd.f32 %v311, %v395
  %v412 = vadd.f32 %v313, %v396
  %v413 = vadd.f32 %v317, %v397
  %v414 = vadd.f32 %v319, %v398
  %v415 = vadd.f32 %v321, %v399
  %v416 = vadd.f32 %v323, %v400
  %v417 = vadd.f32 %v327, %v401
  %v418 = vadd.f32 %v329, %v402
  %v419 = vadd.f32 %v331, %v403
  %v420 = vadd.f32 %v333, %v404
  %v421 = vadd.f32 %v337, %v405
  %v422 = vadd.f32 %v339, %v406
  %v423 = vadd.f32 %v341, %v407
  %v424 = vadd.f32 %v343, %v408
  %v425 = vmul.f32 %v409, 0.7978846
  %v426 = vmul.f32 %v410, 0.7978846
  %v427 = vmul.f32 %v411, 0.7978846
  %v428 = vmul.f32 %v412, 0.7978846
  %v429 = vmul.f32 %v413, 0.7978846
  %v430 = vmul.f32 %v414, 0.7978846
  %v431 = vmul.f32 %v415, 0.7978846
  %v432 = vmul.f32 %v416, 0.7978846
  %v433 = vmul.f32 %v417, 0.7978846
  %v434 = vmul.f32 %v418, 0.7978846
  %v435 = vmul.f32 %v419, 0.7978846
  %v436 = vmul.f32 %v420, 0.7978846
  %v437 = vmul.f32 %v421, 0.7978846
  %v438 = vmul.f32 %v422, 0.7978846
  %v439 = vmul.f32 %v423, 0.7978846
  %v440 = vmul.f32 %v424, 0.7978846
  %v441 = vtanh.pop %v425
  %v442 = vtanh.pop %v426
  %v443 = vtanh.pop %v427
  %v444 = vtanh.pop %v428
  %v445 = vtanh.pop %v429
  %v446 = vtanh.pop %v430
  %v447 = vtanh.pop %v431
  %v448 = vtanh.pop %v432
  %v449 = vtanh.pop %v433
  %v450 = vtanh.pop %v434
  %v451 = vtanh.pop %v435
  %v452 = vtanh.pop %v436
  %v453 = vtanh.pop %v437
  %v454 = vtanh.pop %v438
  %v455 = vtanh.pop %v439
  %v456 = vtanh.pop %v440
  %v457 = vadd.f32 %v441, 1.0
  %v458 = vadd.f32 %v442, 1.0
  %v459 = vadd.f32 %v443, 1.0
  %v460 = vadd.f32 %v444, 1.0
  %v461 = vadd.f32 %v445, 1.0
  %v462 = vadd.f32 %v446, 1.0
  %v463 = vadd.f32 %v447, 1.0
  %v464 = vadd.f32 %v448, 1.0
  %v465 = vadd.f32 %v449, 1.0
  %v466 = vadd.f32 %v450, 1.0
  %v467 = vadd.f32 %v451, 1.0
  %v468 = vadd.f32 %v452, 1.0
  %v469 = vadd.f32 %v453, 1.0
  %v470 = vadd.f32 %v454, 1.0
  %v471 = vadd.f32 %v455, 1.0
  %v472 = vadd.f32 %v456, 1.0
  %v473 = vmul.f32 %v345, %v457
  %v474 = vmul.f32 %v346, %v458
  %v475 = vmul.f32 %v347, %v459
  %v476 = vmul.f32 %v348, %v460
  %v477 = vmul.f32 %v349, %v461
  %v478 = vmul.f32 %v350, %v462
  %v479 = vmul.f32 %v351, %v463
  %v480 = vmul.f32 %v352, %v464
  %v481 = vmul.f32 %v353, %v465
  %v482 = vmul.f32 %v354, %v466
  %v483 = vmul.f32 %v355, %v467
  %v484 = vmul.f32 %v356, %v468
  %v485 = vmul.f32 %v357, %v469
  %v486 = vmul.f32 %v358, %v470
  %v487 = vmul.f32 %v359, %v471
  %v488 = vmul.f32 %v360, %v472
  %v489 = vpack.c.bf16 %v475, %v473
  %v490 = vpack.c.bf16 %v476, %v474
  %v491 = vpack.c.bf16 %v479, %v477
  %v492 = vpack.c.bf16 %v480, %v478
  %v493 = vpack.c.bf16 %v483, %v481
  %v494 = vpack.c.bf16 %v484, %v482
  %v495 = vpack.c.bf16 %v487, %v485
  %v496 = vpack.c.bf16 %v488, %v486
  %v505 = vunpack.c.l.b16 %v489
  %v506 = vunpack.c.l.b16 %v490
  %v507 = vunpack.c.h.b16 %v489
  %v508 = vunpack.c.h.b16 %v490
  %v509 = vunpack.c.l.b16 %v491
  %v510 = vunpack.c.l.b16 %v492
  %v511 = vunpack.c.h.b16 %v491
  %v512 = vunpack.c.h.b16 %v492
  %v513 = vunpack.c.l.b16 %v493
  %v514 = vunpack.c.l.b16 %v494
  %v515 = vunpack.c.h.b16 %v493
  %v516 = vunpack.c.h.b16 %v494
  %v517 = vunpack.c.l.b16 %v495
  %v518 = vunpack.c.l.b16 %v496
  %v519 = vunpack.c.h.b16 %v495
  %v520 = vunpack.c.h.b16 %v496
  %v521 = vpack.c.b16 %v506, %v505
  %v522 = vpack.c.b16 %v508, %v507
  %v523 = vpack.c.b16 %v510, %v509
  %v524 = vpack.c.b16 %v512, %v511
  %v525 = vpack.c.b16 %v514, %v513
  %v526 = vpack.c.b16 %v516, %v515
  %v527 = vpack.c.b16 %v518, %v517
  %v528 = vpack.c.b16 %v520, %v519
  %537 = vst [vmem:[%s5] sm:$0xff] %v521
  %538 = vst [vmem:[%s5 + $0x8] sm:$0xff] %v522
  %539 = vst [vmem:[%s5 + $0x10] sm:$0xff] %v523
  %540 = vst [vmem:[%s5 + $0x18] sm:$0xff] %v524
  %541 = vst [vmem:[%s5 + $0x20] sm:$0xff] %v525
  %542 = vst [vmem:[%s5 + $0x28] sm:$0xff] %v526
  %543 = vst [vmem:[%s5 + $0x30] sm:$0xff] %v527
  %544 = vst [vmem:[%s5 + $0x38] sm:$0xff] %v528
  // Predicated region
  $region26: #{vit_forward.16} parent=0 // pred_check
    _
  $region27: #{vit_forward.16} parent=0 // pred_check_branch
    %546 = sbr.rel (0) target = $region29
  $region28: #{vit_forward.16} parent=0 // pred_region
    _
  $region29: #{vit_forward.16} parent=0 // pred_fallthru
    _
  // Predicated region
  $region30: #{vit_forward.16} parent=0 // pred_check
    _
  $region31: #{vit_forward.16} parent=0 // pred_check_branch
    %548 = sbr.rel (0) target = $region33
  $region32: #{vit_forward.16} parent=0 // pred_region
    _
  $region33: #{vit_forward.16} parent=0 // pred_fallthru
    _

// kernel: vit_forward.17
$region0: #{vit_forward.17}
  #allocation0 [shape = 'u32[]', space=smem, size = 0x4, offset = 0x4, fixed_abs, tag = 'smem constant byte address 0x4 - core index']
  #allocation1 [shape = 'u32[144,128]{1,0:T(1,128)}', space=vmem, size = 0x12000, scoped, tag = 'internal scratch']
  %s0 = inlined_call_operand.vmem [shape: bf16[64,256], index: 0, kind: input, shape index: {}]
  %s1 = inlined_call_operand.vmem [shape: bf16[256,128], index: 1, kind: input, shape index: {}]
  %s2 = inlined_call_operand.vmem [shape: f32[1,128], index: 2, kind: input, shape index: {}]
  %s3 = inlined_call_operand.vmem [shape: f32[64,128], index: 3, kind: input, shape index: {}]
  %s4 = inlined_call_operand.vmem [shape: f32[64,128], index: 4, kind: output, shape index: {}]
  %s5 = sld [smem:[#allocation0]]
  $region26: #{vit_forward.17} parent=0
    _
  %s7 = ssub.s32 1, %s5
  %s8 = scalar_select 0, %s7, %s5
  // Predicated region
  $region2: #{vit_forward.17} parent=0 // pred_check
    _
  $region3: #{vit_forward.17} parent=0 // pred_check_branch
    %10 = sbr.rel (0) target = $region5
  $region4: #{vit_forward.17} parent=0 // pred_region
    _
  $region5: #{vit_forward.17} parent=0 // pred_fallthru
    _
  // Predicated region
  $region6: #{vit_forward.17} parent=0 // pred_check
    _
  $region7: #{vit_forward.17} parent=0 // pred_check_branch
    %12 = sbr.rel (0) target = $region9
  $region8: #{vit_forward.17} parent=0 // pred_region
    _
  $region9: #{vit_forward.17} parent=0 // pred_fallthru
    _
  // Predicated region
  $region10: #{vit_forward.17} parent=0 // pred_check
    _
  $region11: #{vit_forward.17} parent=0 // pred_check_branch
    %14 = sbr.rel (0) target = $region13
  $region12: #{vit_forward.17} parent=0 // pred_region
    _
  $region13: #{vit_forward.17} parent=0 // pred_fallthru
    _
  // Predicated region
  $region14: #{vit_forward.17} parent=0 // pred_check
    _
  $region15: #{vit_forward.17} parent=0 // pred_check_branch
    %16 = sbr.rel (0) target = $region17
  $region16: #{vit_forward.17} parent=0 // pred_region
    _
  $region17: #{vit_forward.17} parent=0 // pred_fallthru
    _
  %v18 = vld [vmem:[%s0] sm:$0xff]
  %v19 = vld [vmem:[%s0 + $0x8] sm:$0xff]
  %v20 = vld [vmem:[%s0 + $0x10] sm:$0xff]
  %v21 = vld [vmem:[%s0 + $0x18] sm:$0xff]
  %v22 = vld [vmem:[%s0 + $0x20] sm:$0xff]
  %v23 = vld [vmem:[%s0 + $0x28] sm:$0xff]
  %v24 = vld [vmem:[%s0 + $0x30] sm:$0xff]
  %v25 = vld [vmem:[%s0 + $0x38] sm:$0xff]
  %v26 = vld [vmem:[%s1] sm:$0xf]
  %v27 = vld [vmem:[%s1 + $0x4] sm:$0xf]
  %v28 = vld [vmem:[%s1 + $0x8] sm:$0xf]
  %v29 = vld [vmem:[%s1 + $0xc] sm:$0xf]
  %v30 = vld [vmem:[%s1 + $0x10] sm:$0xf]
  %v31 = vld [vmem:[%s1 + $0x14] sm:$0xf]
  %v32 = vld [vmem:[%s1 + $0x18] sm:$0xf]
  %v33 = vld [vmem:[%s1 + $0x1c] sm:$0xf]
  %v34 = vld [vmem:[%s1 + $0x20] sm:$0xf]
  %v35 = vld [vmem:[%s1 + $0x24] sm:$0xf]
  %v36 = vld [vmem:[%s1 + $0x28] sm:$0xf]
  %v37 = vld [vmem:[%s1 + $0x2c] sm:$0xf]
  %v38 = vld [vmem:[%s1 + $0x30] sm:$0xf]
  %v39 = vld [vmem:[%s1 + $0x34] sm:$0xf]
  %v40 = vld [vmem:[%s1 + $0x38] sm:$0xf]
  %v41 = vld [vmem:[%s1 + $0x3c] sm:$0xf]
  %v42 = vld [vmem:[%s1 + $0x40] sm:$0xf]
  %v43 = vld [vmem:[%s1 + $0x44] sm:$0xf]
  %v44 = vld [vmem:[%s1 + $0x48] sm:$0xf]
  %v45 = vld [vmem:[%s1 + $0x4c] sm:$0xf]
  %v46 = vld [vmem:[%s1 + $0x50] sm:$0xf]
  %v47 = vld [vmem:[%s1 + $0x54] sm:$0xf]
  %v48 = vld [vmem:[%s1 + $0x58] sm:$0xf]
  %v49 = vld [vmem:[%s1 + $0x5c] sm:$0xf]
  %v50 = vld [vmem:[%s1 + $0x60] sm:$0xf]
  %v51 = vld [vmem:[%s1 + $0x64] sm:$0xf]
  %v52 = vld [vmem:[%s1 + $0x68] sm:$0xf]
  %v53 = vld [vmem:[%s1 + $0x6c] sm:$0xf]
  %v54 = vld [vmem:[%s1 + $0x70] sm:$0xf]
  %v55 = vld [vmem:[%s1 + $0x74] sm:$0xf]
  %v56 = vld [vmem:[%s1 + $0x78] sm:$0xf]
  %v57 = vld [vmem:[%s1 + $0x7c] sm:$0xf]
  %v58 = vld [vmem:[%s2] sm:$0x1]
  %v60 = vlaneseq
  %v61 = vshrl.u32 %v60, 7
  %v62 = vsub.s32 0, %v61
  %v63 = vrot.slane %v58, %v62
  %v73 = vunpack.c.l.b16 %v18
  %v74 = vunpack.c.h.b16 %v18
  %v75 = vunpack.c.l.b16 %v19
  %v76 = vunpack.c.h.b16 %v19
  %v77 = vunpack.c.l.b16 %v20
  %v78 = vunpack.c.h.b16 %v20
  %v79 = vunpack.c.l.b16 %v21
  %v80 = vunpack.c.h.b16 %v21
  %v81 = vunpack.c.l.b16 %v22
  %v82 = vunpack.c.h.b16 %v22
  %v83 = vunpack.c.l.b16 %v23
  %v84 = vunpack.c.h.b16 %v23
  %v85 = vunpack.c.l.b16 %v24
  %v86 = vunpack.c.h.b16 %v24
  %v87 = vunpack.c.l.b16 %v25
  %v88 = vunpack.c.h.b16 %v25
  %v89 = vpack.c.b16 %v75, %v73
  %v90 = vpack.c.b16 %v76, %v74
  %v91 = vpack.c.b16 %v79, %v77
  %v92 = vpack.c.b16 %v80, %v78
  %v93 = vpack.c.b16 %v83, %v81
  %v94 = vpack.c.b16 %v84, %v82
  %v95 = vpack.c.b16 %v87, %v85
  %v96 = vpack.c.b16 %v88, %v86
  %v137 = vunpack.c.l.b16 %v26
  %v138 = vunpack.c.l.b16 %v27
  %v139 = vunpack.c.l.b16 %v28
  %v140 = vunpack.c.l.b16 %v29
  %v141 = vunpack.c.l.b16 %v30
  %v142 = vunpack.c.l.b16 %v31
  %v143 = vunpack.c.l.b16 %v32
  %v144 = vunpack.c.l.b16 %v33
  %v145 = vunpack.c.l.b16 %v34
  %v146 = vunpack.c.l.b16 %v35
  %v147 = vunpack.c.l.b16 %v36
  %v148 = vunpack.c.l.b16 %v37
  %v149 = vunpack.c.l.b16 %v38
  %v150 = vunpack.c.l.b16 %v39
  %v151 = vunpack.c.l.b16 %v40
  %v152 = vunpack.c.l.b16 %v41
  %v153 = vunpack.c.l.b16 %v42
  %v154 = vunpack.c.l.b16 %v43
  %v155 = vunpack.c.l.b16 %v44
  %v156 = vunpack.c.l.b16 %v45
  %v157 = vunpack.c.l.b16 %v46
  %v158 = vunpack.c.l.b16 %v47
  %v159 = vunpack.c.l.b16 %v48
  %v160 = vunpack.c.l.b16 %v49
  %v161 = vunpack.c.l.b16 %v50
  %v162 = vunpack.c.l.b16 %v51
  %v163 = vunpack.c.l.b16 %v52
  %v164 = vunpack.c.l.b16 %v53
  %v165 = vunpack.c.l.b16 %v54
  %v166 = vunpack.c.l.b16 %v55
  %v167 = vunpack.c.l.b16 %v56
  %v168 = vunpack.c.l.b16 %v57
  %v169 = vpack.c.b16 %v138, %v137
  %v170 = vpack.c.b16 %v140, %v139
  %v171 = vpack.c.b16 %v142, %v141
  %v172 = vpack.c.b16 %v144, %v143
  %v173 = vpack.c.b16 %v146, %v145
  %v174 = vpack.c.b16 %v148, %v147
  %v175 = vpack.c.b16 %v150, %v149
  %v176 = vpack.c.b16 %v152, %v151
  %v177 = vpack.c.b16 %v154, %v153
  %v178 = vpack.c.b16 %v156, %v155
  %v179 = vpack.c.b16 %v158, %v157
  %v180 = vpack.c.b16 %v160, %v159
  %v181 = vpack.c.b16 %v162, %v161
  %v182 = vpack.c.b16 %v164, %v163
  %v183 = vpack.c.b16 %v166, %v165
  %v184 = vpack.c.b16 %v168, %v167
  %201 = vmatprep.subr.bf16.mxu0 0
  %202 = vmatpush1.bf16.msra.mxu0 %v169
  %203 = vmatprep.subr.bf16.mxu0 0
  %204 = vmatpush1.bf16.msra.mxu0 %v170
  %205 = vmatprep.subr.bf16.mxu0 0
  %206 = vmatpush1.bf16.msra.mxu0 %v171
  %207 = vmatprep.subr.bf16.mxu0 0
  %208 = vmatpush1.bf16.msra.mxu0 %v172
  %209 = vmatprep.subr.bf16.mxu0 0
  %210 = vmatpush1.bf16.msra.mxu0 %v173
  %211 = vmatprep.subr.bf16.mxu0 0
  %212 = vmatpush1.bf16.msra.mxu0 %v174
  %213 = vmatprep.subr.bf16.mxu0 0
  %214 = vmatpush1.bf16.msra.mxu0 %v175
  %215 = vmatprep.subr.bf16.mxu0 0
  %216 = vmatpush1.bf16.msra.mxu0 %v176
  %217 = vmatprep.subr.bf16.mxu0 0
  %218 = vmatpush1.bf16.msra.mxu0 %v177
  %219 = vmatprep.subr.bf16.mxu0 0
  %220 = vmatpush1.bf16.msra.mxu0 %v178
  %221 = vmatprep.subr.bf16.mxu0 0
  %222 = vmatpush1.bf16.msra.mxu0 %v179
  %223 = vmatprep.subr.bf16.mxu0 0
  %224 = vmatpush1.bf16.msra.mxu0 %v180
  %225 = vmatprep.subr.bf16.mxu0 0
  %226 = vmatpush1.bf16.msra.mxu0 %v181
  %227 = vmatprep.subr.bf16.mxu0 0
  %228 = vmatpush1.bf16.msra.mxu0 %v182
  %229 = vmatprep.subr.bf16.mxu0 0
  %230 = vmatpush1.bf16.msra.mxu0 %v183
  %231 = vmatprep.subr.bf16.mxu0 0
  %232 = vmatpush1.bf16.msra.mxu0 %v184
  %233 = vmatprep.mubr.bf16.mxu0 %v90
  %234 = vmatmul.mubr.bf16.gmra.mrb[0].mxu0 %v89
  %v235 = vpop.f32.mrb[0].mxu0
  %v236 = vadd.f32 %v63, %v235
  %v237 = vpop.f32.mrb[0].mxu0
  %v238 = vpop.f32.mrb[0].mxu0
  %v239 = vadd.f32 %v63, %v238
  %v240 = vpop.f32.mrb[0].mxu0
  %241 = vmatprep.mubr.bf16.mxu0 %v92
  %242 = vmatmul.mubr.bf16.gmra.mrb[0].mxu0 %v91
  %v243 = vpop.f32.mrb[0].mxu0
  %v244 = vadd.f32 %v63, %v243
  %v245 = vpop.f32.mrb[0].mxu0
  %v246 = vpop.f32.mrb[0].mxu0
  %v247 = vadd.f32 %v63, %v246
  %v248 = vpop.f32.mrb[0].mxu0
  %249 = vmatprep.mubr.bf16.mxu0 %v94
  %250 = vmatmul.mubr.bf16.gmra.mrb[0].mxu0 %v93
  %v251 = vpop.f32.mrb[0].mxu0
  %v252 = vadd.f32 %v63, %v251
  %v253 = vpop.f32.mrb[0].mxu0
  %v254 = vpop.f32.mrb[0].mxu0
  %v255 = vadd.f32 %v63, %v254
  %v256 = vpop.f32.mrb[0].mxu0
  %257 = vmatprep.mubr.bf16.mxu0 %v96
  %258 = vmatmul.mubr.bf16.gmra.mrb[0].mxu0 %v95
  %v259 = vpop.f32.mrb[0].mxu0
  %v260 = vadd.f32 %v63, %v259
  %v261 = vpop.f32.mrb[0].mxu0
  %v262 = vpop.f32.mrb[0].mxu0
  %v263 = vadd.f32 %v63, %v262
  %v264 = vpop.f32.mrb[0].mxu0
  %265 = vdwg.mxu0
  %v266 = vld [vmem:[%s3] sm:$0xff]
  %v267 = vld [vmem:[%s3 + $0x8] sm:$0xff]
  %v268 = vld [vmem:[%s3 + $0x10] sm:$0xff]
  %v269 = vld [vmem:[%s3 + $0x18] sm:$0xff]
  %v270 = vld [vmem:[%s3 + $0x20] sm:$0xff]
  %v271 = vld [vmem:[%s3 + $0x28] sm:$0xff]
  %v272 = vld [vmem:[%s3 + $0x30] sm:$0xff]
  %v273 = vld [vmem:[%s3 + $0x38] sm:$0xff]
  %v274 = vadd.f32 %v236, %v266
  %v275 = vadd.f32 %v239, %v267
  %v276 = vadd.f32 %v244, %v268
  %v277 = vadd.f32 %v247, %v269
  %v278 = vadd.f32 %v252, %v270
  %v279 = vadd.f32 %v255, %v271
  %v280 = vadd.f32 %v260, %v272
  %v281 = vadd.f32 %v263, %v273
  %282 = vst [vmem:[%s4] sm:$0xff] %v274
  %283 = vst [vmem:[%s4 + $0x8] sm:$0xff] %v275
  %284 = vst [vmem:[%s4 + $0x10] sm:$0xff] %v276
  %285 = vst [vmem:[%s4 + $0x18] sm:$0xff] %v277
  %286 = vst [vmem:[%s4 + $0x20] sm:$0xff] %v278
  %287 = vst [vmem:[%s4 + $0x28] sm:$0xff] %v279
  %288 = vst [vmem:[%s4 + $0x30] sm:$0xff] %v280
  %289 = vst [vmem:[%s4 + $0x38] sm:$0xff] %v281
  // Predicated region
  $region18: #{vit_forward.17} parent=0 // pred_check
    _
  $region19: #{vit_forward.17} parent=0 // pred_check_branch
    %291 = sbr.rel (0) target = $region21
  $region20: #{vit_forward.17} parent=0 // pred_region
    _
  $region21: #{vit_forward.17} parent=0 // pred_fallthru
    _
  // Predicated region
  $region22: #{vit_forward.17} parent=0 // pred_check
    _
  $region23: #{vit_forward.17} parent=0 // pred_check_branch
    %293 = sbr.rel (0) target = $region25
  $region24: #{vit_forward.17} parent=0 // pred_region
    _
  $region25: #{vit_forward.17} parent=0 // pred_fallthru
    _

// kernel: vit_forward.23
$region0: #{vit_forward.23}
  #allocation0 [shape = 'u32[]', space=smem, size = 0x4, offset = 0x4, fixed_abs, tag = 'smem constant byte address 0x4 - core index']
  #allocation1 [shape = 'u32[144,128]{1,0:T(1,128)}', space=vmem, size = 0x12000, scoped, tag = 'internal scratch']
  #allocation2 [shape = 'bf16[2,128]{1,0:T(2,128)(2,1)}', space=vmem, size = 0x200, scoped, tag = 'scratch operand']
  %s0 = inlined_call_operand.vmem [shape: f32[2,128], index: 0, kind: input, shape index: {}]
  %s1 = inlined_call_operand.vmem [shape: f32[1,128], index: 1, kind: input, shape index: {}]
  %s2 = inlined_call_operand.vmem [shape: f32[1,128], index: 2, kind: input, shape index: {}]
  %s3 = inlined_call_operand.vmem [shape: bf16[128,128], index: 3, kind: input, shape index: {}]
  %s4 = inlined_call_operand.vmem [shape: f32[1,128], index: 4, kind: input, shape index: {}]
  %s5 = inlined_call_operand.hbm [shape: f32[2,128], index: 5, kind: output, shape index: {}]
  %s6 = sld [smem:[#allocation0]]
  $region34: #{vit_forward.23} parent=0
    _
  %s8 = ssub.s32 1, %s6
  %s9 = scalar_select 0, %s8, %s6
  $region1: #{vit_forward.23} parent=0
    #allocation3 [shape = 'u8[1024]{0}', space=vmem, size = 0x400, scoped, tag = 'output window, operand 0, single buffered']
    #allocation4 [shape = 's32[1]{0}', space=sflag, size = 0x4, scoped, tag = 'scoped memory for vit_forward.23']
    %10 = vsyncpa [#allocation4], 0
    // Predicated region
    $region2: #{vit_forward.23} parent=1 // pred_check
      _
    $region3: #{vit_forward.23} parent=1 // pred_check_branch
      %12 = sbr.rel (0) target = $region5
    $region4: #{vit_forward.23} parent=1 // pred_region
      _
    $region5: #{vit_forward.23} parent=1 // pred_fallthru
      _
    // Predicated region
    $region6: #{vit_forward.23} parent=1 // pred_check
      _
    $region7: #{vit_forward.23} parent=1 // pred_check_branch
      %14 = sbr.rel (0) target = $region9
    $region8: #{vit_forward.23} parent=1 // pred_region
      _
    $region9: #{vit_forward.23} parent=1 // pred_fallthru
      _
    // Predicated region
    $region10: #{vit_forward.23} parent=1 // pred_check
      _
    $region11: #{vit_forward.23} parent=1 // pred_check_branch
      %16 = sbr.rel (0) target = $region13
    $region12: #{vit_forward.23} parent=1 // pred_region
      _
    $region13: #{vit_forward.23} parent=1 // pred_fallthru
      _
    // Predicated region
    $region14: #{vit_forward.23} parent=1 // pred_check
      _
    $region15: #{vit_forward.23} parent=1 // pred_check_branch
      %18 = sbr.rel (0) target = $region17
    $region16: #{vit_forward.23} parent=1 // pred_region
      _
    $region17: #{vit_forward.23} parent=1 // pred_fallthru
      _
    // Predicated region
    $region18: #{vit_forward.23} parent=1 // pred_check
      _
    $region19: #{vit_forward.23} parent=1 // pred_check_branch
      %20 = sbr.rel (0) target = $region21
    $region20: #{vit_forward.23} parent=1 // pred_region
      _
    $region21: #{vit_forward.23} parent=1 // pred_fallthru
      _
    %p22 = scmp.eq.s32.totalorder 0, 0
    // Predicated region
    $region22: #{vit_forward.23} parent=1 // pred_check
      %p23 = pneg %p22
    $region23: #{vit_forward.23} parent=1 // pred_check_branch
      %25 = sbr.rel (%p23) target = $region25
    $region24: #{vit_forward.23} parent=1 // pred_region
      %v26 = vld [vmem:[%s0] sm:$0x3]
      %vm27 = vcmask 1041408
      %v28 = vsel %vm27, %v26, 0.0
      %29 = vadd.xlane.f32.xlu0 %v28
      %v30 = vpop.xlane.xlu0 %29
      %v31 = vrcp.pop 128.0
      %v32 = vmul.f32 %v30, %v31
      %v33 = vsub.f32 %v26, %v32
      %v34 = vmul.f32 %v33, %v33
      %v35 = vsel %vm27, %v34, 0.0
      %36 = vadd.xlane.f32.xlu0 %v35
      %v37 = vpop.xlane.xlu0 %36
      %v38 = vmul.f32 %v37, %v31
      %v39 = vadd.f32 %v38, 1e-12
      %v40 = vrsqrt.pop %v39
      %v41 = vmul.f32 %v33, %v40
      %v42 = vld [vmem:[%s1] sm:$0x1]
      %v44 = vlaneseq
      %v45 = vshrl.u32 %v44, 7
      %v46 = vsub.s32 0, %v45
      %v47 = vrot.slane %v42, %v46
      %v49 = vmul.f32 %v41, %v47
      %v50 = vld [vmem:[%s2] sm:$0x1]
      %v52 = vlaneseq
      %v53 = vshrl.u32 %v52, 7
      %v54 = vsub.s32 0, %v53
      %v55 = vrot.slane %v50, %v54
      %v57 = vadd.f32 %v49, %v55
      %v58 = vpack.c.bf16 %v57, %v57
      %59 = vst [vmem:[#allocation2] sm:$0x1] %v58
    $region25: #{vit_forward.23} parent=1 // pred_fallthru
      _
    %v60 = vld [vmem:[#allocation2] sm:$0x1]
    %v61 = vld [vmem:[%s3] sm:$0xf]
    %v62 = vld [vmem:[%s3 + $0x4] sm:$0xf]
    %v63 = vld [vmem:[%s3 + $0x8] sm:$0xf]
    %v64 = vld [vmem:[%s3 + $0xc] sm:$0xf]
    %v65 = vld [vmem:[%s3 + $0x10] sm:$0xf]
    %v66 = vld [vmem:[%s3 + $0x14] sm:$0xf]
    %v67 = vld [vmem:[%s3 + $0x18] sm:$0xf]
    %v68 = vld [vmem:[%s3 + $0x1c] sm:$0xf]
    %v69 = vld [vmem:[%s3 + $0x20] sm:$0xf]
    %v70 = vld [vmem:[%s3 + $0x24] sm:$0xf]
    %v71 = vld [vmem:[%s3 + $0x28] sm:$0xf]
    %v72 = vld [vmem:[%s3 + $0x2c] sm:$0xf]
    %v73 = vld [vmem:[%s3 + $0x30] sm:$0xf]
    %v74 = vld [vmem:[%s3 + $0x34] sm:$0xf]
    %v75 = vld [vmem:[%s3 + $0x38] sm:$0xf]
    %v76 = vld [vmem:[%s3 + $0x3c] sm:$0xf]
    %v77 = vld [vmem:[%s4] sm:$0x1]
    %v79 = vlaneseq
    %v80 = vshrl.u32 %v79, 7
    %v81 = vsub.s32 0, %v80
    %v82 = vrot.slane %v77, %v81
    %v100 = vunpack.c.l.b16 %v61
    %v101 = vunpack.c.l.b16 %v62
    %v102 = vunpack.c.l.b16 %v63
    %v103 = vunpack.c.l.b16 %v64
    %v104 = vunpack.c.l.b16 %v65
    %v105 = vunpack.c.l.b16 %v66
    %v106 = vunpack.c.l.b16 %v67
    %v107 = vunpack.c.l.b16 %v68
    %v108 = vunpack.c.l.b16 %v69
    %v109 = vunpack.c.l.b16 %v70
    %v110 = vunpack.c.l.b16 %v71
    %v111 = vunpack.c.l.b16 %v72
    %v112 = vunpack.c.l.b16 %v73
    %v113 = vunpack.c.l.b16 %v74
    %v114 = vunpack.c.l.b16 %v75
    %v115 = vunpack.c.l.b16 %v76
    %v116 = vpack.c.b16 %v101, %v100
    %v117 = vpack.c.b16 %v103, %v102
    %v118 = vpack.c.b16 %v105, %v104
    %v119 = vpack.c.b16 %v107, %v106
    %v120 = vpack.c.b16 %v109, %v108
    %v121 = vpack.c.b16 %v111, %v110
    %v122 = vpack.c.b16 %v113, %v112
    %v123 = vpack.c.b16 %v115, %v114
    %132 = vmatprep.subr.bf16.mxu0 0
    %133 = vmatpush1.bf16.msra.mxu0 %v116
    %134 = vmatprep.subr.bf16.mxu0 0
    %135 = vmatpush1.bf16.msra.mxu0 %v117
    %136 = vmatprep.subr.bf16.mxu0 0
    %137 = vmatpush1.bf16.msra.mxu0 %v118
    %138 = vmatprep.subr.bf16.mxu0 0
    %139 = vmatpush1.bf16.msra.mxu0 %v119
    %140 = vmatprep.subr.bf16.mxu0 0
    %141 = vmatpush1.bf16.msra.mxu0 %v120
    %142 = vmatprep.subr.bf16.mxu0 0
    %143 = vmatpush1.bf16.msra.mxu0 %v121
    %144 = vmatprep.subr.bf16.mxu0 0
    %145 = vmatpush1.bf16.msra.mxu0 %v122
    %146 = vmatprep.subr.bf16.mxu0 0
    %147 = vmatpush1.bf16.msra.mxu0 %v123
    %148 = vmatprep.subr.bf16.mxu0 0
    %149 = vmatpush1.bf16.msra.mxu0 0
    %150 = vmatprep.subr.bf16.mxu0 0
    %151 = vmatpush1.bf16.msra.mxu0 0
    %152 = vmatprep.subr.bf16.mxu0 0
    %153 = vmatpush1.bf16.msra.mxu0 0
    %154 = vmatprep.subr.bf16.mxu0 0
    %155 = vmatpush1.bf16.msra.mxu0 0
    %156 = vmatprep.subr.bf16.mxu0 0
    %157 = vmatpush1.bf16.msra.mxu0 0
    %158 = vmatprep.subr.bf16.mxu0 0
    %159 = vmatpush1.bf16.msra.mxu0 0
    %160 = vmatprep.subr.bf16.mxu0 0
    %161 = vmatpush1.bf16.msra.mxu0 0
    %162 = vmatprep.subr.bf16.mxu0 0
    %163 = vmatpush1.bf16.msra.mxu0 0
    %164 = vmatprep.mubr.bf16.mxu0 0
    %165 = vmatmul.mubr.bf16.gmra.mrb[0].mxu0 %v60
    %v166 = vpop.f32.mrb[0].mxu0
    %v167 = vadd.f32 %v82, %v166
    %v168 = vpop.f32.mrb[0].mxu0
    %v169 = vpop.f32.mrb[0].mxu0
    %v170 = vpop.f32.mrb[0].mxu0
    %171 = vdwg.mxu0
    %v172 = vtanh.pop %v167
    %173 = vst [vmem:[#allocation3] sm:$0x3] %v172
    // Predicated region
    $region26: #{vit_forward.23} parent=1 // pred_check
      _
    $region27: #{vit_forward.23} parent=1 // pred_check_branch
      %175 = sbr.rel (0) target = $region29
    $region28: #{vit_forward.23} parent=1 // pred_region
      %s177 = ssub.s32 32, 32
      %178 = vsyncadd [#allocation4], %s177
      %s180 = sshll.u32 [#allocation3], 4
      %s181 = int_to_ptr.vmem [resolvable:$true] %s180
      %183 = dma.vmem_to_hbm [thread:$0]  %s181, 32, %s5, [#allocation4]
    $region29: #{vit_forward.23} parent=1 // pred_fallthru
      _
    // Predicated region
    $region30: #{vit_forward.23} parent=1 // pred_check
      _
    $region31: #{vit_forward.23} parent=1 // pred_check_branch
      %185 = sbr.rel (0) target = $region33
    $region32: #{vit_forward.23} parent=1 // pred_region
      %186 = dma.done [#allocation4], 32
    $region33: #{vit_forward.23} parent=1 // pred_fallthru
      _
    %187 = vsyncpa [#allocation4], 1

</llo_original>
